<compile_context>
chip_gen: v6e
topology: v6e:2x2x1
jax: 0.10.0
libtpu: 0.0.40
codegen_flags: <defaults>
</compile_context>

<pallas_src>
import jax
import jax.numpy as jnp
from jax import lax
from jax.experimental import pallas as pl
from jax.experimental.pallas import tpu as pltpu

# ------------------------- synthetic config (small) -------------------------
B = 8                # batch
TB = 8               # batch tile per grid step (TB = B -> grid=(1,), M = 64)
EN = 8               # max number of entities
ONE_HOT_N = 8        # one_hot num_embeddings
BINARY_BITS = 7      # binary bit_num
ID = ONE_HOT_N + BINARY_BITS + 1   # input_dim = 16
OS = 128             # output_dim (multiple of 128 -> lane-dense stores)
HD = 32              # head_dim
HN = 2               # head_num
HID = 128            # hidden_dim
L = 2                # layer_num
LN_EPS = 1e-5
NEG_BIG = 1e9
SCALE = 1.0 / (HD ** 0.5)
M = TB * EN          # rows folded into every matmul


# ------------------------------ in-kernel math ------------------------------
def _layer_norm(h, g, b):
    mu = jnp.mean(h, axis=-1, keepdims=True)
    var = jnp.mean((h - mu) ** 2, axis=-1, keepdims=True)
    return (h - mu) * lax.rsqrt(var + LN_EPS) * g + b


def _softmax_lastdim(s):
    # exact divide (no approx reciprocal) so the kernel tracks the reference
    m = jnp.max(s, axis=-1, keepdims=True)
    e = jnp.exp(s - m)
    return e / jnp.sum(e, axis=-1, keepdims=True)


def entity_encoder_kernel(
    x_ref,                                     # (M, ID)      bf16 entity features
    bias_ref,                                  # (1, M, M)    f32 block-diag + key-validity additive bias
    poolw_ref,                                 # (TB, EN, 1)  f32 mask/entity_num pooling weights
    emb_w_ref, emb_b_ref,                      # transformer input embedding fc
    apre_w_ref, apre_b_ref,                    # fused qkv  (L, OS, 3*HN*HD)
    proj_w_ref, proj_b_ref,                    # projection (L, HN*HD, OS)
    ln1_g_ref, ln1_b_ref,
    mlp1_w_ref, mlp1_b_ref, mlp2_w_ref, mlp2_b_ref,
    ln2_g_ref, ln2_b_ref,
    efc_w_ref, efc_b_ref,                      # entity_fc
    pfc_w_ref, pfc_b_ref,                      # embed_fc
    out_ent_ref,                               # (M, OS)  entity_embeddings (flat)
    out_pool_ref,                              # (TB, OS) embedded_entity
):
    f32, bf16 = jnp.float32, jnp.bfloat16
    trans_b = (((1,), (1,)), ((), ()))         # contract last dims: q @ k^T

    xb = x_ref[...]                            # (M, ID) bf16
    attn_bias = bias_ref[0]                    # (M, M) f32: 0 valid, -1e9 masked/cross-batch
    pool_w = poolw_ref[...]                    # (TB, EN, 1) f32

    # Transformer input embedding: fc_block(input_dim, output_dim, relu)
    h = jnp.maximum(
        jnp.dot(xb, emb_w_ref[...], preferred_element_type=f32) + emb_b_ref[...],
        0.0)                                   # (M, OS) f32

    for l in range(L):                         # layer_num is static -> unrolled
        hb = h.astype(bf16)

        # fused qkv: one N=3*HN*HD=192 matmul instead of 6 N=32 matmuls
        qkv = jnp.dot(hb, apre_w_ref[l], preferred_element_type=f32) + apre_b_ref[l]

        ctxs = []
        for hh in range(HN):                   # static 32-lane per-head slices
            q = qkv[:, hh * HD:(hh + 1) * HD].astype(bf16)
            k = qkv[:, HN * HD + hh * HD: HN * HD + (hh + 1) * HD].astype(bf16)
            v = qkv[:, 2 * HN * HD + hh * HD: 2 * HN * HD + (hh + 1) * HD].astype(bf16)
            # block-diagonal attention: one (M,HD)x(HD,M) matmul, additive bias
            s = lax.dot_general(q, k, trans_b, preferred_element_type=f32) * SCALE \
                + attn_bias                    # (M, M)
            p = _softmax_lastdim(s)
            ctxs.append(jnp.dot(p.astype(bf16), v, preferred_element_type=f32))  # (M, HD)

        # fused head projection: one K=HN*HD matmul against the original proj_w
        ctx = jnp.concatenate(ctxs, axis=-1).astype(bf16)            # (M, HN*HD)
        a = jnp.dot(ctx, proj_w_ref[l], preferred_element_type=f32) + proj_b_ref[l]

        # ln_type == 'post'
        h = _layer_norm(h + a, ln1_g_ref[l], ln1_b_ref[l])
        mlp = jnp.maximum(
            jnp.dot(h.astype(bf16), mlp1_w_ref[l],
                    preferred_element_type=f32) + mlp1_b_ref[l], 0.0)
        mlp = jnp.maximum(
            jnp.dot(mlp.astype(bf16), mlp2_w_ref[l],
                    preferred_element_type=f32) + mlp2_b_ref[l], 0.0)
        h = _layer_norm(h + mlp, ln2_g_ref[l], ln2_b_ref[l])

    # entity_embeddings = entity_fc(act(x))  (fc_block -> linear + relu)
    ent = jnp.maximum(
        jnp.dot(jnp.maximum(h, 0.0).astype(bf16), efc_w_ref[...],
                preferred_element_type=f32) + efc_b_ref[...], 0.0)
    out_ent_ref[...] = ent                                           # (M, 128) dense store

    # entity_reduce_type == 'entity_num': masked mean pool (mask/n precomputed, f32)
    pooled = jnp.sum(h.reshape(TB, EN, OS) * pool_w, axis=1)         # (TB, OS) f32
    emb = jnp.maximum(
        jnp.dot(pooled.astype(bf16), pfc_w_ref[...],
                preferred_element_type=f32) + pfc_b_ref[...], 0.0)
    out_pool_ref[...] = emb                                          # (8, 128) dense store


# ------------------------------- JAX glue -----------------------------------
def encode_inputs(x_dict):
    """one_hot / binary / unsqueeze encodings + concat (matches the PyTorch loop)."""
    outs = []
    # arc == 'one_hot'  (clamp to num_embeddings - 1, then eye lookup)
    ut = jnp.minimum(x_dict['unit_type'].astype(jnp.int32), ONE_HOT_N - 1)
    outs.append(jax.nn.one_hot(ut, ONE_HOT_N, dtype=jnp.float32))
    # arc == 'binary'   (get_binary_embed_mat: MSB-first bit decomposition)
    bp = x_dict['build_progress'].astype(jnp.int32)
    shifts = jnp.arange(BINARY_BITS - 1, -1, -1, dtype=jnp.int32)
    outs.append(((bp[..., None] >> shifts) & 1).astype(jnp.float32))
    # arc == 'unsqueeze'
    outs.append(x_dict['health'].astype(jnp.float32)[..., None])
    return jnp.concatenate(outs, axis=-1)        # (B, EN, ID)


def init_params(key):
    def nrm(k, shape, scale=0.1):
        return jax.random.normal(k, shape, dtype=jnp.float32) * scale
    ks = jax.random.split(key, 14)
    return {
        'emb_w': nrm(ks[0], (ID, OS)),      'emb_b': nrm(ks[1], (1, OS)),
        'apre_w': nrm(ks[2], (L, OS, 3 * HN * HD)),
        'apre_b': nrm(ks[3], (L, 1, 3 * HN * HD)),
        'proj_w': nrm(ks[4], (L, HN * HD, OS)), 'proj_b': nrm(ks[5], (L, 1, OS)),
        'ln1_g': jnp.ones((L, 1, OS), jnp.float32),
        'ln1_b': jnp.zeros((L, 1, OS), jnp.float32),
        'mlp1_w': nrm(ks[6], (L, OS, HID)), 'mlp1_b': nrm(ks[7], (L, 1, HID)),
        'mlp2_w': nrm(ks[8], (L, HID, OS)), 'mlp2_b': nrm(ks[9], (L, 1, OS)),
        'ln2_g': jnp.ones((L, 1, OS), jnp.float32),
        'ln2_b': jnp.zeros((L, 1, OS), jnp.float32),
        'efc_w': nrm(ks[10], (OS, OS)),     'efc_b': nrm(ks[11], (1, OS)),
        'pfc_w': nrm(ks[12], (OS, OS)),     'pfc_b': nrm(ks[13], (1, OS)),
    }


_WEIGHT_KEYS = ['emb_w', 'emb_b', 'apre_w', 'apre_b', 'proj_w', 'proj_b',
                'ln1_g', 'ln1_b', 'mlp1_w', 'mlp1_b', 'mlp2_w', 'mlp2_b',
                'ln2_g', 'ln2_b', 'efc_w', 'efc_b', 'pfc_w', 'pfc_b']


def _prep_params(p):
    """Cast MXU operands to bf16; biases / LN params stay f32. No head splits
    needed anymore (qkv is consumed fused, projection uses the original slab)."""
    bf = lambda w: w.astype(jnp.bfloat16)
    return {
        'emb_w': bf(p['emb_w']), 'emb_b': p['emb_b'],
        'apre_w': bf(p['apre_w']), 'apre_b': p['apre_b'],
        'proj_w': bf(p['proj_w']), 'proj_b': p['proj_b'],
        'ln1_g': p['ln1_g'], 'ln1_b': p['ln1_b'],
        'mlp1_w': bf(p['mlp1_w']), 'mlp1_b': p['mlp1_b'],
        'mlp2_w': bf(p['mlp2_w']), 'mlp2_b': p['mlp2_b'],
        'ln2_g': p['ln2_g'], 'ln2_b': p['ln2_b'],
        'efc_w': bf(p['efc_w']), 'efc_b': p['efc_b'],
        'pfc_w': bf(p['pfc_w']), 'pfc_b': p['pfc_b'],
    }


def entity_encoder(x_dict, entity_num, params):
    assert B % TB == 0
    nb = B // TB

    x = encode_inputs(x_dict)                                   # (B, EN, ID) f32
    x_flat = x.reshape(B * EN, ID).astype(jnp.bfloat16)         # bf16 host-side

    maskb = jnp.arange(EN)[None, :] < entity_num[:, None]       # (B, EN) bool
    maskf = maskb.astype(jnp.float32)
    # clamp denominator so entity_num == 0 yields 0 (not NaN) for the pooled path
    n_safe = jnp.maximum(entity_num, 1).astype(jnp.float32)
    pool_w = (maskf / n_safe[:, None])[:, :, None]              # (B, EN, 1)

    # block-diagonal + key-validity additive bias: (nb, M, M)
    # bias[q,k] = 0 iff q and k belong to the same batch AND key k is a valid
    # entity, else -1e9 (so no cross-batch leakage in the flattened softmax).
    same_block = (jnp.arange(M)[:, None] // EN) == (jnp.arange(M)[None, :] // EN)
    key_valid = maskb.reshape(nb, M)                            # (nb, M)
    valid = same_block[None, :, :] & key_valid[:, None, :]      # (nb, M, M)
    attn_bias = jnp.where(valid, 0.0, -NEG_BIG).astype(jnp.float32)

    kp = _prep_params(params)
    weights = [kp[k] for k in _WEIGHT_KEYS]

    def rep_spec(shape):
        zeros = (0,) * len(shape)
        # constant index_map -> weight block stays resident across grid steps
        return pl.BlockSpec(shape, lambda i, _z=zeros: _z)

    in_specs = [
        pl.BlockSpec((M, ID), lambda i: (i, 0)),                # entity features
        pl.BlockSpec((1, M, M), lambda i: (i, 0, 0)),           # attention bias
        pl.BlockSpec((TB, EN, 1), lambda i: (i, 0, 0)),         # pooling weights
    ] + [rep_spec(w.shape) for w in weights]

    grid_spec = pltpu.PrefetchScalarGridSpec(
        num_scalar_prefetch=0,
        grid=(nb,),
        in_specs=in_specs,
        out_specs=[pl.BlockSpec((M, OS), lambda i: (i, 0)),
                   pl.BlockSpec((TB, OS), lambda i: (i, 0))],
    )

    ent_flat, pooled = pl.pallas_call(
        entity_encoder_kernel,
        out_shape=(jax.ShapeDtypeStruct((B * EN, OS), jnp.float32),
                   jax.ShapeDtypeStruct((B, OS), jnp.float32)),
        grid_spec=grid_spec,
        compiler_params=pltpu.CompilerParams(
            dimension_semantics=("parallel",)),
    )(x_flat, attn_bias, pool_w, *weights)

    return ent_flat.reshape(B, EN, OS), pooled, maskb


# ------------------------- pure-JAX reference check -------------------------
# Mirrors the kernel's precision policy (bf16 MXU operands, f32 accumulation,
# f32 LN/softmax) so the comparison isolates structural correctness; remaining
# deltas are accumulation-order only (<< 1e-2).
def reference_forward(x_dict, entity_num, p):
    bf16, f32 = jnp.bfloat16, jnp.float32

    def mm(a, w):
        return jnp.matmul(a.astype(bf16), w.astype(bf16), preferred_element_type=f32)

    x = encode_inputs(x_dict)
    maskb = jnp.arange(EN)[None, :] < entity_num[:, None]
    m = maskb.astype(f32)
    h = jax.nn.relu(mm(x, p['emb_w']) + p['emb_b'])
    key_mask = maskb[:, None, None, :]
    for l in range(L):
        qkv = mm(h, p['apre_w'][l]) + p['apre_b'][l]
        q, k, v = jnp.split(qkv, 3, axis=-1)
        sh = lambda t: t.reshape(B, EN, HN, HD).transpose(0, 2, 1, 3)
        qh, kh, vh = sh(q), sh(k), sh(v)
        score = jnp.einsum('bhqd,bhkd->bhqk', qh.astype(bf16), kh.astype(bf16),
                           preferred_element_type=f32) / (HD ** 0.5)
        score = jnp.where(key_mask, score, -NEG_BIG)
        pr = jax.nn.softmax(score, axis=-1)
        att = jnp.einsum('bhqk,bhkd->bhqd', pr.astype(bf16), vh.astype(bf16),
                         preferred_element_type=f32)
        att = att.transpose(0, 2, 1, 3).reshape(B, EN, HN * HD)
        a = mm(att, p['proj_w'][l]) + p['proj_b'][l]
        h = _layer_norm(h + a, p['ln1_g'][l], p['ln1_b'][l])
        mlp = jax.nn.relu(mm(h, p['mlp1_w'][l]) + p['mlp1_b'][l])
        mlp = jax.nn.relu(mm(mlp, p['mlp2_w'][l]) + p['mlp2_b'][l])
        h = _layer_norm(h + mlp, p['ln2_g'][l], p['ln2_b'][l])
    ent = jax.nn.relu(mm(jax.nn.relu(h), p['efc_w']) + p['efc_b'])
    n_safe = jnp.maximum(entity_num, 1).astype(f32)
    pooled = (h * m[..., None]).sum(axis=1) / n_safe[:, None]
    emb = jax.nn.relu(mm(pooled, p['pfc_w']) + p['pfc_b'])
    return ent, emb, maskb


# ---------------------------------- main -------------------------------------
if __name__ == "__main__":
    key = jax.random.PRNGKey(0)
    k0, k1, k2, k3 = jax.random.split(key, 4)
    x_dict = {
        'unit_type': jax.random.randint(k0, (B, EN), 0, ONE_HOT_N),
        'build_progress': jax.random.randint(k1, (B, EN), 0, 2 ** BINARY_BITS),
        'health': jax.random.uniform(k2, (B, EN), dtype=jnp.float32),
    }
    entity_num = jnp.array([5, 7, 3, 8, 1, 6, 8, 2], dtype=jnp.int32)
    params = init_params(k3)

    ent_emb, emb_entity, mask = entity_encoder(x_dict, entity_num, params)
    jax.block_until_ready((ent_emb, emb_entity, mask))

    ref_ent, ref_emb, ref_mask = reference_forward(x_dict, entity_num, params)
    assert ent_emb.shape == (B, EN, OS) and emb_entity.shape == (B, OS)
    assert bool(jnp.all(mask == ref_mask))
    assert jnp.allclose(ent_emb, ref_ent, rtol=1e-2, atol=1e-2), \
        float(jnp.max(jnp.abs(ent_emb - ref_ent)))
    assert jnp.allclose(emb_entity, ref_emb, rtol=1e-2, atol=1e-2), \
        float(jnp.max(jnp.abs(emb_entity - ref_emb)))

    print("KERNEL_OK")
</pallas_src>

<mosaic_0001>
module attributes {stable_mosaic.version = 11 : i64} {
  func.func @entity_encoder_kernel(%arg0: i32, %arg1: memref<64x16xbf16, #tpu.memory_space<vmem>>, %arg2: memref<1x64x64xf32, #tpu.memory_space<vmem>>, %arg3: memref<8x8x1xf32, #tpu.memory_space<vmem>>, %arg4: memref<16x128xbf16, #tpu.memory_space<vmem>>, %arg5: memref<1x128xf32, #tpu.memory_space<vmem>>, %arg6: memref<2x128x192xbf16, #tpu.memory_space<vmem>>, %arg7: memref<2x1x192xf32, #tpu.memory_space<vmem>>, %arg8: memref<2x64x128xbf16, #tpu.memory_space<vmem>>, %arg9: memref<2x1x128xf32, #tpu.memory_space<vmem>>, %arg10: memref<2x1x128xf32, #tpu.memory_space<vmem>>, %arg11: memref<2x1x128xf32, #tpu.memory_space<vmem>>, %arg12: memref<2x128x128xbf16, #tpu.memory_space<vmem>>, %arg13: memref<2x1x128xf32, #tpu.memory_space<vmem>>, %arg14: memref<2x128x128xbf16, #tpu.memory_space<vmem>>, %arg15: memref<2x1x128xf32, #tpu.memory_space<vmem>>, %arg16: memref<2x1x128xf32, #tpu.memory_space<vmem>>, %arg17: memref<2x1x128xf32, #tpu.memory_space<vmem>>, %arg18: memref<128x128xbf16, #tpu.memory_space<vmem>>, %arg19: memref<1x128xf32, #tpu.memory_space<vmem>>, %arg20: memref<128x128xbf16, #tpu.memory_space<vmem>>, %arg21: memref<1x128xf32, #tpu.memory_space<vmem>>, %arg22: memref<64x128xf32, #tpu.memory_space<vmem>>, %arg23: memref<8x128xf32, #tpu.memory_space<vmem>>) attributes {dimension_semantics = [#tpu.dimension_semantics<parallel>], iteration_bounds = array<i64: 1>, scalar_prefetch = 0 : i64, scratch_operands = 0 : i64, tpu.core_type = #tpu.core_type<tc>, window_params = [{transform_indices = @transform_0, window_bounds = array<i64: 64, 16>}, {transform_indices = @transform_1, window_bounds = array<i64: 1, 64, 64>}, {transform_indices = @transform_2, window_bounds = array<i64: 8, 8, 1>}, {pipeline_mode = #tpu.pipeline_mode<synchronous>, transform_indices = @transform_3, window_bounds = array<i64: 16, 128>}, {pipeline_mode = #tpu.pipeline_mode<synchronous>, transform_indices = @transform_4, window_bounds = array<i64: 1, 128>}, {pipeline_mode = #tpu.pipeline_mode<synchronous>, transform_indices = @transform_5, window_bounds = array<i64: 2, 128, 192>}, {pipeline_mode = #tpu.pipeline_mode<synchronous>, transform_indices = @transform_6, window_bounds = array<i64: 2, 1, 192>}, {pipeline_mode = #tpu.pipeline_mode<synchronous>, transform_indices = @transform_7, window_bounds = array<i64: 2, 64, 128>}, {pipeline_mode = #tpu.pipeline_mode<synchronous>, transform_indices = @transform_8, window_bounds = array<i64: 2, 1, 128>}, {pipeline_mode = #tpu.pipeline_mode<synchronous>, transform_indices = @transform_9, window_bounds = array<i64: 2, 1, 128>}, {pipeline_mode = #tpu.pipeline_mode<synchronous>, transform_indices = @transform_10, window_bounds = array<i64: 2, 1, 128>}, {pipeline_mode = #tpu.pipeline_mode<synchronous>, transform_indices = @transform_11, window_bounds = array<i64: 2, 128, 128>}, {pipeline_mode = #tpu.pipeline_mode<synchronous>, transform_indices = @transform_12, window_bounds = array<i64: 2, 1, 128>}, {pipeline_mode = #tpu.pipeline_mode<synchronous>, transform_indices = @transform_13, window_bounds = array<i64: 2, 128, 128>}, {pipeline_mode = #tpu.pipeline_mode<synchronous>, transform_indices = @transform_14, window_bounds = array<i64: 2, 1, 128>}, {pipeline_mode = #tpu.pipeline_mode<synchronous>, transform_indices = @transform_15, window_bounds = array<i64: 2, 1, 128>}, {pipeline_mode = #tpu.pipeline_mode<synchronous>, transform_indices = @transform_16, window_bounds = array<i64: 2, 1, 128>}, {pipeline_mode = #tpu.pipeline_mode<synchronous>, transform_indices = @transform_17, window_bounds = array<i64: 128, 128>}, {pipeline_mode = #tpu.pipeline_mode<synchronous>, transform_indices = @transform_18, window_bounds = array<i64: 1, 128>}, {pipeline_mode = #tpu.pipeline_mode<synchronous>, transform_indices = @transform_19, window_bounds = array<i64: 128, 128>}, {pipeline_mode = #tpu.pipeline_mode<synchronous>, transform_indices = @transform_20, window_bounds = array<i64: 1, 128>}, {transform_indices = @transform_21, window_bounds = array<i64: 64, 128>}, {transform_indices = @transform_22, window_bounds = array<i64: 8, 128>}]} {
    %c0 = arith.constant 0 : index
    %c0_0 = arith.constant 0 : index
    %0 = vector.load %arg1[%c0, %c0_0] : memref<64x16xbf16, #tpu.memory_space<vmem>>, vector<64x16xbf16>
    %c0_1 = arith.constant 0 : index
    %c0_2 = arith.constant 0 : index
    %c0_3 = arith.constant 0 : index
    %1 = vector.load %arg2[%c0_1, %c0_2, %c0_3] : memref<1x64x64xf32, #tpu.memory_space<vmem>>, vector<1x64x64xf32>
    %2 = vector.shape_cast %1 : vector<1x64x64xf32> to vector<64x64xf32>
    %c0_4 = arith.constant 0 : index
    %c0_5 = arith.constant 0 : index
    %c0_6 = arith.constant 0 : index
    %3 = vector.load %arg3[%c0_4, %c0_5, %c0_6] : memref<8x8x1xf32, #tpu.memory_space<vmem>>, vector<8x8x1xf32>
    %c0_7 = arith.constant 0 : index
    %c0_8 = arith.constant 0 : index
    %4 = vector.load %arg4[%c0_7, %c0_8] : memref<16x128xbf16, #tpu.memory_space<vmem>>, vector<16x128xbf16>
    %cst = arith.constant dense<0.000000e+00> : vector<64x128xf32>
    %5 = tpu.matmul %0, %4, %cst {dimension_numbers = #tpu.dot_dimension_numbers<[1], [0], [0], [1], [0, 0, 1, 1], [], []>} : vector<64x16xbf16>, vector<16x128xbf16>, vector<64x128xf32> -> vector<64x128xf32>
    %c0_9 = arith.constant 0 : index
    %c0_10 = arith.constant 0 : index
    %6 = vector.load %arg5[%c0_9, %c0_10] : memref<1x128xf32, #tpu.memory_space<vmem>>, vector<1x128xf32>
    %7 = vector.broadcast %6 : vector<1x128xf32> to vector<64x128xf32>
    %8 = arith.addf %5, %7 : vector<64x128xf32>
    %cst_11 = arith.constant 0.000000e+00 : f32
    %9 = vector.broadcast %cst_11 : f32 to vector<64x128xf32>
    %10 = arith.maximumf %8, %9 : vector<64x128xf32>
    %11 = arith.truncf %10 : vector<64x128xf32> to vector<64x128xbf16>
    %c0_12 = arith.constant 0 : index
    %c0_13 = arith.constant 0 : index
    %c0_14 = arith.constant 0 : index
    %12 = vector.load %arg6[%c0_12, %c0_13, %c0_14] : memref<2x128x192xbf16, #tpu.memory_space<vmem>>, vector<1x128x192xbf16>
    %13 = vector.shape_cast %12 : vector<1x128x192xbf16> to vector<128x192xbf16>
    %cst_15 = arith.constant dense<0.000000e+00> : vector<64x192xf32>
    %14 = tpu.matmul %11, %13, %cst_15 {dimension_numbers = #tpu.dot_dimension_numbers<[1], [0], [0], [1], [0, 0, 1, 1], [], []>} : vector<64x128xbf16>, vector<128x192xbf16>, vector<64x192xf32> -> vector<64x192xf32>
    %c0_16 = arith.constant 0 : index
    %c0_17 = arith.constant 0 : index
    %c0_18 = arith.constant 0 : index
    %15 = vector.load %arg7[%c0_16, %c0_17, %c0_18] : memref<2x1x192xf32, #tpu.memory_space<vmem>>, vector<1x1x192xf32>
    %16 = vector.shape_cast %15 : vector<1x1x192xf32> to vector<1x192xf32>
    %17 = vector.broadcast %16 : vector<1x192xf32> to vector<64x192xf32>
    %18 = arith.addf %14, %17 : vector<64x192xf32>
    %19 = vector.extract_strided_slice %18 {offsets = [0, 0], sizes = [64, 32], strides = [1, 1]} : vector<64x192xf32> to vector<64x32xf32>
    %20 = arith.truncf %19 : vector<64x32xf32> to vector<64x32xbf16>
    %21 = vector.extract_strided_slice %18 {offsets = [0, 64], sizes = [64, 32], strides = [1, 1]} : vector<64x192xf32> to vector<64x32xf32>
    %22 = arith.truncf %21 : vector<64x32xf32> to vector<64x32xbf16>
    %23 = vector.extract_strided_slice %18 {offsets = [0, 128], sizes = [64, 32], strides = [1, 1]} : vector<64x192xf32> to vector<64x32xf32>
    %24 = arith.truncf %23 : vector<64x32xf32> to vector<64x32xbf16>
    %cst_19 = arith.constant dense<0.000000e+00> : vector<64x64xf32>
    %25 = tpu.matmul %20, %22, %cst_19 {dimension_numbers = #tpu.dot_dimension_numbers<[1], [1], [0], [0], [0, 0, 1, 0], [], []>} : vector<64x32xbf16>, vector<64x32xbf16>, vector<64x64xf32> -> vector<64x64xf32>
    %cst_20 = arith.constant 0.176776692 : f32
    %26 = vector.broadcast %cst_20 : f32 to vector<64x64xf32>
    %27 = arith.mulf %25, %26 : vector<64x64xf32>
    %28 = arith.addf %27, %2 : vector<64x64xf32>
    %cst_21 = arith.constant dense<0xFF800000> : vector<64xf32>
    %29 = vector.multi_reduction <maximumf>, %28, %cst_21 [1] : vector<64x64xf32> to vector<64xf32>
    %30 = vector.shape_cast %29 : vector<64xf32> to vector<64x1xf32>
    %31 = vector.broadcast %30 : vector<64x1xf32> to vector<64x64xf32>
    %32 = arith.subf %28, %31 : vector<64x64xf32>
    %33 = math.exp %32 : vector<64x64xf32>
    %cst_22 = arith.constant dense<0.000000e+00> : vector<64xf32>
    %34 = vector.multi_reduction <add>, %33, %cst_22 [1] : vector<64x64xf32> to vector<64xf32>
    %35 = vector.shape_cast %34 : vector<64xf32> to vector<64x1xf32>
    %36 = vector.broadcast %35 : vector<64x1xf32> to vector<64x64xf32>
    %37 = arith.divf %33, %36 : vector<64x64xf32>
    %38 = arith.truncf %37 : vector<64x64xf32> to vector<64x64xbf16>
    %cst_23 = arith.constant dense<0.000000e+00> : vector<64x32xf32>
    %39 = tpu.matmul %38, %24, %cst_23 {dimension_numbers = #tpu.dot_dimension_numbers<[1], [0], [0], [1], [0, 0, 1, 1], [], []>} : vector<64x64xbf16>, vector<64x32xbf16>, vector<64x32xf32> -> vector<64x32xf32>
    %40 = vector.extract_strided_slice %18 {offsets = [0, 32], sizes = [64, 32], strides = [1, 1]} : vector<64x192xf32> to vector<64x32xf32>
    %41 = arith.truncf %40 : vector<64x32xf32> to vector<64x32xbf16>
    %42 = vector.extract_strided_slice %18 {offsets = [0, 96], sizes = [64, 32], strides = [1, 1]} : vector<64x192xf32> to vector<64x32xf32>
    %43 = arith.truncf %42 : vector<64x32xf32> to vector<64x32xbf16>
    %44 = vector.extract_strided_slice %18 {offsets = [0, 160], sizes = [64, 32], strides = [1, 1]} : vector<64x192xf32> to vector<64x32xf32>
    %45 = arith.truncf %44 : vector<64x32xf32> to vector<64x32xbf16>
    %cst_24 = arith.constant dense<0.000000e+00> : vector<64x64xf32>
    %46 = tpu.matmul %41, %43, %cst_24 {dimension_numbers = #tpu.dot_dimension_numbers<[1], [1], [0], [0], [0, 0, 1, 0], [], []>} : vector<64x32xbf16>, vector<64x32xbf16>, vector<64x64xf32> -> vector<64x64xf32>
    %cst_25 = arith.constant 0.176776692 : f32
    %47 = vector.broadcast %cst_25 : f32 to vector<64x64xf32>
    %48 = arith.mulf %46, %47 : vector<64x64xf32>
    %49 = arith.addf %48, %2 : vector<64x64xf32>
    %cst_26 = arith.constant dense<0xFF800000> : vector<64xf32>
    %50 = vector.multi_reduction <maximumf>, %49, %cst_26 [1] : vector<64x64xf32> to vector<64xf32>
    %51 = vector.shape_cast %50 : vector<64xf32> to vector<64x1xf32>
    %52 = vector.broadcast %51 : vector<64x1xf32> to vector<64x64xf32>
    %53 = arith.subf %49, %52 : vector<64x64xf32>
    %54 = math.exp %53 : vector<64x64xf32>
    %cst_27 = arith.constant dense<0.000000e+00> : vector<64xf32>
    %55 = vector.multi_reduction <add>, %54, %cst_27 [1] : vector<64x64xf32> to vector<64xf32>
    %56 = vector.shape_cast %55 : vector<64xf32> to vector<64x1xf32>
    %57 = vector.broadcast %56 : vector<64x1xf32> to vector<64x64xf32>
    %58 = arith.divf %54, %57 : vector<64x64xf32>
    %59 = arith.truncf %58 : vector<64x64xf32> to vector<64x64xbf16>
    %cst_28 = arith.constant dense<0.000000e+00> : vector<64x32xf32>
    %60 = tpu.matmul %59, %45, %cst_28 {dimension_numbers = #tpu.dot_dimension_numbers<[1], [0], [0], [1], [0, 0, 1, 1], [], []>} : vector<64x64xbf16>, vector<64x32xbf16>, vector<64x32xf32> -> vector<64x32xf32>
    %61 = tpu.concatenate %39, %60 in 1 : vector<64x32xf32>, vector<64x32xf32> -> vector<64x64xf32>
    %62 = arith.truncf %61 : vector<64x64xf32> to vector<64x64xbf16>
    %c0_29 = arith.constant 0 : index
    %c0_30 = arith.constant 0 : index
    %c0_31 = arith.constant 0 : index
    %63 = vector.load %arg8[%c0_29, %c0_30, %c0_31] : memref<2x64x128xbf16, #tpu.memory_space<vmem>>, vector<1x64x128xbf16>
    %64 = vector.shape_cast %63 : vector<1x64x128xbf16> to vector<64x128xbf16>
    %cst_32 = arith.constant dense<0.000000e+00> : vector<64x128xf32>
    %65 = tpu.matmul %62, %64, %cst_32 {dimension_numbers = #tpu.dot_dimension_numbers<[1], [0], [0], [1], [0, 0, 1, 1], [], []>} : vector<64x64xbf16>, vector<64x128xbf16>, vector<64x128xf32> -> vector<64x128xf32>
    %c0_33 = arith.constant 0 : index
    %c0_34 = arith.constant 0 : index
    %c0_35 = arith.constant 0 : index
    %66 = vector.load %arg9[%c0_33, %c0_34, %c0_35] : memref<2x1x128xf32, #tpu.memory_space<vmem>>, vector<1x1x128xf32>
    %67 = vector.shape_cast %66 : vector<1x1x128xf32> to vector<1x128xf32>
    %68 = vector.broadcast %67 : vector<1x128xf32> to vector<64x128xf32>
    %69 = arith.addf %65, %68 : vector<64x128xf32>
    %70 = arith.addf %10, %69 : vector<64x128xf32>
    %c0_36 = arith.constant 0 : index
    %c0_37 = arith.constant 0 : index
    %c0_38 = arith.constant 0 : index
    %71 = vector.load %arg10[%c0_36, %c0_37, %c0_38] : memref<2x1x128xf32, #tpu.memory_space<vmem>>, vector<1x1x128xf32>
    %72 = vector.shape_cast %71 : vector<1x1x128xf32> to vector<1x128xf32>
    %c0_39 = arith.constant 0 : index
    %c0_40 = arith.constant 0 : index
    %c0_41 = arith.constant 0 : index
    %73 = vector.load %arg11[%c0_39, %c0_40, %c0_41] : memref<2x1x128xf32, #tpu.memory_space<vmem>>, vector<1x1x128xf32>
    %74 = vector.shape_cast %73 : vector<1x1x128xf32> to vector<1x128xf32>
    %cst_42 = arith.constant dense<0.000000e+00> : vector<64xf32>
    %75 = vector.multi_reduction <add>, %70, %cst_42 [1] : vector<64x128xf32> to vector<64xf32>
    %76 = vector.shape_cast %75 : vector<64xf32> to vector<64x1xf32>
    %cst_43 = arith.constant 1.280000e+02 : f32
    %77 = vector.broadcast %cst_43 : f32 to vector<64x1xf32>
    %78 = arith.divf %76, %77 : vector<64x1xf32>
    %79 = vector.broadcast %78 : vector<64x1xf32> to vector<64x128xf32>
    %80 = arith.subf %70, %79 : vector<64x128xf32>
    %81 = arith.mulf %80, %80 : vector<64x128xf32>
    %cst_44 = arith.constant dense<0.000000e+00> : vector<64xf32>
    %82 = vector.multi_reduction <add>, %81, %cst_44 [1] : vector<64x128xf32> to vector<64xf32>
    %83 = vector.shape_cast %82 : vector<64xf32> to vector<64x1xf32>
    %cst_45 = arith.constant 1.280000e+02 : f32
    %84 = vector.broadcast %cst_45 : f32 to vector<64x1xf32>
    %85 = arith.divf %83, %84 : vector<64x1xf32>
    %86 = vector.broadcast %78 : vector<64x1xf32> to vector<64x128xf32>
    %87 = arith.subf %70, %86 : vector<64x128xf32>
    %cst_46 = arith.constant 9.99999974E-6 : f32
    %88 = vector.broadcast %cst_46 : f32 to vector<64x1xf32>
    %89 = arith.addf %85, %88 : vector<64x1xf32>
    %90 = math.rsqrt %89 : vector<64x1xf32>
    %91 = vector.broadcast %90 : vector<64x1xf32> to vector<64x128xf32>
    %92 = arith.mulf %87, %91 : vector<64x128xf32>
    %93 = vector.broadcast %72 : vector<1x128xf32> to vector<64x128xf32>
    %94 = arith.mulf %92, %93 : vector<64x128xf32>
    %95 = vector.broadcast %74 : vector<1x128xf32> to vector<64x128xf32>
    %96 = arith.addf %94, %95 : vector<64x128xf32>
    %97 = arith.truncf %96 : vector<64x128xf32> to vector<64x128xbf16>
    %c0_47 = arith.constant 0 : index
    %c0_48 = arith.constant 0 : index
    %c0_49 = arith.constant 0 : index
    %98 = vector.load %arg12[%c0_47, %c0_48, %c0_49] : memref<2x128x128xbf16, #tpu.memory_space<vmem>>, vector<1x128x128xbf16>
    %99 = vector.shape_cast %98 : vector<1x128x128xbf16> to vector<128x128xbf16>
    %cst_50 = arith.constant dense<0.000000e+00> : vector<64x128xf32>
    %100 = tpu.matmul %97, %99, %cst_50 {dimension_numbers = #tpu.dot_dimension_numbers<[1], [0], [0], [1], [0, 0, 1, 1], [], []>} : vector<64x128xbf16>, vector<128x128xbf16>, vector<64x128xf32> -> vector<64x128xf32>
    %c0_51 = arith.constant 0 : index
    %c0_52 = arith.constant 0 : index
    %c0_53 = arith.constant 0 : index
    %101 = vector.load %arg13[%c0_51, %c0_52, %c0_53] : memref<2x1x128xf32, #tpu.memory_space<vmem>>, vector<1x1x128xf32>
    %102 = vector.shape_cast %101 : vector<1x1x128xf32> to vector<1x128xf32>
    %103 = vector.broadcast %102 : vector<1x128xf32> to vector<64x128xf32>
    %104 = arith.addf %100, %103 : vector<64x128xf32>
    %cst_54 = arith.constant 0.000000e+00 : f32
    %105 = vector.broadcast %cst_54 : f32 to vector<64x128xf32>
    %106 = arith.maximumf %104, %105 : vector<64x128xf32>
    %107 = arith.truncf %106 : vector<64x128xf32> to vector<64x128xbf16>
    %c0_55 = arith.constant 0 : index
    %c0_56 = arith.constant 0 : index
    %c0_57 = arith.constant 0 : index
    %108 = vector.load %arg14[%c0_55, %c0_56, %c0_57] : memref<2x128x128xbf16, #tpu.memory_space<vmem>>, vector<1x128x128xbf16>
    %109 = vector.shape_cast %108 : vector<1x128x128xbf16> to vector<128x128xbf16>
    %cst_58 = arith.constant dense<0.000000e+00> : vector<64x128xf32>
    %110 = tpu.matmul %107, %109, %cst_58 {dimension_numbers = #tpu.dot_dimension_numbers<[1], [0], [0], [1], [0, 0, 1, 1], [], []>} : vector<64x128xbf16>, vector<128x128xbf16>, vector<64x128xf32> -> vector<64x128xf32>
    %c0_59 = arith.constant 0 : index
    %c0_60 = arith.constant 0 : index
    %c0_61 = arith.constant 0 : index
    %111 = vector.load %arg15[%c0_59, %c0_60, %c0_61] : memref<2x1x128xf32, #tpu.memory_space<vmem>>, vector<1x1x128xf32>
    %112 = vector.shape_cast %111 : vector<1x1x128xf32> to vector<1x128xf32>
    %113 = vector.broadcast %112 : vector<1x128xf32> to vector<64x128xf32>
    %114 = arith.addf %110, %113 : vector<64x128xf32>
    %cst_62 = arith.constant 0.000000e+00 : f32
    %115 = vector.broadcast %cst_62 : f32 to vector<64x128xf32>
    %116 = arith.maximumf %114, %115 : vector<64x128xf32>
    %117 = arith.addf %96, %116 : vector<64x128xf32>
    %c0_63 = arith.constant 0 : index
    %c0_64 = arith.constant 0 : index
    %c0_65 = arith.constant 0 : index
    %118 = vector.load %arg16[%c0_63, %c0_64, %c0_65] : memref<2x1x128xf32, #tpu.memory_space<vmem>>, vector<1x1x128xf32>
    %119 = vector.shape_cast %118 : vector<1x1x128xf32> to vector<1x128xf32>
    %c0_66 = arith.constant 0 : index
    %c0_67 = arith.constant 0 : index
    %c0_68 = arith.constant 0 : index
    %120 = vector.load %arg17[%c0_66, %c0_67, %c0_68] : memref<2x1x128xf32, #tpu.memory_space<vmem>>, vector<1x1x128xf32>
    %121 = vector.shape_cast %120 : vector<1x1x128xf32> to vector<1x128xf32>
    %cst_69 = arith.constant dense<0.000000e+00> : vector<64xf32>
    %122 = vector.multi_reduction <add>, %117, %cst_69 [1] : vector<64x128xf32> to vector<64xf32>
    %123 = vector.shape_cast %122 : vector<64xf32> to vector<64x1xf32>
    %cst_70 = arith.constant 1.280000e+02 : f32
    %124 = vector.broadcast %cst_70 : f32 to vector<64x1xf32>
    %125 = arith.divf %123, %124 : vector<64x1xf32>
    %126 = vector.broadcast %125 : vector<64x1xf32> to vector<64x128xf32>
    %127 = arith.subf %117, %126 : vector<64x128xf32>
    %128 = arith.mulf %127, %127 : vector<64x128xf32>
    %cst_71 = arith.constant dense<0.000000e+00> : vector<64xf32>
    %129 = vector.multi_reduction <add>, %128, %cst_71 [1] : vector<64x128xf32> to vector<64xf32>
    %130 = vector.shape_cast %129 : vector<64xf32> to vector<64x1xf32>
    %cst_72 = arith.constant 1.280000e+02 : f32
    %131 = vector.broadcast %cst_72 : f32 to vector<64x1xf32>
    %132 = arith.divf %130, %131 : vector<64x1xf32>
    %133 = vector.broadcast %125 : vector<64x1xf32> to vector<64x128xf32>
    %134 = arith.subf %117, %133 : vector<64x128xf32>
    %cst_73 = arith.constant 9.99999974E-6 : f32
    %135 = vector.broadcast %cst_73 : f32 to vector<64x1xf32>
    %136 = arith.addf %132, %135 : vector<64x1xf32>
    %137 = math.rsqrt %136 : vector<64x1xf32>
    %138 = vector.broadcast %137 : vector<64x1xf32> to vector<64x128xf32>
    %139 = arith.mulf %134, %138 : vector<64x128xf32>
    %140 = vector.broadcast %119 : vector<1x128xf32> to vector<64x128xf32>
    %141 = arith.mulf %139, %140 : vector<64x128xf32>
    %142 = vector.broadcast %121 : vector<1x128xf32> to vector<64x128xf32>
    %143 = arith.addf %141, %142 : vector<64x128xf32>
    %144 = arith.truncf %143 : vector<64x128xf32> to vector<64x128xbf16>
    %c1 = arith.constant 1 : index
    %c0_74 = arith.constant 0 : index
    %c0_75 = arith.constant 0 : index
    %145 = vector.load %arg6[%c1, %c0_74, %c0_75] : memref<2x128x192xbf16, #tpu.memory_space<vmem>>, vector<1x128x192xbf16>
    %146 = vector.shape_cast %145 : vector<1x128x192xbf16> to vector<128x192xbf16>
    %cst_76 = arith.constant dense<0.000000e+00> : vector<64x192xf32>
    %147 = tpu.matmul %144, %146, %cst_76 {dimension_numbers = #tpu.dot_dimension_numbers<[1], [0], [0], [1], [0, 0, 1, 1], [], []>} : vector<64x128xbf16>, vector<128x192xbf16>, vector<64x192xf32> -> vector<64x192xf32>
    %c1_77 = arith.constant 1 : index
    %c0_78 = arith.constant 0 : index
    %c0_79 = arith.constant 0 : index
    %148 = vector.load %arg7[%c1_77, %c0_78, %c0_79] : memref<2x1x192xf32, #tpu.memory_space<vmem>>, vector<1x1x192xf32>
    %149 = vector.shape_cast %148 : vector<1x1x192xf32> to vector<1x192xf32>
    %150 = vector.broadcast %149 : vector<1x192xf32> to vector<64x192xf32>
    %151 = arith.addf %147, %150 : vector<64x192xf32>
    %152 = vector.extract_strided_slice %151 {offsets = [0, 0], sizes = [64, 32], strides = [1, 1]} : vector<64x192xf32> to vector<64x32xf32>
    %153 = arith.truncf %152 : vector<64x32xf32> to vector<64x32xbf16>
    %154 = vector.extract_strided_slice %151 {offsets = [0, 64], sizes = [64, 32], strides = [1, 1]} : vector<64x192xf32> to vector<64x32xf32>
    %155 = arith.truncf %154 : vector<64x32xf32> to vector<64x32xbf16>
    %156 = vector.extract_strided_slice %151 {offsets = [0, 128], sizes = [64, 32], strides = [1, 1]} : vector<64x192xf32> to vector<64x32xf32>
    %157 = arith.truncf %156 : vector<64x32xf32> to vector<64x32xbf16>
    %cst_80 = arith.constant dense<0.000000e+00> : vector<64x64xf32>
    %158 = tpu.matmul %153, %155, %cst_80 {dimension_numbers = #tpu.dot_dimension_numbers<[1], [1], [0], [0], [0, 0, 1, 0], [], []>} : vector<64x32xbf16>, vector<64x32xbf16>, vector<64x64xf32> -> vector<64x64xf32>
    %cst_81 = arith.constant 0.176776692 : f32
    %159 = vector.broadcast %cst_81 : f32 to vector<64x64xf32>
    %160 = arith.mulf %158, %159 : vector<64x64xf32>
    %161 = arith.addf %160, %2 : vector<64x64xf32>
    %cst_82 = arith.constant dense<0xFF800000> : vector<64xf32>
    %162 = vector.multi_reduction <maximumf>, %161, %cst_82 [1] : vector<64x64xf32> to vector<64xf32>
    %163 = vector.shape_cast %162 : vector<64xf32> to vector<64x1xf32>
    %164 = vector.broadcast %163 : vector<64x1xf32> to vector<64x64xf32>
    %165 = arith.subf %161, %164 : vector<64x64xf32>
    %166 = math.exp %165 : vector<64x64xf32>
    %cst_83 = arith.constant dense<0.000000e+00> : vector<64xf32>
    %167 = vector.multi_reduction <add>, %166, %cst_83 [1] : vector<64x64xf32> to vector<64xf32>
    %168 = vector.shape_cast %167 : vector<64xf32> to vector<64x1xf32>
    %169 = vector.broadcast %168 : vector<64x1xf32> to vector<64x64xf32>
    %170 = arith.divf %166, %169 : vector<64x64xf32>
    %171 = arith.truncf %170 : vector<64x64xf32> to vector<64x64xbf16>
    %cst_84 = arith.constant dense<0.000000e+00> : vector<64x32xf32>
    %172 = tpu.matmul %171, %157, %cst_84 {dimension_numbers = #tpu.dot_dimension_numbers<[1], [0], [0], [1], [0, 0, 1, 1], [], []>} : vector<64x64xbf16>, vector<64x32xbf16>, vector<64x32xf32> -> vector<64x32xf32>
    %173 = vector.extract_strided_slice %151 {offsets = [0, 32], sizes = [64, 32], strides = [1, 1]} : vector<64x192xf32> to vector<64x32xf32>
    %174 = arith.truncf %173 : vector<64x32xf32> to vector<64x32xbf16>
    %175 = vector.extract_strided_slice %151 {offsets = [0, 96], sizes = [64, 32], strides = [1, 1]} : vector<64x192xf32> to vector<64x32xf32>
    %176 = arith.truncf %175 : vector<64x32xf32> to vector<64x32xbf16>
    %177 = vector.extract_strided_slice %151 {offsets = [0, 160], sizes = [64, 32], strides = [1, 1]} : vector<64x192xf32> to vector<64x32xf32>
    %178 = arith.truncf %177 : vector<64x32xf32> to vector<64x32xbf16>
    %cst_85 = arith.constant dense<0.000000e+00> : vector<64x64xf32>
    %179 = tpu.matmul %174, %176, %cst_85 {dimension_numbers = #tpu.dot_dimension_numbers<[1], [1], [0], [0], [0, 0, 1, 0], [], []>} : vector<64x32xbf16>, vector<64x32xbf16>, vector<64x64xf32> -> vector<64x64xf32>
    %cst_86 = arith.constant 0.176776692 : f32
    %180 = vector.broadcast %cst_86 : f32 to vector<64x64xf32>
    %181 = arith.mulf %179, %180 : vector<64x64xf32>
    %182 = arith.addf %181, %2 : vector<64x64xf32>
    %cst_87 = arith.constant dense<0xFF800000> : vector<64xf32>
    %183 = vector.multi_reduction <maximumf>, %182, %cst_87 [1] : vector<64x64xf32> to vector<64xf32>
    %184 = vector.shape_cast %183 : vector<64xf32> to vector<64x1xf32>
    %185 = vector.broadcast %184 : vector<64x1xf32> to vector<64x64xf32>
    %186 = arith.subf %182, %185 : vector<64x64xf32>
    %187 = math.exp %186 : vector<64x64xf32>
    %cst_88 = arith.constant dense<0.000000e+00> : vector<64xf32>
    %188 = vector.multi_reduction <add>, %187, %cst_88 [1] : vector<64x64xf32> to vector<64xf32>
    %189 = vector.shape_cast %188 : vector<64xf32> to vector<64x1xf32>
    %190 = vector.broadcast %189 : vector<64x1xf32> to vector<64x64xf32>
    %191 = arith.divf %187, %190 : vector<64x64xf32>
    %192 = arith.truncf %191 : vector<64x64xf32> to vector<64x64xbf16>
    %cst_89 = arith.constant dense<0.000000e+00> : vector<64x32xf32>
    %193 = tpu.matmul %192, %178, %cst_89 {dimension_numbers = #tpu.dot_dimension_numbers<[1], [0], [0], [1], [0, 0, 1, 1], [], []>} : vector<64x64xbf16>, vector<64x32xbf16>, vector<64x32xf32> -> vector<64x32xf32>
    %194 = tpu.concatenate %172, %193 in 1 : vector<64x32xf32>, vector<64x32xf32> -> vector<64x64xf32>
    %195 = arith.truncf %194 : vector<64x64xf32> to vector<64x64xbf16>
    %c1_90 = arith.constant 1 : index
    %c0_91 = arith.constant 0 : index
    %c0_92 = arith.constant 0 : index
    %196 = vector.load %arg8[%c1_90, %c0_91, %c0_92] : memref<2x64x128xbf16, #tpu.memory_space<vmem>>, vector<1x64x128xbf16>
    %197 = vector.shape_cast %196 : vector<1x64x128xbf16> to vector<64x128xbf16>
    %cst_93 = arith.constant dense<0.000000e+00> : vector<64x128xf32>
    %198 = tpu.matmul %195, %197, %cst_93 {dimension_numbers = #tpu.dot_dimension_numbers<[1], [0], [0], [1], [0, 0, 1, 1], [], []>} : vector<64x64xbf16>, vector<64x128xbf16>, vector<64x128xf32> -> vector<64x128xf32>
    %c1_94 = arith.constant 1 : index
    %c0_95 = arith.constant 0 : index
    %c0_96 = arith.constant 0 : index
    %199 = vector.load %arg9[%c1_94, %c0_95, %c0_96] : memref<2x1x128xf32, #tpu.memory_space<vmem>>, vector<1x1x128xf32>
    %200 = vector.shape_cast %199 : vector<1x1x128xf32> to vector<1x128xf32>
    %201 = vector.broadcast %200 : vector<1x128xf32> to vector<64x128xf32>
    %202 = arith.addf %198, %201 : vector<64x128xf32>
    %203 = arith.addf %143, %202 : vector<64x128xf32>
    %c1_97 = arith.constant 1 : index
    %c0_98 = arith.constant 0 : index
    %c0_99 = arith.constant 0 : index
    %204 = vector.load %arg10[%c1_97, %c0_98, %c0_99] : memref<2x1x128xf32, #tpu.memory_space<vmem>>, vector<1x1x128xf32>
    %205 = vector.shape_cast %204 : vector<1x1x128xf32> to vector<1x128xf32>
    %c1_100 = arith.constant 1 : index
    %c0_101 = arith.constant 0 : index
    %c0_102 = arith.constant 0 : index
    %206 = vector.load %arg11[%c1_100, %c0_101, %c0_102] : memref<2x1x128xf32, #tpu.memory_space<vmem>>, vector<1x1x128xf32>
    %207 = vector.shape_cast %206 : vector<1x1x128xf32> to vector<1x128xf32>
    %cst_103 = arith.constant dense<0.000000e+00> : vector<64xf32>
    %208 = vector.multi_reduction <add>, %203, %cst_103 [1] : vector<64x128xf32> to vector<64xf32>
    %209 = vector.shape_cast %208 : vector<64xf32> to vector<64x1xf32>
    %cst_104 = arith.constant 1.280000e+02 : f32
    %210 = vector.broadcast %cst_104 : f32 to vector<64x1xf32>
    %211 = arith.divf %209, %210 : vector<64x1xf32>
    %212 = vector.broadcast %211 : vector<64x1xf32> to vector<64x128xf32>
    %213 = arith.subf %203, %212 : vector<64x128xf32>
    %214 = arith.mulf %213, %213 : vector<64x128xf32>
    %cst_105 = arith.constant dense<0.000000e+00> : vector<64xf32>
    %215 = vector.multi_reduction <add>, %214, %cst_105 [1] : vector<64x128xf32> to vector<64xf32>
    %216 = vector.shape_cast %215 : vector<64xf32> to vector<64x1xf32>
    %cst_106 = arith.constant 1.280000e+02 : f32
    %217 = vector.broadcast %cst_106 : f32 to vector<64x1xf32>
    %218 = arith.divf %216, %217 : vector<64x1xf32>
    %219 = vector.broadcast %211 : vector<64x1xf32> to vector<64x128xf32>
    %220 = arith.subf %203, %219 : vector<64x128xf32>
    %cst_107 = arith.constant 9.99999974E-6 : f32
    %221 = vector.broadcast %cst_107 : f32 to vector<64x1xf32>
    %222 = arith.addf %218, %221 : vector<64x1xf32>
    %223 = math.rsqrt %222 : vector<64x1xf32>
    %224 = vector.broadcast %223 : vector<64x1xf32> to vector<64x128xf32>
    %225 = arith.mulf %220, %224 : vector<64x128xf32>
    %226 = vector.broadcast %205 : vector<1x128xf32> to vector<64x128xf32>
    %227 = arith.mulf %225, %226 : vector<64x128xf32>
    %228 = vector.broadcast %207 : vector<1x128xf32> to vector<64x128xf32>
    %229 = arith.addf %227, %228 : vector<64x128xf32>
    %230 = arith.truncf %229 : vector<64x128xf32> to vector<64x128xbf16>
    %c1_108 = arith.constant 1 : index
    %c0_109 = arith.constant 0 : index
    %c0_110 = arith.constant 0 : index
    %231 = vector.load %arg12[%c1_108, %c0_109, %c0_110] : memref<2x128x128xbf16, #tpu.memory_space<vmem>>, vector<1x128x128xbf16>
    %232 = vector.shape_cast %231 : vector<1x128x128xbf16> to vector<128x128xbf16>
    %cst_111 = arith.constant dense<0.000000e+00> : vector<64x128xf32>
    %233 = tpu.matmul %230, %232, %cst_111 {dimension_numbers = #tpu.dot_dimension_numbers<[1], [0], [0], [1], [0, 0, 1, 1], [], []>} : vector<64x128xbf16>, vector<128x128xbf16>, vector<64x128xf32> -> vector<64x128xf32>
    %c1_112 = arith.constant 1 : index
    %c0_113 = arith.constant 0 : index
    %c0_114 = arith.constant 0 : index
    %234 = vector.load %arg13[%c1_112, %c0_113, %c0_114] : memref<2x1x128xf32, #tpu.memory_space<vmem>>, vector<1x1x128xf32>
    %235 = vector.shape_cast %234 : vector<1x1x128xf32> to vector<1x128xf32>
    %236 = vector.broadcast %235 : vector<1x128xf32> to vector<64x128xf32>
    %237 = arith.addf %233, %236 : vector<64x128xf32>
    %cst_115 = arith.constant 0.000000e+00 : f32
    %238 = vector.broadcast %cst_115 : f32 to vector<64x128xf32>
    %239 = arith.maximumf %237, %238 : vector<64x128xf32>
    %240 = arith.truncf %239 : vector<64x128xf32> to vector<64x128xbf16>
    %c1_116 = arith.constant 1 : index
    %c0_117 = arith.constant 0 : index
    %c0_118 = arith.constant 0 : index
    %241 = vector.load %arg14[%c1_116, %c0_117, %c0_118] : memref<2x128x128xbf16, #tpu.memory_space<vmem>>, vector<1x128x128xbf16>
    %242 = vector.shape_cast %241 : vector<1x128x128xbf16> to vector<128x128xbf16>
    %cst_119 = arith.constant dense<0.000000e+00> : vector<64x128xf32>
    %243 = tpu.matmul %240, %242, %cst_119 {dimension_numbers = #tpu.dot_dimension_numbers<[1], [0], [0], [1], [0, 0, 1, 1], [], []>} : vector<64x128xbf16>, vector<128x128xbf16>, vector<64x128xf32> -> vector<64x128xf32>
    %c1_120 = arith.constant 1 : index
    %c0_121 = arith.constant 0 : index
    %c0_122 = arith.constant 0 : index
    %244 = vector.load %arg15[%c1_120, %c0_121, %c0_122] : memref<2x1x128xf32, #tpu.memory_space<vmem>>, vector<1x1x128xf32>
    %245 = vector.shape_cast %244 : vector<1x1x128xf32> to vector<1x128xf32>
    %246 = vector.broadcast %245 : vector<1x128xf32> to vector<64x128xf32>
    %247 = arith.addf %243, %246 : vector<64x128xf32>
    %cst_123 = arith.constant 0.000000e+00 : f32
    %248 = vector.broadcast %cst_123 : f32 to vector<64x128xf32>
    %249 = arith.maximumf %247, %248 : vector<64x128xf32>
    %250 = arith.addf %229, %249 : vector<64x128xf32>
    %c1_124 = arith.constant 1 : index
    %c0_125 = arith.constant 0 : index
    %c0_126 = arith.constant 0 : index
    %251 = vector.load %arg16[%c1_124, %c0_125, %c0_126] : memref<2x1x128xf32, #tpu.memory_space<vmem>>, vector<1x1x128xf32>
    %252 = vector.shape_cast %251 : vector<1x1x128xf32> to vector<1x128xf32>
    %c1_127 = arith.constant 1 : index
    %c0_128 = arith.constant 0 : index
    %c0_129 = arith.constant 0 : index
    %253 = vector.load %arg17[%c1_127, %c0_128, %c0_129] : memref<2x1x128xf32, #tpu.memory_space<vmem>>, vector<1x1x128xf32>
    %254 = vector.shape_cast %253 : vector<1x1x128xf32> to vector<1x128xf32>
    %cst_130 = arith.constant dense<0.000000e+00> : vector<64xf32>
    %255 = vector.multi_reduction <add>, %250, %cst_130 [1] : vector<64x128xf32> to vector<64xf32>
    %256 = vector.shape_cast %255 : vector<64xf32> to vector<64x1xf32>
    %cst_131 = arith.constant 1.280000e+02 : f32
    %257 = vector.broadcast %cst_131 : f32 to vector<64x1xf32>
    %258 = arith.divf %256, %257 : vector<64x1xf32>
    %259 = vector.broadcast %258 : vector<64x1xf32> to vector<64x128xf32>
    %260 = arith.subf %250, %259 : vector<64x128xf32>
    %261 = arith.mulf %260, %260 : vector<64x128xf32>
    %cst_132 = arith.constant dense<0.000000e+00> : vector<64xf32>
    %262 = vector.multi_reduction <add>, %261, %cst_132 [1] : vector<64x128xf32> to vector<64xf32>
    %263 = vector.shape_cast %262 : vector<64xf32> to vector<64x1xf32>
    %cst_133 = arith.constant 1.280000e+02 : f32
    %264 = vector.broadcast %cst_133 : f32 to vector<64x1xf32>
    %265 = arith.divf %263, %264 : vector<64x1xf32>
    %266 = vector.broadcast %258 : vector<64x1xf32> to vector<64x128xf32>
    %267 = arith.subf %250, %266 : vector<64x128xf32>
    %cst_134 = arith.constant 9.99999974E-6 : f32
    %268 = vector.broadcast %cst_134 : f32 to vector<64x1xf32>
    %269 = arith.addf %265, %268 : vector<64x1xf32>
    %270 = math.rsqrt %269 : vector<64x1xf32>
    %271 = vector.broadcast %270 : vector<64x1xf32> to vector<64x128xf32>
    %272 = arith.mulf %267, %271 : vector<64x128xf32>
    %273 = vector.broadcast %252 : vector<1x128xf32> to vector<64x128xf32>
    %274 = arith.mulf %272, %273 : vector<64x128xf32>
    %275 = vector.broadcast %254 : vector<1x128xf32> to vector<64x128xf32>
    %276 = arith.addf %274, %275 : vector<64x128xf32>
    %cst_135 = arith.constant 0.000000e+00 : f32
    %277 = vector.broadcast %cst_135 : f32 to vector<64x128xf32>
    %278 = arith.maximumf %276, %277 : vector<64x128xf32>
    %279 = arith.truncf %278 : vector<64x128xf32> to vector<64x128xbf16>
    %c0_136 = arith.constant 0 : index
    %c0_137 = arith.constant 0 : index
    %280 = vector.load %arg18[%c0_136, %c0_137] : memref<128x128xbf16, #tpu.memory_space<vmem>>, vector<128x128xbf16>
    %cst_138 = arith.constant dense<0.000000e+00> : vector<64x128xf32>
    %281 = tpu.matmul %279, %280, %cst_138 {dimension_numbers = #tpu.dot_dimension_numbers<[1], [0], [0], [1], [0, 0, 1, 1], [], []>} : vector<64x128xbf16>, vector<128x128xbf16>, vector<64x128xf32> -> vector<64x128xf32>
    %c0_139 = arith.constant 0 : index
    %c0_140 = arith.constant 0 : index
    %282 = vector.load %arg19[%c0_139, %c0_140] : memref<1x128xf32, #tpu.memory_space<vmem>>, vector<1x128xf32>
    %283 = vector.broadcast %282 : vector<1x128xf32> to vector<64x128xf32>
    %284 = arith.addf %281, %283 : vector<64x128xf32>
    %cst_141 = arith.constant 0.000000e+00 : f32
    %285 = vector.broadcast %cst_141 : f32 to vector<64x128xf32>
    %286 = arith.maximumf %284, %285 : vector<64x128xf32>
    %c0_142 = arith.constant 0 : index
    %c0_143 = arith.constant 0 : index
    %287 = vector.load %arg22[%c0_142, %c0_143] : memref<64x128xf32, #tpu.memory_space<vmem>>, vector<64x128xf32>
    tpu.vector_store %arg22[%c0_142, %c0_143], %286 {strides = array<i32>} : memref<64x128xf32, #tpu.memory_space<vmem>>, vector<64x128xf32>,
    %288 = vector.shape_cast %276 : vector<64x128xf32> to vector<8x8x128xf32>
    %289 = vector.broadcast %3 : vector<8x8x1xf32> to vector<8x8x128xf32>
    %290 = arith.mulf %288, %289 : vector<8x8x128xf32>
    %cst_144 = arith.constant dense<0.000000e+00> : vector<8x128xf32>
    %291 = vector.multi_reduction <add>, %290, %cst_144 [1] : vector<8x8x128xf32> to vector<8x128xf32>
    %292 = arith.truncf %291 : vector<8x128xf32> to vector<8x128xbf16>
    %c0_145 = arith.constant 0 : index
    %c0_146 = arith.constant 0 : index
    %293 = vector.load %arg20[%c0_145, %c0_146] : memref<128x128xbf16, #tpu.memory_space<vmem>>, vector<128x128xbf16>
    %cst_147 = arith.constant dense<0.000000e+00> : vector<8x128xf32>
    %294 = tpu.matmul %292, %293, %cst_147 {dimension_numbers = #tpu.dot_dimension_numbers<[1], [0], [0], [1], [0, 0, 1, 1], [], []>} : vector<8x128xbf16>, vector<128x128xbf16>, vector<8x128xf32> -> vector<8x128xf32>
    %c0_148 = arith.constant 0 : index
    %c0_149 = arith.constant 0 : index
    %295 = vector.load %arg21[%c0_148, %c0_149] : memref<1x128xf32, #tpu.memory_space<vmem>>, vector<1x128xf32>
    %296 = vector.broadcast %295 : vector<1x128xf32> to vector<8x128xf32>
    %297 = arith.addf %294, %296 : vector<8x128xf32>
    %cst_150 = arith.constant 0.000000e+00 : f32
    %298 = vector.broadcast %cst_150 : f32 to vector<8x128xf32>
    %299 = arith.maximumf %297, %298 : vector<8x128xf32>
    %c0_151 = arith.constant 0 : index
    %c0_152 = arith.constant 0 : index
    %300 = vector.load %arg23[%c0_151, %c0_152] : memref<8x128xf32, #tpu.memory_space<vmem>>, vector<8x128xf32>
    tpu.vector_store %arg23[%c0_151, %c0_152], %299 {strides = array<i32>} : memref<8x128xf32, #tpu.memory_space<vmem>>, vector<8x128xf32>,
    return
  }
  func.func @transform_0(%arg0: i32) -> (i32, i32) {
    %c0_i32 = arith.constant 0 : i32
    %c0_i32_0 = arith.constant 0 : i32
    return %arg0, %c0_i32 : i32, i32
  }
  func.func @transform_1(%arg0: i32) -> (i32, i32, i32) {
    %c0_i32 = arith.constant 0 : i32
    %c0_i32_0 = arith.constant 0 : i32
    %c0_i32_1 = arith.constant 0 : i32
    return %arg0, %c0_i32, %c0_i32_0 : i32, i32, i32
  }
  func.func @transform_2(%arg0: i32) -> (i32, i32, i32) {
    %c0_i32 = arith.constant 0 : i32
    %c0_i32_0 = arith.constant 0 : i32
    %c0_i32_1 = arith.constant 0 : i32
    return %arg0, %c0_i32, %c0_i32_0 : i32, i32, i32
  }
  func.func @transform_3(%arg0: i32) -> (i32, i32) {
    %c0_i32 = arith.constant 0 : i32
    %c0_i32_0 = arith.constant 0 : i32
    %c0_i32_1 = arith.constant 0 : i32
    return %c0_i32, %c0_i32_0 : i32, i32
  }
  func.func @transform_4(%arg0: i32) -> (i32, i32) {
    %c0_i32 = arith.constant 0 : i32
    %c0_i32_0 = arith.constant 0 : i32
    %c0_i32_1 = arith.constant 0 : i32
    return %c0_i32, %c0_i32_0 : i32, i32
  }
  func.func @transform_5(%arg0: i32) -> (i32, i32, i32) {
    %c0_i32 = arith.constant 0 : i32
    %c0_i32_0 = arith.constant 0 : i32
    %c0_i32_1 = arith.constant 0 : i32
    %c0_i32_2 = arith.constant 0 : i32
    return %c0_i32, %c0_i32_0, %c0_i32_1 : i32, i32, i32
  }
  func.func @transform_6(%arg0: i32) -> (i32, i32, i32) {
    %c0_i32 = arith.constant 0 : i32
    %c0_i32_0 = arith.constant 0 : i32
    %c0_i32_1 = arith.constant 0 : i32
    %c0_i32_2 = arith.constant 0 : i32
    return %c0_i32, %c0_i32_0, %c0_i32_1 : i32, i32, i32
  }
  func.func @transform_7(%arg0: i32) -> (i32, i32, i32) {
    %c0_i32 = arith.constant 0 : i32
    %c0_i32_0 = arith.constant 0 : i32
    %c0_i32_1 = arith.constant 0 : i32
    %c0_i32_2 = arith.constant 0 : i32
    return %c0_i32, %c0_i32_0, %c0_i32_1 : i32, i32, i32
  }
  func.func @transform_8(%arg0: i32) -> (i32, i32, i32) {
    %c0_i32 = arith.constant 0 : i32
    %c0_i32_0 = arith.constant 0 : i32
    %c0_i32_1 = arith.constant 0 : i32
    %c0_i32_2 = arith.constant 0 : i32
    return %c0_i32, %c0_i32_0, %c0_i32_1 : i32, i32, i32
  }
  func.func @transform_9(%arg0: i32) -> (i32, i32, i32) {
    %c0_i32 = arith.constant 0 : i32
    %c0_i32_0 = arith.constant 0 : i32
    %c0_i32_1 = arith.constant 0 : i32
    %c0_i32_2 = arith.constant 0 : i32
    return %c0_i32, %c0_i32_0, %c0_i32_1 : i32, i32, i32
  }
  func.func @transform_10(%arg0: i32) -> (i32, i32, i32) {
    %c0_i32 = arith.constant 0 : i32
    %c0_i32_0 = arith.constant 0 : i32
    %c0_i32_1 = arith.constant 0 : i32
    %c0_i32_2 = arith.constant 0 : i32
    return %c0_i32, %c0_i32_0, %c0_i32_1 : i32, i32, i32
  }
  func.func @transform_11(%arg0: i32) -> (i32, i32, i32) {
    %c0_i32 = arith.constant 0 : i32
    %c0_i32_0 = arith.constant 0 : i32
    %c0_i32_1 = arith.constant 0 : i32
    %c0_i32_2 = arith.constant 0 : i32
    return %c0_i32, %c0_i32_0, %c0_i32_1 : i32, i32, i32
  }
  func.func @transform_12(%arg0: i32) -> (i32, i32, i32) {
    %c0_i32 = arith.constant 0 : i32
    %c0_i32_0 = arith.constant 0 : i32
    %c0_i32_1 = arith.constant 0 : i32
    %c0_i32_2 = arith.constant 0 : i32
    return %c0_i32, %c0_i32_0, %c0_i32_1 : i32, i32, i32
  }
  func.func @transform_13(%arg0: i32) -> (i32, i32, i32) {
    %c0_i32 = arith.constant 0 : i32
    %c0_i32_0 = arith.constant 0 : i32
    %c0_i32_1 = arith.constant 0 : i32
    %c0_i32_2 = arith.constant 0 : i32
    return %c0_i32, %c0_i32_0, %c0_i32_1 : i32, i32, i32
  }
  func.func @transform_14(%arg0: i32) -> (i32, i32, i32) {
    %c0_i32 = arith.constant 0 : i32
    %c0_i32_0 = arith.constant 0 : i32
    %c0_i32_1 = arith.constant 0 : i32
    %c0_i32_2 = arith.constant 0 : i32
    return %c0_i32, %c0_i32_0, %c0_i32_1 : i32, i32, i32
  }
  func.func @transform_15(%arg0: i32) -> (i32, i32, i32) {
    %c0_i32 = arith.constant 0 : i32
    %c0_i32_0 = arith.constant 0 : i32
    %c0_i32_1 = arith.constant 0 : i32
    %c0_i32_2 = arith.constant 0 : i32
    return %c0_i32, %c0_i32_0, %c0_i32_1 : i32, i32, i32
  }
  func.func @transform_16(%arg0: i32) -> (i32, i32, i32) {
    %c0_i32 = arith.constant 0 : i32
    %c0_i32_0 = arith.constant 0 : i32
    %c0_i32_1 = arith.constant 0 : i32
    %c0_i32_2 = arith.constant 0 : i32
    return %c0_i32, %c0_i32_0, %c0_i32_1 : i32, i32, i32
  }
  func.func @transform_17(%arg0: i32) -> (i32, i32) {
    %c0_i32 = arith.constant 0 : i32
    %c0_i32_0 = arith.constant 0 : i32
    %c0_i32_1 = arith.constant 0 : i32
    return %c0_i32, %c0_i32_0 : i32, i32
  }
  func.func @transform_18(%arg0: i32) -> (i32, i32) {
    %c0_i32 = arith.constant 0 : i32
    %c0_i32_0 = arith.constant 0 : i32
    %c0_i32_1 = arith.constant 0 : i32
    return %c0_i32, %c0_i32_0 : i32, i32
  }
  func.func @transform_19(%arg0: i32) -> (i32, i32) {
    %c0_i32 = arith.constant 0 : i32
    %c0_i32_0 = arith.constant 0 : i32
    %c0_i32_1 = arith.constant 0 : i32
    return %c0_i32, %c0_i32_0 : i32, i32
  }
  func.func @transform_20(%arg0: i32) -> (i32, i32) {
    %c0_i32 = arith.constant 0 : i32
    %c0_i32_0 = arith.constant 0 : i32
    %c0_i32_1 = arith.constant 0 : i32
    return %c0_i32, %c0_i32_0 : i32, i32
  }
  func.func @transform_21(%arg0: i32) -> (i32, i32) {
    %c0_i32 = arith.constant 0 : i32
    %c0_i32_0 = arith.constant 0 : i32
    return %arg0, %c0_i32 : i32, i32
  }
  func.func @transform_22(%arg0: i32) -> (i32, i32) {
    %c0_i32 = arith.constant 0 : i32
    %c0_i32_0 = arith.constant 0 : i32
    return %arg0, %c0_i32 : i32, i32
  }
}

</mosaic_0001>

<llo_original>
// kernel: tpu_custom_call.1
$region0: #{tpu_custom_call.1}
  #allocation0 [shape = 'u32[]', space=smem, size = 0x4, offset = 0x4, fixed_abs, tag = 'smem constant byte address 0x4 - core index']
  #allocation1 [shape = 'u32[144,128]{1,0:T(1,128)}', space=vmem, size = 0x12000, scoped, tag = 'internal scratch']
  %s0 = inlined_call_operand.vmem [shape: bf16[64,16], index: 0, kind: input, shape index: {}]
  %s1 = inlined_call_operand.vmem [shape: f32[1,64,64], index: 1, kind: input, shape index: {}]
  %s2 = inlined_call_operand.vmem [shape: f32[8,8,1], index: 2, kind: input, shape index: {}]
  %s3 = inlined_call_operand.vmem [shape: bf16[16,128], index: 3, kind: input, shape index: {}]
  %s4 = inlined_call_operand.vmem [shape: f32[1,128], index: 4, kind: input, shape index: {}]
  %s5 = inlined_call_operand.vmem [shape: bf16[2,128,192], index: 5, kind: input, shape index: {}]
  %s6 = inlined_call_operand.vmem [shape: f32[2,1,192], index: 6, kind: input, shape index: {}]
  %s7 = inlined_call_operand.vmem [shape: bf16[2,64,128], index: 7, kind: input, shape index: {}]
  %s8 = inlined_call_operand.vmem [shape: f32[2,1,128], index: 8, kind: input, shape index: {}]
  %s9 = inlined_call_operand.vmem [shape: f32[2,1,128], index: 9, kind: input, shape index: {}]
  %s10 = inlined_call_operand.vmem [shape: f32[2,1,128], index: 10, kind: input, shape index: {}]
  %s11 = inlined_call_operand.vmem [shape: bf16[2,128,128], index: 11, kind: input, shape index: {}]
  %s12 = inlined_call_operand.vmem [shape: f32[2,1,128], index: 12, kind: input, shape index: {}]
  %s13 = inlined_call_operand.vmem [shape: bf16[2,128,128], index: 13, kind: input, shape index: {}]
  %s14 = inlined_call_operand.vmem [shape: f32[2,1,128], index: 14, kind: input, shape index: {}]
  %s15 = inlined_call_operand.vmem [shape: f32[2,1,128], index: 15, kind: input, shape index: {}]
  %s16 = inlined_call_operand.vmem [shape: f32[2,1,128], index: 16, kind: input, shape index: {}]
  %s17 = inlined_call_operand.vmem [shape: bf16[128,128], index: 17, kind: input, shape index: {}]
  %s18 = inlined_call_operand.vmem [shape: f32[1,128], index: 18, kind: input, shape index: {}]
  %s19 = inlined_call_operand.vmem [shape: bf16[128,128], index: 19, kind: input, shape index: {}]
  %s20 = inlined_call_operand.vmem [shape: f32[1,128], index: 20, kind: input, shape index: {}]
  %s21 = inlined_call_operand.hbm [shape: f32[64,128], index: 21, kind: output, shape index: {0}]
  %s22 = inlined_call_operand.hbm [shape: f32[8,128], index: 22, kind: output, shape index: {1}]
  %23 = xla_tuple %s21, %s22
  %s24 = sld [smem:[#allocation0]]
  $region102: #{tpu_custom_call.1} parent=0
    _
  %s26 = ssub.s32 1, %s24
  %s27 = scalar_select 0, %s26, %s24
  $region1: #{tpu_custom_call.1} parent=0
    #allocation2 [shape = 'u8[32768]{0}', space=vmem, size = 0x8000, scoped, tag = 'output window, operand 0, single buffered']
    #allocation3 [shape = 's32[1]{0}', space=sflag, size = 0x4, scoped, tag = 'scoped memory for tpu_custom_call.1']
    #allocation4 [shape = 'u8[4096]{0}', space=vmem, size = 0x1000, scoped, tag = 'output window, operand 1, single buffered']
    #allocation5 [shape = 's32[1]{0}', space=sflag, size = 0x4, scoped, tag = 'scoped memory for tpu_custom_call.1']
    %28 = vsyncpa [#allocation3], 0
    %29 = vsyncpa [#allocation5], 0
    // Predicated region
    $region2: #{tpu_custom_call.1} parent=1 // pred_check
      _
    $region3: #{tpu_custom_call.1} parent=1 // pred_check_branch
      %31 = sbr.rel (0) target = $region5
    $region4: #{tpu_custom_call.1} parent=1 // pred_region
      _
    $region5: #{tpu_custom_call.1} parent=1 // pred_fallthru
      _
    // Predicated region
    $region6: #{tpu_custom_call.1} parent=1 // pred_check
      _
    $region7: #{tpu_custom_call.1} parent=1 // pred_check_branch
      %33 = sbr.rel (0) target = $region9
    $region8: #{tpu_custom_call.1} parent=1 // pred_region
      _
    $region9: #{tpu_custom_call.1} parent=1 // pred_fallthru
      _
    // Predicated region
    $region10: #{tpu_custom_call.1} parent=1 // pred_check
      _
    $region11: #{tpu_custom_call.1} parent=1 // pred_check_branch
      %35 = sbr.rel (0) target = $region13
    $region12: #{tpu_custom_call.1} parent=1 // pred_region
      _
    $region13: #{tpu_custom_call.1} parent=1 // pred_fallthru
      _
    // Predicated region
    $region14: #{tpu_custom_call.1} parent=1 // pred_check
      _
    $region15: #{tpu_custom_call.1} parent=1 // pred_check_branch
      %37 = sbr.rel (0) target = $region17
    $region16: #{tpu_custom_call.1} parent=1 // pred_region
      _
    $region17: #{tpu_custom_call.1} parent=1 // pred_fallthru
      _
    // Predicated region
    $region18: #{tpu_custom_call.1} parent=1 // pred_check
      _
    $region19: #{tpu_custom_call.1} parent=1 // pred_check_branch
      %39 = sbr.rel (0) target = $region21
    $region20: #{tpu_custom_call.1} parent=1 // pred_region
      _
    $region21: #{tpu_custom_call.1} parent=1 // pred_fallthru
      _
    // Predicated region
    $region22: #{tpu_custom_call.1} parent=1 // pred_check
      _
    $region23: #{tpu_custom_call.1} parent=1 // pred_check_branch
      %41 = sbr.rel (0) target = $region25
    $region24: #{tpu_custom_call.1} parent=1 // pred_region
      _
    $region25: #{tpu_custom_call.1} parent=1 // pred_fallthru
      _
    // Predicated region
    $region26: #{tpu_custom_call.1} parent=1 // pred_check
      _
    $region27: #{tpu_custom_call.1} parent=1 // pred_check_branch
      %43 = sbr.rel (0) target = $region29
    $region28: #{tpu_custom_call.1} parent=1 // pred_region
      _
    $region29: #{tpu_custom_call.1} parent=1 // pred_fallthru
      _
    // Predicated region
    $region30: #{tpu_custom_call.1} parent=1 // pred_check
      _
    $region31: #{tpu_custom_call.1} parent=1 // pred_check_branch
      %45 = sbr.rel (0) target = $region33
    $region32: #{tpu_custom_call.1} parent=1 // pred_region
      _
    $region33: #{tpu_custom_call.1} parent=1 // pred_fallthru
      _
    // Predicated region
    $region34: #{tpu_custom_call.1} parent=1 // pred_check
      _
    $region35: #{tpu_custom_call.1} parent=1 // pred_check_branch
      %47 = sbr.rel (0) target = $region37
    $region36: #{tpu_custom_call.1} parent=1 // pred_region
      _
    $region37: #{tpu_custom_call.1} parent=1 // pred_fallthru
      _
    // Predicated region
    $region38: #{tpu_custom_call.1} parent=1 // pred_check
      _
    $region39: #{tpu_custom_call.1} parent=1 // pred_check_branch
      %49 = sbr.rel (0) target = $region41
    $region40: #{tpu_custom_call.1} parent=1 // pred_region
      _
    $region41: #{tpu_custom_call.1} parent=1 // pred_fallthru
      _
    // Predicated region
    $region42: #{tpu_custom_call.1} parent=1 // pred_check
      _
    $region43: #{tpu_custom_call.1} parent=1 // pred_check_branch
      %51 = sbr.rel (0) target = $region45
    $region44: #{tpu_custom_call.1} parent=1 // pred_region
      _
    $region45: #{tpu_custom_call.1} parent=1 // pred_fallthru
      _
    // Predicated region
    $region46: #{tpu_custom_call.1} parent=1 // pred_check
      _
    $region47: #{tpu_custom_call.1} parent=1 // pred_check_branch
      %53 = sbr.rel (0) target = $region49
    $region48: #{tpu_custom_call.1} parent=1 // pred_region
      _
    $region49: #{tpu_custom_call.1} parent=1 // pred_fallthru
      _
    // Predicated region
    $region50: #{tpu_custom_call.1} parent=1 // pred_check
      _
    $region51: #{tpu_custom_call.1} parent=1 // pred_check_branch
      %55 = sbr.rel (0) target = $region53
    $region52: #{tpu_custom_call.1} parent=1 // pred_region
      _
    $region53: #{tpu_custom_call.1} parent=1 // pred_fallthru
      _
    // Predicated region
    $region54: #{tpu_custom_call.1} parent=1 // pred_check
      _
    $region55: #{tpu_custom_call.1} parent=1 // pred_check_branch
      %57 = sbr.rel (0) target = $region57
    $region56: #{tpu_custom_call.1} parent=1 // pred_region
      _
    $region57: #{tpu_custom_call.1} parent=1 // pred_fallthru
      _
    // Predicated region
    $region58: #{tpu_custom_call.1} parent=1 // pred_check
      _
    $region59: #{tpu_custom_call.1} parent=1 // pred_check_branch
      %59 = sbr.rel (0) target = $region61
    $region60: #{tpu_custom_call.1} parent=1 // pred_region
      _
    $region61: #{tpu_custom_call.1} parent=1 // pred_fallthru
      _
    // Predicated region
    $region62: #{tpu_custom_call.1} parent=1 // pred_check
      _
    $region63: #{tpu_custom_call.1} parent=1 // pred_check_branch
      %61 = sbr.rel (0) target = $region65
    $region64: #{tpu_custom_call.1} parent=1 // pred_region
      _
    $region65: #{tpu_custom_call.1} parent=1 // pred_fallthru
      _
    // Predicated region
    $region66: #{tpu_custom_call.1} parent=1 // pred_check
      _
    $region67: #{tpu_custom_call.1} parent=1 // pred_check_branch
      %63 = sbr.rel (0) target = $region69
    $region68: #{tpu_custom_call.1} parent=1 // pred_region
      _
    $region69: #{tpu_custom_call.1} parent=1 // pred_fallthru
      _
    // Predicated region
    $region70: #{tpu_custom_call.1} parent=1 // pred_check
      _
    $region71: #{tpu_custom_call.1} parent=1 // pred_check_branch
      %65 = sbr.rel (0) target = $region73
    $region72: #{tpu_custom_call.1} parent=1 // pred_region
      _
    $region73: #{tpu_custom_call.1} parent=1 // pred_fallthru
      _
    // Predicated region
    $region74: #{tpu_custom_call.1} parent=1 // pred_check
      _
    $region75: #{tpu_custom_call.1} parent=1 // pred_check_branch
      %67 = sbr.rel (0) target = $region77
    $region76: #{tpu_custom_call.1} parent=1 // pred_region
      _
    $region77: #{tpu_custom_call.1} parent=1 // pred_fallthru
      _
    // Predicated region
    $region78: #{tpu_custom_call.1} parent=1 // pred_check
      _
    $region79: #{tpu_custom_call.1} parent=1 // pred_check_branch
      %69 = sbr.rel (0) target = $region81
    $region80: #{tpu_custom_call.1} parent=1 // pred_region
      _
    $region81: #{tpu_custom_call.1} parent=1 // pred_fallthru
      _
    // Predicated region
    $region82: #{tpu_custom_call.1} parent=1 // pred_check
      _
    $region83: #{tpu_custom_call.1} parent=1 // pred_check_branch
      %71 = sbr.rel (0) target = $region85
    $region84: #{tpu_custom_call.1} parent=1 // pred_region
      _
    $region85: #{tpu_custom_call.1} parent=1 // pred_fallthru
      _
    %v73 = vld [vmem:[%s0] sm:$0xf]
    %v74 = vld [vmem:[%s0 + $0x4] sm:$0xf]
    %v75 = vld [vmem:[%s0 + $0x8] sm:$0xf]
    %v76 = vld [vmem:[%s0 + $0xc] sm:$0xf]
    %v77 = vld [vmem:[%s0 + $0x10] sm:$0xf]
    %v78 = vld [vmem:[%s0 + $0x14] sm:$0xf]
    %v79 = vld [vmem:[%s0 + $0x18] sm:$0xf]
    %v80 = vld [vmem:[%s0 + $0x1c] sm:$0xf]
    %v81 = vld [vmem:[%s1] sm:$0xff]
    %v82 = vld [vmem:[%s1 + $0x8] sm:$0xff]
    %v83 = vld [vmem:[%s1 + $0x10] sm:$0xff]
    %v84 = vld [vmem:[%s1 + $0x18] sm:$0xff]
    %v85 = vld [vmem:[%s1 + $0x20] sm:$0xff]
    %v86 = vld [vmem:[%s1 + $0x28] sm:$0xff]
    %v87 = vld [vmem:[%s1 + $0x30] sm:$0xff]
    %v88 = vld [vmem:[%s1 + $0x38] sm:$0xff]
    %v89 = vld [vmem:[%s2] sm:$0xff]
    %v90 = vld [vmem:[%s2 + $0x8] sm:$0xff]
    %v91 = vld [vmem:[%s2 + $0x10] sm:$0xff]
    %v92 = vld [vmem:[%s2 + $0x18] sm:$0xff]
    %v93 = vld [vmem:[%s2 + $0x20] sm:$0xff]
    %v94 = vld [vmem:[%s2 + $0x28] sm:$0xff]
    %v95 = vld [vmem:[%s2 + $0x30] sm:$0xff]
    %v96 = vld [vmem:[%s2 + $0x38] sm:$0xff]
    %v97 = vld [vmem:[%s3] sm:$0xf]
    %v98 = vld [vmem:[%s3 + $0x4] sm:$0xf]
    %v99 = vld [vmem:[%s4] sm:$0x1]
    %v101 = vlaneseq
    %v102 = vshrl.u32 %v101, 7
    %v103 = vsub.s32 0, %v102
    %v104 = vrot.slane %v99, %v103
    %v114 = vunpack.c.l.b16 %v73
    %v115 = vunpack.c.l.b16 %v74
    %v116 = vunpack.c.l.b16 %v75
    %v117 = vunpack.c.l.b16 %v76
    %v118 = vunpack.c.l.b16 %v77
    %v119 = vunpack.c.l.b16 %v78
    %v120 = vunpack.c.l.b16 %v79
    %v121 = vunpack.c.l.b16 %v80
    %v122 = vpack.c.b16 %v115, %v114
    %v123 = vpack.c.b16 %v117, %v116
    %v124 = vpack.c.b16 %v119, %v118
    %v125 = vpack.c.b16 %v121, %v120
    %v128 = vunpack.c.l.b16 %v97
    %v129 = vunpack.c.l.b16 %v98
    %v130 = vpack.c.b16 %v129, %v128
    %vm132 = vcmask 130048
    %v134 = vsel %vm132, %v122, 0
    %v137 = vsel %vm132, %v123, 0
    %v140 = vsel %vm132, %v124, 0
    %v143 = vsel %vm132, %v125, 0
    %145 = vmatprep.subr.bf16.mxu0 0
    %146 = vmatpush1.bf16.msra.mxu0 0
    %147 = vmatprep.subr.bf16.mxu0 0
    %148 = vmatpush1.bf16.msra.mxu0 0
    %149 = vmatprep.subr.bf16.mxu0 0
    %150 = vmatpush1.bf16.msra.mxu0 0
    %151 = vmatprep.subr.bf16.mxu0 0
    %152 = vmatpush1.bf16.msra.mxu0 0
    %153 = vmatprep.subr.bf16.mxu0 0
    %154 = vmatpush1.bf16.msra.mxu0 0
    %155 = vmatprep.subr.bf16.mxu0 0
    %156 = vmatpush1.bf16.msra.mxu0 0
    %157 = vmatprep.subr.bf16.mxu0 0
    %158 = vmatpush1.bf16.msra.mxu0 0
    %159 = vmatprep.subr.bf16.mxu0 0
    %160 = vmatpush1.bf16.msra.mxu0 %v130
    %161 = vmatprep.subr.bf16.mxu0 0
    %162 = vmatpush2.bf16.msra.mxu0 0
    %163 = vmatprep.subr.bf16.mxu0 0
    %164 = vmatpush2.bf16.msra.mxu0 0
    %165 = vmatprep.subr.bf16.mxu0 0
    %166 = vmatpush2.bf16.msra.mxu0 0
    %167 = vmatprep.subr.bf16.mxu0 0
    %168 = vmatpush2.bf16.msra.mxu0 0
    %169 = vmatprep.subr.bf16.mxu0 0
    %170 = vmatpush2.bf16.msra.mxu0 0
    %171 = vmatprep.subr.bf16.mxu0 0
    %172 = vmatpush2.bf16.msra.mxu0 0
    %173 = vmatprep.subr.bf16.mxu0 0
    %174 = vmatpush2.bf16.msra.mxu0 0
    %175 = vmatprep.subr.bf16.mxu0 0
    %176 = vmatpush2.bf16.msra.mxu0 0
    %177 = vmatprep.mubr.bf16.mxu0 0
    %178 = vmatmul.mubr.bf16.gmra.mxu0 %v134
    %v179 = vpop.f32.mrf.mxu0
    %v180 = vadd.f32 %v104, %v179
    %v181 = vpop.f32.mrf.mxu0
    %v182 = vpop.f32.mrf.mxu0
    %v183 = vadd.f32 %v104, %v182
    %v184 = vpop.f32.mrf.mxu0
    %185 = vmatprep.mubr.bf16.mxu0 0
    %186 = vmatmul.mubr.bf16.gmra.mxu0 %v137
    %v187 = vpop.f32.mrf.mxu0
    %v188 = vadd.f32 %v104, %v187
    %v189 = vpop.f32.mrf.mxu0
    %v190 = vpop.f32.mrf.mxu0
    %v191 = vadd.f32 %v104, %v190
    %v192 = vpop.f32.mrf.mxu0
    %193 = vmatprep.mubr.bf16.mxu0 0
    %194 = vmatmul.mubr.bf16.gmra.mxu0 %v140
    %v195 = vpop.f32.mrf.mxu0
    %v196 = vadd.f32 %v104, %v195
    %v197 = vpop.f32.mrf.mxu0
    %v198 = vpop.f32.mrf.mxu0
    %v199 = vadd.f32 %v104, %v198
    %v200 = vpop.f32.mrf.mxu0
    %201 = vmatprep.mubr.bf16.mxu0 0
    %202 = vmatmul.mubr.bf16.gmra.mxu0 %v143
    %v203 = vpop.f32.mrf.mxu0
    %v204 = vadd.f32 %v104, %v203
    %v205 = vpop.f32.mrf.mxu0
    %v206 = vpop.f32.mrf.mxu0
    %v207 = vadd.f32 %v104, %v206
    %v208 = vpop.f32.mrf.mxu0
    %209 = vdwg.mxu0
    %v210 = vmax.f32 %v180, 0.0
    %v211 = vmax.f32 %v183, 0.0
    %v212 = vmax.f32 %v188, 0.0
    %v213 = vmax.f32 %v191, 0.0
    %v214 = vmax.f32 %v196, 0.0
    %v215 = vmax.f32 %v199, 0.0
    %v216 = vmax.f32 %v204, 0.0
    %v217 = vmax.f32 %v207, 0.0
    %v218 = vpack.c.bf16 %v211, %v210
    %v219 = vpack.c.bf16 %v213, %v212
    %v220 = vpack.c.bf16 %v215, %v214
    %v221 = vpack.c.bf16 %v217, %v216
    %v222 = vld [vmem:[%s5] sm:$0xff]
    %v223 = vld [vmem:[%s5 + $0x8] sm:$0xff]
    %v224 = vld [vmem:[%s5 + $0x10] sm:$0xff]
    %v225 = vld [vmem:[%s5 + $0x18] sm:$0xff]
    %v226 = vld [vmem:[%s5 + $0x20] sm:$0xff]
    %v227 = vld [vmem:[%s5 + $0x28] sm:$0xff]
    %v228 = vld [vmem:[%s5 + $0x30] sm:$0xff]
    %v229 = vld [vmem:[%s5 + $0x38] sm:$0xff]
    %v230 = vld [vmem:[%s5 + $0x40] sm:$0xff]
    %v231 = vld [vmem:[%s5 + $0x48] sm:$0xff]
    %v232 = vld [vmem:[%s5 + $0x50] sm:$0xff]
    %v233 = vld [vmem:[%s5 + $0x58] sm:$0xff]
    %v234 = vld [vmem:[%s5 + $0x60] sm:$0xff]
    %v235 = vld [vmem:[%s5 + $0x68] sm:$0xff]
    %v236 = vld [vmem:[%s5 + $0x70] sm:$0xff]
    %v237 = vld [vmem:[%s5 + $0x78] sm:$0xff]
    %v238 = vld [vmem:[%s6] sm:$0x3]
    %v240 = vlaneseq
    %v241 = vshrl.u32 %v240, 7
    %v242 = vsub.s32 0, %v241
    %v243 = vrot.slane %v238, %v242
    %v244 = vlaneseq
    %v245 = vshrl.u32 %v244, 7
    %v246 = vsub.s32 1, %v245
    %v247 = vrot.slane %v238, %v246
    %v266 = vunpack.c.l.b16 %v222
    %v267 = vunpack.c.h.b16 %v222
    %v268 = vunpack.c.l.b16 %v223
    %v269 = vunpack.c.h.b16 %v223
    %v270 = vunpack.c.l.b16 %v224
    %v271 = vunpack.c.h.b16 %v224
    %v272 = vunpack.c.l.b16 %v225
    %v273 = vunpack.c.h.b16 %v225
    %v274 = vunpack.c.l.b16 %v226
    %v275 = vunpack.c.h.b16 %v226
    %v276 = vunpack.c.l.b16 %v227
    %v277 = vunpack.c.h.b16 %v227
    %v278 = vunpack.c.l.b16 %v228
    %v279 = vunpack.c.h.b16 %v228
    %v280 = vunpack.c.l.b16 %v229
    %v281 = vunpack.c.h.b16 %v229
    %v282 = vunpack.c.l.b16 %v230
    %v283 = vunpack.c.h.b16 %v230
    %v284 = vunpack.c.l.b16 %v231
    %v285 = vunpack.c.h.b16 %v231
    %v286 = vunpack.c.l.b16 %v232
    %v287 = vunpack.c.h.b16 %v232
    %v288 = vunpack.c.l.b16 %v233
    %v289 = vunpack.c.h.b16 %v233
    %v290 = vunpack.c.l.b16 %v234
    %v291 = vunpack.c.h.b16 %v234
    %v292 = vunpack.c.l.b16 %v235
    %v293 = vunpack.c.h.b16 %v235
    %v294 = vunpack.c.l.b16 %v236
    %v295 = vunpack.c.h.b16 %v236
    %v296 = vunpack.c.l.b16 %v237
    %v297 = vunpack.c.h.b16 %v237
    %v298 = vpack.c.b16 %v268, %v266
    %v299 = vpack.c.b16 %v269, %v267
    %v300 = vpack.c.b16 %v272, %v270
    %v301 = vpack.c.b16 %v273, %v271
    %v302 = vpack.c.b16 %v276, %v274
    %v303 = vpack.c.b16 %v277, %v275
    %v304 = vpack.c.b16 %v280, %v278
    %v305 = vpack.c.b16 %v281, %v279
    %v306 = vpack.c.b16 %v284, %v282
    %v307 = vpack.c.b16 %v285, %v283
    %v308 = vpack.c.b16 %v288, %v286
    %v309 = vpack.c.b16 %v289, %v287
    %v310 = vpack.c.b16 %v292, %v290
    %v311 = vpack.c.b16 %v293, %v291
    %v312 = vpack.c.b16 %v296, %v294
    %v313 = vpack.c.b16 %v297, %v295
    %330 = vmatprep.subr.bf16.mxu0 %v313
    %331 = vmatpush1.bf16.msra.mxu0 %v312
    %332 = vmatprep.subr.bf16.mxu0 %v311
    %333 = vmatpush1.bf16.msra.mxu0 %v310
    %334 = vmatprep.subr.bf16.mxu0 %v309
    %335 = vmatpush1.bf16.msra.mxu0 %v308
    %336 = vmatprep.subr.bf16.mxu0 %v307
    %337 = vmatpush1.bf16.msra.mxu0 %v306
    %338 = vmatprep.subr.bf16.mxu0 %v305
    %339 = vmatpush1.bf16.msra.mxu0 %v304
    %340 = vmatprep.subr.bf16.mxu0 %v303
    %341 = vmatpush1.bf16.msra.mxu0 %v302
    %342 = vmatprep.subr.bf16.mxu0 %v301
    %343 = vmatpush1.bf16.msra.mxu0 %v300
    %344 = vmatprep.subr.bf16.mxu0 %v299
    %345 = vmatpush1.bf16.msra.mxu0 %v298
    %346 = vmatprep.subr.bf16.mxu0 0
    %347 = vmatpush2.bf16.msra.mxu0 0
    %348 = vmatprep.subr.bf16.mxu0 0
    %349 = vmatpush2.bf16.msra.mxu0 0
    %350 = vmatprep.subr.bf16.mxu0 0
    %351 = vmatpush2.bf16.msra.mxu0 0
    %352 = vmatprep.subr.bf16.mxu0 0
    %353 = vmatpush2.bf16.msra.mxu0 0
    %354 = vmatprep.subr.bf16.mxu0 0
    %355 = vmatpush2.bf16.msra.mxu0 0
    %356 = vmatprep.subr.bf16.mxu0 0
    %357 = vmatpush2.bf16.msra.mxu0 0
    %358 = vmatprep.subr.bf16.mxu0 0
    %359 = vmatpush2.bf16.msra.mxu0 0
    %360 = vmatprep.subr.bf16.mxu0 0
    %361 = vmatpush2.bf16.msra.mxu0 0
    %362 = vmatprep.mubr.bf16.mxu0 0
    %363 = vmatmul.mubr.bf16.gmra.mxu0 %v218
    %v364 = vpop.f32.mrf.mxu0
    %v365 = vadd.f32 %v243, %v364
    %v366 = vpop.f32.mrf.mxu0
    %v367 = vadd.f32 %v247, %v366
    %v368 = vpop.f32.mrf.mxu0
    %v369 = vadd.f32 %v243, %v368
    %v370 = vpop.f32.mrf.mxu0
    %v371 = vadd.f32 %v247, %v370
    %372 = vmatprep.mubr.bf16.mxu0 0
    %373 = vmatmul.mubr.bf16.gmra.mxu0 %v219
    %v374 = vpop.f32.mrf.mxu0
    %v375 = vadd.f32 %v243, %v374
    %v376 = vpop.f32.mrf.mxu0
    %v377 = vadd.f32 %v247, %v376
    %v378 = vpop.f32.mrf.mxu0
    %v379 = vadd.f32 %v243, %v378
    %v380 = vpop.f32.mrf.mxu0
    %v381 = vadd.f32 %v247, %v380
    %382 = vmatprep.mubr.bf16.mxu0 0
    %383 = vmatmul.mubr.bf16.gmra.mxu0 %v220
    %v384 = vpop.f32.mrf.mxu0
    %v385 = vadd.f32 %v243, %v384
    %v386 = vpop.f32.mrf.mxu0
    %v387 = vadd.f32 %v247, %v386
    %v388 = vpop.f32.mrf.mxu0
    %v389 = vadd.f32 %v243, %v388
    %v390 = vpop.f32.mrf.mxu0
    %v391 = vadd.f32 %v247, %v390
    %392 = vmatprep.mubr.bf16.mxu0 0
    %393 = vmatmul.mubr.bf16.gmra.mxu0 %v221
    %v394 = vpop.f32.mrf.mxu0
    %v395 = vadd.f32 %v243, %v394
    %v396 = vpop.f32.mrf.mxu0
    %v397 = vadd.f32 %v247, %v396
    %v398 = vpop.f32.mrf.mxu0
    %v399 = vadd.f32 %v243, %v398
    %v400 = vpop.f32.mrf.mxu0
    %v401 = vadd.f32 %v247, %v400
    %402 = vdwg.mxu0
    %v403 = vpack.c.bf16 %v369, %v365
    %v404 = vpack.c.bf16 %v379, %v375
    %v405 = vpack.c.bf16 %v389, %v385
    %v406 = vpack.c.bf16 %v399, %v395
    %v407 = vpack.c.bf16 %v371, %v367
    %v408 = vpack.c.bf16 %v381, %v377
    %v409 = vpack.c.bf16 %v391, %v387
    %v410 = vpack.c.bf16 %v401, %v397
    %415 = vrot.lane.b32.xlu0 %v403, 64
    %v416 = vpop.permute.xlu0 %415
    %417 = vrot.lane.b32.xlu0 %v404, 64
    %v418 = vpop.permute.xlu0 %417
    %419 = vrot.lane.b32.xlu0 %v405, 64
    %v420 = vpop.permute.xlu0 %419
    %421 = vrot.lane.b32.xlu0 %v406, 64
    %v422 = vpop.permute.xlu0 %421
    %vm423 = vcmask 261120
    %v425 = vsel %vm423, %v403, 0
    %v428 = vsel %vm423, %v404, 0
    %v431 = vsel %vm423, %v405, 0
    %v434 = vsel %vm423, %v406, 0
    %v437 = vsel %vm423, %v416, 0
    %v440 = vsel %vm423, %v418, 0
    %v443 = vsel %vm423, %v420, 0
    %v446 = vsel %vm423, %v422, 0
    %448 = vmatprep.subr.bf16.mxu0 0
    %449 = vmatpush1.bf16.xpose.msra.mxu0 0
    %450 = vmatprep.subr.bf16.mxu0 0
    %451 = vmatpush1.bf16.xpose.msra.mxu0 0
    %452 = vmatprep.subr.bf16.mxu0 0
    %453 = vmatpush1.bf16.xpose.msra.mxu0 0
    %454 = vmatprep.subr.bf16.mxu0 0
    %455 = vmatpush1.bf16.xpose.msra.mxu0 0
    %456 = vmatprep.subr.bf16.mxu0 0
    %457 = vmatpush1.bf16.xpose.msra.mxu0 %v446
    %458 = vmatprep.subr.bf16.mxu0 0
    %459 = vmatpush1.bf16.xpose.msra.mxu0 %v443
    %460 = vmatprep.subr.bf16.mxu0 0
    %461 = vmatpush1.bf16.xpose.msra.mxu0 %v440
    %462 = vmatprep.subr.bf16.mxu0 0
    %463 = vmatpush1.bf16.xpose.msra.mxu0 %v437
    %464 = vmatprep.subr.bf16.mxu0 0
    %465 = vmatpush2.bf16.xpose.msra.mxu0 0
    %466 = vmatprep.subr.bf16.mxu0 0
    %467 = vmatpush2.bf16.xpose.msra.mxu0 0
    %468 = vmatprep.subr.bf16.mxu0 0
    %469 = vmatpush2.bf16.xpose.msra.mxu0 0
    %470 = vmatprep.subr.bf16.mxu0 0
    %471 = vmatpush2.bf16.xpose.msra.mxu0 0
    %472 = vmatprep.subr.bf16.mxu0 0
    %473 = vmatpush2.bf16.xpose.msra.mxu0 0
    %474 = vmatprep.subr.bf16.mxu0 0
    %475 = vmatpush2.bf16.xpose.msra.mxu0 0
    %476 = vmatprep.subr.bf16.mxu0 0
    %477 = vmatpush2.bf16.xpose.msra.mxu0 0
    %478 = vmatprep.subr.bf16.mxu0 0
    %479 = vmatpush2.bf16.xpose.msra.mxu0 0
    %480 = vmatprep.mubr.bf16.mxu0 0
    %481 = vmatmul.mubr.bf16.gmra.mxu0 %v425
    %v482 = vpop.f32.mrf.mxu0
    %v483 = vadd.f32 0.0, %v482
    %v484 = vpop.f32.mrf.mxu0
    %v485 = vpop.f32.mrf.mxu0
    %v486 = vadd.f32 0.0, %v485
    %v487 = vpop.f32.mrf.mxu0
    %488 = vmatprep.mubr.bf16.mxu0 0
    %489 = vmatmul.mubr.bf16.gmra.mxu0 %v428
    %v490 = vpop.f32.mrf.mxu0
    %v491 = vadd.f32 0.0, %v490
    %v492 = vpop.f32.mrf.mxu0
    %v493 = vpop.f32.mrf.mxu0
    %v494 = vadd.f32 0.0, %v493
    %v495 = vpop.f32.mrf.mxu0
    %496 = vmatprep.mubr.bf16.mxu0 0
    %497 = vmatmul.mubr.bf16.gmra.mxu0 %v431
    %v498 = vpop.f32.mrf.mxu0
    %v499 = vadd.f32 0.0, %v498
    %v500 = vpop.f32.mrf.mxu0
    %v501 = vpop.f32.mrf.mxu0
    %v502 = vadd.f32 0.0, %v501
    %v503 = vpop.f32.mrf.mxu0
    %504 = vmatprep.mubr.bf16.mxu0 0
    %505 = vmatmul.mubr.bf16.gmra.mxu0 %v434
    %v506 = vpop.f32.mrf.mxu0
    %v507 = vadd.f32 0.0, %v506
    %v508 = vpop.f32.mrf.mxu0
    %v509 = vpop.f32.mrf.mxu0
    %v510 = vadd.f32 0.0, %v509
    %v511 = vpop.f32.mrf.mxu0
    %512 = vdwg.mxu0
    %v513 = vmul.f32 %v483, 0.17677669
    %v514 = vmul.f32 %v486, 0.17677669
    %v515 = vmul.f32 %v491, 0.17677669
    %v516 = vmul.f32 %v494, 0.17677669
    %v517 = vmul.f32 %v499, 0.17677669
    %v518 = vmul.f32 %v502, 0.17677669
    %v519 = vmul.f32 %v507, 0.17677669
    %v520 = vmul.f32 %v510, 0.17677669
    %v521 = vadd.f32 %v513, %v81
    %v522 = vadd.f32 %v514, %v82
    %v523 = vadd.f32 %v515, %v83
    %v524 = vadd.f32 %v516, %v84
    %v525 = vadd.f32 %v517, %v85
    %v526 = vadd.f32 %v518, %v86
    %v527 = vadd.f32 %v519, %v87
    %v528 = vadd.f32 %v520, %v88
    %vm529 = vcmask 523264
    %v530 = vsel %vm529, %v521, -inf
    %531 = vmax.xlane.f32.xlu0 %v530
    %v532 = vpop.xlane.xlu0 %531
    %v533 = vsel %vm529, %v522, -inf
    %534 = vmax.xlane.f32.xlu0 %v533
    %v535 = vpop.xlane.xlu0 %534
    %v536 = vsel %vm529, %v523, -inf
    %537 = vmax.xlane.f32.xlu0 %v536
    %v538 = vpop.xlane.xlu0 %537
    %v539 = vsel %vm529, %v524, -inf
    %540 = vmax.xlane.f32.xlu0 %v539
    %v541 = vpop.xlane.xlu0 %540
    %v542 = vsel %vm529, %v525, -inf
    %543 = vmax.xlane.f32.xlu0 %v542
    %v544 = vpop.xlane.xlu0 %543
    %v545 = vsel %vm529, %v526, -inf
    %546 = vmax.xlane.f32.xlu0 %v545
    %v547 = vpop.xlane.xlu0 %546
    %v548 = vsel %vm529, %v527, -inf
    %549 = vmax.xlane.f32.xlu0 %v548
    %v550 = vpop.xlane.xlu0 %549
    %v551 = vsel %vm529, %v528, -inf
    %552 = vmax.xlane.f32.xlu0 %v551
    %v553 = vpop.xlane.xlu0 %552
    %v554 = vsub.f32 %v521, %v532
    %v555 = vsub.f32 %v522, %v535
    %v556 = vsub.f32 %v523, %v538
    %v557 = vsub.f32 %v524, %v541
    %v558 = vsub.f32 %v525, %v544
    %v559 = vsub.f32 %v526, %v547
    %v560 = vsub.f32 %v527, %v550
    %v561 = vsub.f32 %v528, %v553
    %v562 = vmul.f32 %v554, 1.442695
    %v563 = vpow.pop %v562
    %v564 = vmul.f32 %v555, 1.442695
    %v565 = vpow.pop %v564
    %v566 = vmul.f32 %v556, 1.442695
    %v567 = vpow.pop %v566
    %v568 = vmul.f32 %v557, 1.442695
    %v569 = vpow.pop %v568
    %v570 = vmul.f32 %v558, 1.442695
    %v571 = vpow.pop %v570
    %v572 = vmul.f32 %v559, 1.442695
    %v573 = vpow.pop %v572
    %v574 = vmul.f32 %v560, 1.442695
    %v575 = vpow.pop %v574
    %v576 = vmul.f32 %v561, 1.442695
    %v577 = vpow.pop %v576
    %v578 = vsel %vm529, %v563, 0.0
    %579 = vadd.xlane.f32.xlu0 %v578
    %v580 = vpop.xlane.xlu0 %579
    %v581 = vsel %vm529, %v565, 0.0
    %582 = vadd.xlane.f32.xlu0 %v581
    %v583 = vpop.xlane.xlu0 %582
    %v584 = vsel %vm529, %v567, 0.0
    %585 = vadd.xlane.f32.xlu0 %v584
    %v586 = vpop.xlane.xlu0 %585
    %v587 = vsel %vm529, %v569, 0.0
    %588 = vadd.xlane.f32.xlu0 %v587
    %v589 = vpop.xlane.xlu0 %588
    %v590 = vsel %vm529, %v571, 0.0
    %591 = vadd.xlane.f32.xlu0 %v590
    %v592 = vpop.xlane.xlu0 %591
    %v593 = vsel %vm529, %v573, 0.0
    %594 = vadd.xlane.f32.xlu0 %v593
    %v595 = vpop.xlane.xlu0 %594
    %v596 = vsel %vm529, %v575, 0.0
    %597 = vadd.xlane.f32.xlu0 %v596
    %v598 = vpop.xlane.xlu0 %597
    %v599 = vsel %vm529, %v577, 0.0
    %600 = vadd.xlane.f32.xlu0 %v599
    %v601 = vpop.xlane.xlu0 %600
    %v602 = vrcp.pop %v580
    %v603 = vmul.f32 %v563, %v602
    %v604 = vrcp.pop %v583
    %v605 = vmul.f32 %v565, %v604
    %v606 = vrcp.pop %v586
    %v607 = vmul.f32 %v567, %v606
    %v608 = vrcp.pop %v589
    %v609 = vmul.f32 %v569, %v608
    %v610 = vrcp.pop %v592
    %v611 = vmul.f32 %v571, %v610
    %v612 = vrcp.pop %v595
    %v613 = vmul.f32 %v573, %v612
    %v614 = vrcp.pop %v598
    %v615 = vmul.f32 %v575, %v614
    %v616 = vrcp.pop %v601
    %v617 = vmul.f32 %v577, %v616
    %v618 = vpack.c.bf16 %v605, %v603
    %v619 = vpack.c.bf16 %v609, %v607
    %v620 = vpack.c.bf16 %v613, %v611
    %v621 = vpack.c.bf16 %v617, %v615
    %v623 = vsel %vm529, %v618, 0
    %v626 = vsel %vm529, %v619, 0
    %v629 = vsel %vm529, %v620, 0
    %v632 = vsel %vm529, %v621, 0
    %634 = vmatprep.subr.bf16.mxu0 0
    %635 = vmatpush1.bf16.msra.mxu0 0
    %636 = vmatprep.subr.bf16.mxu0 0
    %637 = vmatpush1.bf16.msra.mxu0 0
    %638 = vmatprep.subr.bf16.mxu0 0
    %639 = vmatpush1.bf16.msra.mxu0 0
    %640 = vmatprep.subr.bf16.mxu0 0
    %641 = vmatpush1.bf16.msra.mxu0 0
    %642 = vmatprep.subr.bf16.mxu0 0
    %643 = vmatpush1.bf16.msra.mxu0 %v410
    %644 = vmatprep.subr.bf16.mxu0 0
    %645 = vmatpush1.bf16.msra.mxu0 %v409
    %646 = vmatprep.subr.bf16.mxu0 0
    %647 = vmatpush1.bf16.msra.mxu0 %v408
    %648 = vmatprep.subr.bf16.mxu0 0
    %649 = vmatpush1.bf16.msra.mxu0 %v407
    %650 = vmatprep.subr.bf16.mxu0 0
    %651 = vmatpush2.bf16.msra.mxu0 0
    %652 = vmatprep.subr.bf16.mxu0 0
    %653 = vmatpush2.bf16.msra.mxu0 0
    %654 = vmatprep.subr.bf16.mxu0 0
    %655 = vmatpush2.bf16.msra.mxu0 0
    %656 = vmatprep.subr.bf16.mxu0 0
    %657 = vmatpush2.bf16.msra.mxu0 0
    %658 = vmatprep.subr.bf16.mxu0 0
    %659 = vmatpush2.bf16.msra.mxu0 0
    %660 = vmatprep.subr.bf16.mxu0 0
    %661 = vmatpush2.bf16.msra.mxu0 0
    %662 = vmatprep.subr.bf16.mxu0 0
    %663 = vmatpush2.bf16.msra.mxu0 0
    %664 = vmatprep.subr.bf16.mxu0 0
    %665 = vmatpush2.bf16.msra.mxu0 0
    %666 = vmatprep.mubr.bf16.mxu0 0
    %667 = vmatmul.mubr.bf16.gmra.mxu0 %v623
    %v668 = vpop.f32.mrf.mxu0
    %v669 = vadd.f32 0.0, %v668
    %v670 = vpop.f32.mrf.mxu0
    %v671 = vpop.f32.mrf.mxu0
    %v672 = vadd.f32 0.0, %v671
    %v673 = vpop.f32.mrf.mxu0
    %674 = vmatprep.mubr.bf16.mxu0 0
    %675 = vmatmul.mubr.bf16.gmra.mxu0 %v626
    %v676 = vpop.f32.mrf.mxu0
    %v677 = vadd.f32 0.0, %v676
    %v678 = vpop.f32.mrf.mxu0
    %v679 = vpop.f32.mrf.mxu0
    %v680 = vadd.f32 0.0, %v679
    %v681 = vpop.f32.mrf.mxu0
    %682 = vmatprep.mubr.bf16.mxu0 0
    %683 = vmatmul.mubr.bf16.gmra.mxu0 %v629
    %v684 = vpop.f32.mrf.mxu0
    %v685 = vadd.f32 0.0, %v684
    %v686 = vpop.f32.mrf.mxu0
    %v687 = vpop.f32.mrf.mxu0
    %v688 = vadd.f32 0.0, %v687
    %v689 = vpop.f32.mrf.mxu0
    %690 = vmatprep.mubr.bf16.mxu0 0
    %691 = vmatmul.mubr.bf16.gmra.mxu0 %v632
    %v692 = vpop.f32.mrf.mxu0
    %v693 = vadd.f32 0.0, %v692
    %v694 = vpop.f32.mrf.mxu0
    %v695 = vpop.f32.mrf.mxu0
    %v696 = vadd.f32 0.0, %v695
    %v697 = vpop.f32.mrf.mxu0
    %698 = vdwg.mxu0
    %699 = vrot.lane.b32.xlu0 %v403, 96
    %v700 = vpop.permute.xlu0 %699
    %701 = vrot.lane.b32.xlu0 %v404, 96
    %v702 = vpop.permute.xlu0 %701
    %703 = vrot.lane.b32.xlu0 %v405, 96
    %v704 = vpop.permute.xlu0 %703
    %705 = vrot.lane.b32.xlu0 %v406, 96
    %v706 = vpop.permute.xlu0 %705
    %707 = vrot.lane.b32.xlu0 %v403, 32
    %v708 = vpop.permute.xlu0 %707
    %709 = vrot.lane.b32.xlu0 %v404, 32
    %v710 = vpop.permute.xlu0 %709
    %711 = vrot.lane.b32.xlu0 %v405, 32
    %v712 = vpop.permute.xlu0 %711
    %713 = vrot.lane.b32.xlu0 %v406, 32
    %v714 = vpop.permute.xlu0 %713
    %v716 = vsel %vm423, %v700, 0
    %v719 = vsel %vm423, %v702, 0
    %v722 = vsel %vm423, %v704, 0
    %v725 = vsel %vm423, %v706, 0
    %v728 = vsel %vm423, %v708, 0
    %v731 = vsel %vm423, %v710, 0
    %v734 = vsel %vm423, %v712, 0
    %v737 = vsel %vm423, %v714, 0
    %739 = vmatprep.subr.bf16.mxu0 0
    %740 = vmatpush1.bf16.xpose.msra.mxu0 0
    %741 = vmatprep.subr.bf16.mxu0 0
    %742 = vmatpush1.bf16.xpose.msra.mxu0 0
    %743 = vmatprep.subr.bf16.mxu0 0
    %744 = vmatpush1.bf16.xpose.msra.mxu0 0
    %745 = vmatprep.subr.bf16.mxu0 0
    %746 = vmatpush1.bf16.xpose.msra.mxu0 0
    %747 = vmatprep.subr.bf16.mxu0 0
    %748 = vmatpush1.bf16.xpose.msra.mxu0 %v737
    %749 = vmatprep.subr.bf16.mxu0 0
    %750 = vmatpush1.bf16.xpose.msra.mxu0 %v734
    %751 = vmatprep.subr.bf16.mxu0 0
    %752 = vmatpush1.bf16.xpose.msra.mxu0 %v731
    %753 = vmatprep.subr.bf16.mxu0 0
    %754 = vmatpush1.bf16.xpose.msra.mxu0 %v728
    %755 = vmatprep.subr.bf16.mxu0 0
    %756 = vmatpush2.bf16.xpose.msra.mxu0 0
    %757 = vmatprep.subr.bf16.mxu0 0
    %758 = vmatpush2.bf16.xpose.msra.mxu0 0
    %759 = vmatprep.subr.bf16.mxu0 0
    %760 = vmatpush2.bf16.xpose.msra.mxu0 0
    %761 = vmatprep.subr.bf16.mxu0 0
    %762 = vmatpush2.bf16.xpose.msra.mxu0 0
    %763 = vmatprep.subr.bf16.mxu0 0
    %764 = vmatpush2.bf16.xpose.msra.mxu0 0
    %765 = vmatprep.subr.bf16.mxu0 0
    %766 = vmatpush2.bf16.xpose.msra.mxu0 0
    %767 = vmatprep.subr.bf16.mxu0 0
    %768 = vmatpush2.bf16.xpose.msra.mxu0 0
    %769 = vmatprep.subr.bf16.mxu0 0
    %770 = vmatpush2.bf16.xpose.msra.mxu0 0
    %771 = vmatprep.mubr.bf16.mxu0 0
    %772 = vmatmul.mubr.bf16.gmra.mxu0 %v716
    %v773 = vpop.f32.mrf.mxu0
    %v774 = vadd.f32 0.0, %v773
    %v775 = vpop.f32.mrf.mxu0
    %v776 = vpop.f32.mrf.mxu0
    %v777 = vadd.f32 0.0, %v776
    %v778 = vpop.f32.mrf.mxu0
    %779 = vmatprep.mubr.bf16.mxu0 0
    %780 = vmatmul.mubr.bf16.gmra.mxu0 %v719
    %v781 = vpop.f32.mrf.mxu0
    %v782 = vadd.f32 0.0, %v781
    %v783 = vpop.f32.mrf.mxu0
    %v784 = vpop.f32.mrf.mxu0
    %v785 = vadd.f32 0.0, %v784
    %v786 = vpop.f32.mrf.mxu0
    %787 = vmatprep.mubr.bf16.mxu0 0
    %788 = vmatmul.mubr.bf16.gmra.mxu0 %v722
    %v789 = vpop.f32.mrf.mxu0
    %v790 = vadd.f32 0.0, %v789
    %v791 = vpop.f32.mrf.mxu0
    %v792 = vpop.f32.mrf.mxu0
    %v793 = vadd.f32 0.0, %v792
    %v794 = vpop.f32.mrf.mxu0
    %795 = vmatprep.mubr.bf16.mxu0 0
    %796 = vmatmul.mubr.bf16.gmra.mxu0 %v725
    %v797 = vpop.f32.mrf.mxu0
    %v798 = vadd.f32 0.0, %v797
    %v799 = vpop.f32.mrf.mxu0
    %v800 = vpop.f32.mrf.mxu0
    %v801 = vadd.f32 0.0, %v800
    %v802 = vpop.f32.mrf.mxu0
    %803 = vdwg.mxu0
    %v804 = vmul.f32 %v774, 0.17677669
    %v805 = vmul.f32 %v777, 0.17677669
    %v806 = vmul.f32 %v782, 0.17677669
    %v807 = vmul.f32 %v785, 0.17677669
    %v808 = vmul.f32 %v790, 0.17677669
    %v809 = vmul.f32 %v793, 0.17677669
    %v810 = vmul.f32 %v798, 0.17677669
    %v811 = vmul.f32 %v801, 0.17677669
    %v812 = vadd.f32 %v804, %v81
    %v813 = vadd.f32 %v805, %v82
    %v814 = vadd.f32 %v806, %v83
    %v815 = vadd.f32 %v807, %v84
    %v816 = vadd.f32 %v808, %v85
    %v817 = vadd.f32 %v809, %v86
    %v818 = vadd.f32 %v810, %v87
    %v819 = vadd.f32 %v811, %v88
    %v820 = vsel %vm529, %v812, -inf
    %821 = vmax.xlane.f32.xlu0 %v820
    %v822 = vpop.xlane.xlu0 %821
    %v823 = vsel %vm529, %v813, -inf
    %824 = vmax.xlane.f32.xlu0 %v823
    %v825 = vpop.xlane.xlu0 %824
    %v826 = vsel %vm529, %v814, -inf
    %827 = vmax.xlane.f32.xlu0 %v826
    %v828 = vpop.xlane.xlu0 %827
    %v829 = vsel %vm529, %v815, -inf
    %830 = vmax.xlane.f32.xlu0 %v829
    %v831 = vpop.xlane.xlu0 %830
    %v832 = vsel %vm529, %v816, -inf
    %833 = vmax.xlane.f32.xlu0 %v832
    %v834 = vpop.xlane.xlu0 %833
    %v835 = vsel %vm529, %v817, -inf
    %836 = vmax.xlane.f32.xlu0 %v835
    %v837 = vpop.xlane.xlu0 %836
    %v838 = vsel %vm529, %v818, -inf
    %839 = vmax.xlane.f32.xlu0 %v838
    %v840 = vpop.xlane.xlu0 %839
    %v841 = vsel %vm529, %v819, -inf
    %842 = vmax.xlane.f32.xlu0 %v841
    %v843 = vpop.xlane.xlu0 %842
    %v844 = vsub.f32 %v812, %v822
    %v845 = vsub.f32 %v813, %v825
    %v846 = vsub.f32 %v814, %v828
    %v847 = vsub.f32 %v815, %v831
    %v848 = vsub.f32 %v816, %v834
    %v849 = vsub.f32 %v817, %v837
    %v850 = vsub.f32 %v818, %v840
    %v851 = vsub.f32 %v819, %v843
    %v852 = vmul.f32 %v844, 1.442695
    %v853 = vpow.pop %v852
    %v854 = vmul.f32 %v845, 1.442695
    %v855 = vpow.pop %v854
    %v856 = vmul.f32 %v846, 1.442695
    %v857 = vpow.pop %v856
    %v858 = vmul.f32 %v847, 1.442695
    %v859 = vpow.pop %v858
    %v860 = vmul.f32 %v848, 1.442695
    %v861 = vpow.pop %v860
    %v862 = vmul.f32 %v849, 1.442695
    %v863 = vpow.pop %v862
    %v864 = vmul.f32 %v850, 1.442695
    %v865 = vpow.pop %v864
    %v866 = vmul.f32 %v851, 1.442695
    %v867 = vpow.pop %v866
    %v868 = vsel %vm529, %v853, 0.0
    %869 = vadd.xlane.f32.xlu0 %v868
    %v870 = vpop.xlane.xlu0 %869
    %v871 = vsel %vm529, %v855, 0.0
    %872 = vadd.xlane.f32.xlu0 %v871
    %v873 = vpop.xlane.xlu0 %872
    %v874 = vsel %vm529, %v857, 0.0
    %875 = vadd.xlane.f32.xlu0 %v874
    %v876 = vpop.xlane.xlu0 %875
    %v877 = vsel %vm529, %v859, 0.0
    %878 = vadd.xlane.f32.xlu0 %v877
    %v879 = vpop.xlane.xlu0 %878
    %v880 = vsel %vm529, %v861, 0.0
    %881 = vadd.xlane.f32.xlu0 %v880
    %v882 = vpop.xlane.xlu0 %881
    %v883 = vsel %vm529, %v863, 0.0
    %884 = vadd.xlane.f32.xlu0 %v883
    %v885 = vpop.xlane.xlu0 %884
    %v886 = vsel %vm529, %v865, 0.0
    %887 = vadd.xlane.f32.xlu0 %v886
    %v888 = vpop.xlane.xlu0 %887
    %v889 = vsel %vm529, %v867, 0.0
    %890 = vadd.xlane.f32.xlu0 %v889
    %v891 = vpop.xlane.xlu0 %890
    %v892 = vrcp.pop %v870
    %v893 = vmul.f32 %v853, %v892
    %v894 = vrcp.pop %v873
    %v895 = vmul.f32 %v855, %v894
    %v896 = vrcp.pop %v876
    %v897 = vmul.f32 %v857, %v896
    %v898 = vrcp.pop %v879
    %v899 = vmul.f32 %v859, %v898
    %v900 = vrcp.pop %v882
    %v901 = vmul.f32 %v861, %v900
    %v902 = vrcp.pop %v885
    %v903 = vmul.f32 %v863, %v902
    %v904 = vrcp.pop %v888
    %v905 = vmul.f32 %v865, %v904
    %v906 = vrcp.pop %v891
    %v907 = vmul.f32 %v867, %v906
    %v908 = vpack.c.bf16 %v895, %v893
    %v909 = vpack.c.bf16 %v899, %v897
    %v910 = vpack.c.bf16 %v903, %v901
    %v911 = vpack.c.bf16 %v907, %v905
    %916 = vrot.lane.b32.xlu0 %v407, 96
    %v917 = vpop.permute.xlu0 %916
    %918 = vrot.lane.b32.xlu0 %v408, 96
    %v919 = vpop.permute.xlu0 %918
    %920 = vrot.lane.b32.xlu0 %v409, 96
    %v921 = vpop.permute.xlu0 %920
    %922 = vrot.lane.b32.xlu0 %v410, 96
    %v923 = vpop.permute.xlu0 %922
    %v929 = vsel %vm529, %v908, 0
    %v932 = vsel %vm529, %v909, 0
    %v935 = vsel %vm529, %v910, 0
    %v938 = vsel %vm529, %v911, 0
    %940 = vmatprep.subr.bf16.mxu0 0
    %941 = vmatpush1.bf16.msra.mxu0 0
    %942 = vmatprep.subr.bf16.mxu0 0
    %943 = vmatpush1.bf16.msra.mxu0 0
    %944 = vmatprep.subr.bf16.mxu0 0
    %945 = vmatpush1.bf16.msra.mxu0 0
    %946 = vmatprep.subr.bf16.mxu0 0
    %947 = vmatpush1.bf16.msra.mxu0 0
    %948 = vmatprep.subr.bf16.mxu0 0
    %949 = vmatpush1.bf16.msra.mxu0 %v923
    %950 = vmatprep.subr.bf16.mxu0 0
    %951 = vmatpush1.bf16.msra.mxu0 %v921
    %952 = vmatprep.subr.bf16.mxu0 0
    %953 = vmatpush1.bf16.msra.mxu0 %v919
    %954 = vmatprep.subr.bf16.mxu0 0
    %955 = vmatpush1.bf16.msra.mxu0 %v917
    %956 = vmatprep.subr.bf16.mxu0 0
    %957 = vmatpush2.bf16.msra.mxu0 0
    %958 = vmatprep.subr.bf16.mxu0 0
    %959 = vmatpush2.bf16.msra.mxu0 0
    %960 = vmatprep.subr.bf16.mxu0 0
    %961 = vmatpush2.bf16.msra.mxu0 0
    %962 = vmatprep.subr.bf16.mxu0 0
    %963 = vmatpush2.bf16.msra.mxu0 0
    %964 = vmatprep.subr.bf16.mxu0 0
    %965 = vmatpush2.bf16.msra.mxu0 0
    %966 = vmatprep.subr.bf16.mxu0 0
    %967 = vmatpush2.bf16.msra.mxu0 0
    %968 = vmatprep.subr.bf16.mxu0 0
    %969 = vmatpush2.bf16.msra.mxu0 0
    %970 = vmatprep.subr.bf16.mxu0 0
    %971 = vmatpush2.bf16.msra.mxu0 0
    %972 = vmatprep.mubr.bf16.mxu0 0
    %973 = vmatmul.mubr.bf16.gmra.mxu0 %v929
    %v974 = vpop.f32.mrf.mxu0
    %v975 = vadd.f32 0.0, %v974
    %v976 = vpop.f32.mrf.mxu0
    %v977 = vpop.f32.mrf.mxu0
    %v978 = vadd.f32 0.0, %v977
    %v979 = vpop.f32.mrf.mxu0
    %980 = vmatprep.mubr.bf16.mxu0 0
    %981 = vmatmul.mubr.bf16.gmra.mxu0 %v932
    %v982 = vpop.f32.mrf.mxu0
    %v983 = vadd.f32 0.0, %v982
    %v984 = vpop.f32.mrf.mxu0
    %v985 = vpop.f32.mrf.mxu0
    %v986 = vadd.f32 0.0, %v985
    %v987 = vpop.f32.mrf.mxu0
    %988 = vmatprep.mubr.bf16.mxu0 0
    %989 = vmatmul.mubr.bf16.gmra.mxu0 %v935
    %v990 = vpop.f32.mrf.mxu0
    %v991 = vadd.f32 0.0, %v990
    %v992 = vpop.f32.mrf.mxu0
    %v993 = vpop.f32.mrf.mxu0
    %v994 = vadd.f32 0.0, %v993
    %v995 = vpop.f32.mrf.mxu0
    %996 = vmatprep.mubr.bf16.mxu0 0
    %997 = vmatmul.mubr.bf16.gmra.mxu0 %v938
    %v998 = vpop.f32.mrf.mxu0
    %v999 = vadd.f32 0.0, %v998
    %v1000 = vpop.f32.mrf.mxu0
    %v1001 = vpop.f32.mrf.mxu0
    %v1002 = vadd.f32 0.0, %v1001
    %v1003 = vpop.f32.mrf.mxu0
    %1004 = vdwg.mxu0
    %1013 = vrot.lane.b32.xlu0 %v975, 32
    %v1014 = vpop.permute.xlu0 %1013
    %1015 = vrot.lane.b32.xlu0 %v978, 32
    %v1016 = vpop.permute.xlu0 %1015
    %1017 = vrot.lane.b32.xlu0 %v983, 32
    %v1018 = vpop.permute.xlu0 %1017
    %1019 = vrot.lane.b32.xlu0 %v986, 32
    %v1020 = vpop.permute.xlu0 %1019
    %1021 = vrot.lane.b32.xlu0 %v991, 32
    %v1022 = vpop.permute.xlu0 %1021
    %1023 = vrot.lane.b32.xlu0 %v994, 32
    %v1024 = vpop.permute.xlu0 %1023
    %1025 = vrot.lane.b32.xlu0 %v999, 32
    %v1026 = vpop.permute.xlu0 %1025
    %1027 = vrot.lane.b32.xlu0 %v1002, 32
    %v1028 = vpop.permute.xlu0 %1027
    %v1037 = vsel %vm423, %v669, %v1014
    %v1038 = vsel %vm423, %v672, %v1016
    %v1039 = vsel %vm423, %v677, %v1018
    %v1040 = vsel %vm423, %v680, %v1020
    %v1041 = vsel %vm423, %v685, %v1022
    %v1042 = vsel %vm423, %v688, %v1024
    %v1043 = vsel %vm423, %v693, %v1026
    %v1044 = vsel %vm423, %v696, %v1028
    %v1045 = vpack.c.bf16 %v1038, %v1037
    %v1046 = vpack.c.bf16 %v1040, %v1039
    %v1047 = vpack.c.bf16 %v1042, %v1041
    %v1048 = vpack.c.bf16 %v1044, %v1043
    %v1049 = vld [vmem:[%s7] sm:$0xf]
    %v1050 = vld [vmem:[%s7 + $0x4] sm:$0xf]
    %v1051 = vld [vmem:[%s7 + $0x8] sm:$0xf]
    %v1052 = vld [vmem:[%s7 + $0xc] sm:$0xf]
    %v1053 = vld [vmem:[%s7 + $0x10] sm:$0xf]
    %v1054 = vld [vmem:[%s7 + $0x14] sm:$0xf]
    %v1055 = vld [vmem:[%s7 + $0x18] sm:$0xf]
    %v1056 = vld [vmem:[%s7 + $0x1c] sm:$0xf]
    %v1057 = vld [vmem:[%s8] sm:$0x1]
    %v1059 = vlaneseq
    %v1060 = vshrl.u32 %v1059, 7
    %v1061 = vsub.s32 0, %v1060
    %v1062 = vrot.slane %v1057, %v1061
    %v1072 = vunpack.c.l.b16 %v1049
    %v1073 = vunpack.c.l.b16 %v1050
    %v1074 = vunpack.c.l.b16 %v1051
    %v1075 = vunpack.c.l.b16 %v1052
    %v1076 = vunpack.c.l.b16 %v1053
    %v1077 = vunpack.c.l.b16 %v1054
    %v1078 = vunpack.c.l.b16 %v1055
    %v1079 = vunpack.c.l.b16 %v1056
    %v1080 = vpack.c.b16 %v1073, %v1072
    %v1081 = vpack.c.b16 %v1075, %v1074
    %v1082 = vpack.c.b16 %v1077, %v1076
    %v1083 = vpack.c.b16 %v1079, %v1078
    %v1089 = vsel %vm529, %v1045, 0
    %v1092 = vsel %vm529, %v1046, 0
    %v1095 = vsel %vm529, %v1047, 0
    %v1098 = vsel %vm529, %v1048, 0
    %1100 = vmatprep.subr.bf16.mxu0 0
    %1101 = vmatpush1.bf16.msra.mxu0 0
    %1102 = vmatprep.subr.bf16.mxu0 0
    %1103 = vmatpush1.bf16.msra.mxu0 0
    %1104 = vmatprep.subr.bf16.mxu0 0
    %1105 = vmatpush1.bf16.msra.mxu0 0
    %1106 = vmatprep.subr.bf16.mxu0 0
    %1107 = vmatpush1.bf16.msra.mxu0 0
    %1108 = vmatprep.subr.bf16.mxu0 0
    %1109 = vmatpush1.bf16.msra.mxu0 %v1083
    %1110 = vmatprep.subr.bf16.mxu0 0
    %1111 = vmatpush1.bf16.msra.mxu0 %v1082
    %1112 = vmatprep.subr.bf16.mxu0 0
    %1113 = vmatpush1.bf16.msra.mxu0 %v1081
    %1114 = vmatprep.subr.bf16.mxu0 0
    %1115 = vmatpush1.bf16.msra.mxu0 %v1080
    %1116 = vmatprep.subr.bf16.mxu0 0
    %1117 = vmatpush2.bf16.msra.mxu0 0
    %1118 = vmatprep.subr.bf16.mxu0 0
    %1119 = vmatpush2.bf16.msra.mxu0 0
    %1120 = vmatprep.subr.bf16.mxu0 0
    %1121 = vmatpush2.bf16.msra.mxu0 0
    %1122 = vmatprep.subr.bf16.mxu0 0
    %1123 = vmatpush2.bf16.msra.mxu0 0
    %1124 = vmatprep.subr.bf16.mxu0 0
    %1125 = vmatpush2.bf16.msra.mxu0 0
    %1126 = vmatprep.subr.bf16.mxu0 0
    %1127 = vmatpush2.bf16.msra.mxu0 0
    %1128 = vmatprep.subr.bf16.mxu0 0
    %1129 = vmatpush2.bf16.msra.mxu0 0
    %1130 = vmatprep.subr.bf16.mxu0 0
    %1131 = vmatpush2.bf16.msra.mxu0 0
    %1132 = vmatprep.mubr.bf16.mxu0 0
    %1133 = vmatmul.mubr.bf16.gmra.mxu0 %v1089
    %v1134 = vpop.f32.mrf.mxu0
    %v1135 = vadd.f32 %v1062, %v1134
    %v1136 = vpop.f32.mrf.mxu0
    %v1137 = vpop.f32.mrf.mxu0
    %v1138 = vadd.f32 %v1062, %v1137
    %v1139 = vpop.f32.mrf.mxu0
    %1140 = vmatprep.mubr.bf16.mxu0 0
    %1141 = vmatmul.mubr.bf16.gmra.mxu0 %v1092
    %v1142 = vpop.f32.mrf.mxu0
    %v1143 = vadd.f32 %v1062, %v1142
    %v1144 = vpop.f32.mrf.mxu0
    %v1145 = vpop.f32.mrf.mxu0
    %v1146 = vadd.f32 %v1062, %v1145
    %v1147 = vpop.f32.mrf.mxu0
    %1148 = vmatprep.mubr.bf16.mxu0 0
    %1149 = vmatmul.mubr.bf16.gmra.mxu0 %v1095
    %v1150 = vpop.f32.mrf.mxu0
    %v1151 = vadd.f32 %v1062, %v1150
    %v1152 = vpop.f32.mrf.mxu0
    %v1153 = vpop.f32.mrf.mxu0
    %v1154 = vadd.f32 %v1062, %v1153
    %v1155 = vpop.f32.mrf.mxu0
    %1156 = vmatprep.mubr.bf16.mxu0 0
    %1157 = vmatmul.mubr.bf16.gmra.mxu0 %v1098
    %v1158 = vpop.f32.mrf.mxu0
    %v1159 = vadd.f32 %v1062, %v1158
    %v1160 = vpop.f32.mrf.mxu0
    %v1161 = vpop.f32.mrf.mxu0
    %v1162 = vadd.f32 %v1062, %v1161
    %v1163 = vpop.f32.mrf.mxu0
    %1164 = vdwg.mxu0
    %v1165 = vadd.f32 %v210, %v1135
    %v1166 = vadd.f32 %v211, %v1138
    %v1167 = vadd.f32 %v212, %v1143
    %v1168 = vadd.f32 %v213, %v1146
    %v1169 = vadd.f32 %v214, %v1151
    %v1170 = vadd.f32 %v215, %v1154
    %v1171 = vadd.f32 %v216, %v1159
    %v1172 = vadd.f32 %v217, %v1162
    %v1173 = vld [vmem:[%s9] sm:$0x1]
    %v1174 = vld [vmem:[%s10] sm:$0x1]
    %1175 = vadd.xlane.f32.xlu0 %v1165
    %v1176 = vpop.xlane.xlu0 %1175
    %1177 = vadd.xlane.f32.xlu0 %v1166
    %v1178 = vpop.xlane.xlu0 %1177
    %1179 = vadd.xlane.f32.xlu0 %v1167
    %v1180 = vpop.xlane.xlu0 %1179
    %1181 = vadd.xlane.f32.xlu0 %v1168
    %v1182 = vpop.xlane.xlu0 %1181
    %1183 = vadd.xlane.f32.xlu0 %v1169
    %v1184 = vpop.xlane.xlu0 %1183
    %1185 = vadd.xlane.f32.xlu0 %v1170
    %v1186 = vpop.xlane.xlu0 %1185
    %1187 = vadd.xlane.f32.xlu0 %v1171
    %v1188 = vpop.xlane.xlu0 %1187
    %1189 = vadd.xlane.f32.xlu0 %v1172
    %v1190 = vpop.xlane.xlu0 %1189
    %v1191 = vrcp.pop 128.0
    %v1192 = vmul.f32 %v1176, %v1191
    %v1193 = vmul.f32 %v1178, %v1191
    %v1194 = vmul.f32 %v1180, %v1191
    %v1195 = vmul.f32 %v1182, %v1191
    %v1196 = vmul.f32 %v1184, %v1191
    %v1197 = vmul.f32 %v1186, %v1191
    %v1198 = vmul.f32 %v1188, %v1191
    %v1199 = vmul.f32 %v1190, %v1191
    %v1200 = vsub.f32 %v1165, %v1192
    %v1201 = vsub.f32 %v1166, %v1193
    %v1202 = vsub.f32 %v1167, %v1194
    %v1203 = vsub.f32 %v1168, %v1195
    %v1204 = vsub.f32 %v1169, %v1196
    %v1205 = vsub.f32 %v1170, %v1197
    %v1206 = vsub.f32 %v1171, %v1198
    %v1207 = vsub.f32 %v1172, %v1199
    %v1208 = vmul.f32 %v1200, %v1200
    %v1209 = vmul.f32 %v1201, %v1201
    %v1210 = vmul.f32 %v1202, %v1202
    %v1211 = vmul.f32 %v1203, %v1203
    %v1212 = vmul.f32 %v1204, %v1204
    %v1213 = vmul.f32 %v1205, %v1205
    %v1214 = vmul.f32 %v1206, %v1206
    %v1215 = vmul.f32 %v1207, %v1207
    %1216 = vadd.xlane.f32.xlu0 %v1208
    %v1217 = vpop.xlane.xlu0 %1216
    %1218 = vadd.xlane.f32.xlu0 %v1209
    %v1219 = vpop.xlane.xlu0 %1218
    %1220 = vadd.xlane.f32.xlu0 %v1210
    %v1221 = vpop.xlane.xlu0 %1220
    %1222 = vadd.xlane.f32.xlu0 %v1211
    %v1223 = vpop.xlane.xlu0 %1222
    %1224 = vadd.xlane.f32.xlu0 %v1212
    %v1225 = vpop.xlane.xlu0 %1224
    %1226 = vadd.xlane.f32.xlu0 %v1213
    %v1227 = vpop.xlane.xlu0 %1226
    %1228 = vadd.xlane.f32.xlu0 %v1214
    %v1229 = vpop.xlane.xlu0 %1228
    %1230 = vadd.xlane.f32.xlu0 %v1215
    %v1231 = vpop.xlane.xlu0 %1230
    %v1232 = vmul.f32 %v1217, %v1191
    %v1233 = vmul.f32 %v1219, %v1191
    %v1234 = vmul.f32 %v1221, %v1191
    %v1235 = vmul.f32 %v1223, %v1191
    %v1236 = vmul.f32 %v1225, %v1191
    %v1237 = vmul.f32 %v1227, %v1191
    %v1238 = vmul.f32 %v1229, %v1191
    %v1239 = vmul.f32 %v1231, %v1191
    %v1240 = vadd.f32 %v1232, 1e-05
    %v1241 = vadd.f32 %v1233, 1e-05
    %v1242 = vadd.f32 %v1234, 1e-05
    %v1243 = vadd.f32 %v1235, 1e-05
    %v1244 = vadd.f32 %v1236, 1e-05
    %v1245 = vadd.f32 %v1237, 1e-05
    %v1246 = vadd.f32 %v1238, 1e-05
    %v1247 = vadd.f32 %v1239, 1e-05
    %v1248 = vrsqrt.pop %v1240
    %v1249 = vrsqrt.pop %v1241
    %v1250 = vrsqrt.pop %v1242
    %v1251 = vrsqrt.pop %v1243
    %v1252 = vrsqrt.pop %v1244
    %v1253 = vrsqrt.pop %v1245
    %v1254 = vrsqrt.pop %v1246
    %v1255 = vrsqrt.pop %v1247
    %v1256 = vmul.f32 %v1200, %v1248
    %v1257 = vmul.f32 %v1201, %v1249
    %v1258 = vmul.f32 %v1202, %v1250
    %v1259 = vmul.f32 %v1203, %v1251
    %v1260 = vmul.f32 %v1204, %v1252
    %v1261 = vmul.f32 %v1205, %v1253
    %v1262 = vmul.f32 %v1206, %v1254
    %v1263 = vmul.f32 %v1207, %v1255
    %v1265 = vlaneseq
    %v1266 = vshrl.u32 %v1265, 7
    %v1267 = vsub.s32 0, %v1266
    %v1268 = vrot.slane %v1173, %v1267
    %v1270 = vmul.f32 %v1256, %v1268
    %v1271 = vmul.f32 %v1257, %v1268
    %v1272 = vmul.f32 %v1258, %v1268
    %v1273 = vmul.f32 %v1259, %v1268
    %v1274 = vmul.f32 %v1260, %v1268
    %v1275 = vmul.f32 %v1261, %v1268
    %v1276 = vmul.f32 %v1262, %v1268
    %v1277 = vmul.f32 %v1263, %v1268
    %v1279 = vlaneseq
    %v1280 = vshrl.u32 %v1279, 7
    %v1281 = vsub.s32 0, %v1280
    %v1282 = vrot.slane %v1174, %v1281
    %v1284 = vadd.f32 %v1270, %v1282
    %v1285 = vadd.f32 %v1271, %v1282
    %v1286 = vadd.f32 %v1272, %v1282
    %v1287 = vadd.f32 %v1273, %v1282
    %v1288 = vadd.f32 %v1274, %v1282
    %v1289 = vadd.f32 %v1275, %v1282
    %v1290 = vadd.f32 %v1276, %v1282
    %v1291 = vadd.f32 %v1277, %v1282
    %v1292 = vpack.c.bf16 %v1285, %v1284
    %v1293 = vpack.c.bf16 %v1287, %v1286
    %v1294 = vpack.c.bf16 %v1289, %v1288
    %v1295 = vpack.c.bf16 %v1291, %v1290
    %v1296 = vld [vmem:[%s11] sm:$0xf]
    %v1297 = vld [vmem:[%s11 + $0x4] sm:$0xf]
    %v1298 = vld [vmem:[%s11 + $0x8] sm:$0xf]
    %v1299 = vld [vmem:[%s11 + $0xc] sm:$0xf]
    %v1300 = vld [vmem:[%s11 + $0x10] sm:$0xf]
    %v1301 = vld [vmem:[%s11 + $0x14] sm:$0xf]
    %v1302 = vld [vmem:[%s11 + $0x18] sm:$0xf]
    %v1303 = vld [vmem:[%s11 + $0x1c] sm:$0xf]
    %v1304 = vld [vmem:[%s11 + $0x20] sm:$0xf]
    %v1305 = vld [vmem:[%s11 + $0x24] sm:$0xf]
    %v1306 = vld [vmem:[%s11 + $0x28] sm:$0xf]
    %v1307 = vld [vmem:[%s11 + $0x2c] sm:$0xf]
    %v1308 = vld [vmem:[%s11 + $0x30] sm:$0xf]
    %v1309 = vld [vmem:[%s11 + $0x34] sm:$0xf]
    %v1310 = vld [vmem:[%s11 + $0x38] sm:$0xf]
    %v1311 = vld [vmem:[%s11 + $0x3c] sm:$0xf]
    %v1312 = vld [vmem:[%s12] sm:$0x1]
    %v1314 = vlaneseq
    %v1315 = vshrl.u32 %v1314, 7
    %v1316 = vsub.s32 0, %v1315
    %v1317 = vrot.slane %v1312, %v1316
    %v1335 = vunpack.c.l.b16 %v1296
    %v1336 = vunpack.c.l.b16 %v1297
    %v1337 = vunpack.c.l.b16 %v1298
    %v1338 = vunpack.c.l.b16 %v1299
    %v1339 = vunpack.c.l.b16 %v1300
    %v1340 = vunpack.c.l.b16 %v1301
    %v1341 = vunpack.c.l.b16 %v1302
    %v1342 = vunpack.c.l.b16 %v1303
    %v1343 = vunpack.c.l.b16 %v1304
    %v1344 = vunpack.c.l.b16 %v1305
    %v1345 = vunpack.c.l.b16 %v1306
    %v1346 = vunpack.c.l.b16 %v1307
    %v1347 = vunpack.c.l.b16 %v1308
    %v1348 = vunpack.c.l.b16 %v1309
    %v1349 = vunpack.c.l.b16 %v1310
    %v1350 = vunpack.c.l.b16 %v1311
    %v1351 = vpack.c.b16 %v1336, %v1335
    %v1352 = vpack.c.b16 %v1338, %v1337
    %v1353 = vpack.c.b16 %v1340, %v1339
    %v1354 = vpack.c.b16 %v1342, %v1341
    %v1355 = vpack.c.b16 %v1344, %v1343
    %v1356 = vpack.c.b16 %v1346, %v1345
    %v1357 = vpack.c.b16 %v1348, %v1347
    %v1358 = vpack.c.b16 %v1350, %v1349
    %1367 = vmatprep.subr.bf16.mxu0 0
    %1368 = vmatpush1.bf16.msra.mxu0 %v1358
    %1369 = vmatprep.subr.bf16.mxu0 0
    %1370 = vmatpush1.bf16.msra.mxu0 %v1357
    %1371 = vmatprep.subr.bf16.mxu0 0
    %1372 = vmatpush1.bf16.msra.mxu0 %v1356
    %1373 = vmatprep.subr.bf16.mxu0 0
    %1374 = vmatpush1.bf16.msra.mxu0 %v1355
    %1375 = vmatprep.subr.bf16.mxu0 0
    %1376 = vmatpush1.bf16.msra.mxu0 %v1354
    %1377 = vmatprep.subr.bf16.mxu0 0
    %1378 = vmatpush1.bf16.msra.mxu0 %v1353
    %1379 = vmatprep.subr.bf16.mxu0 0
    %1380 = vmatpush1.bf16.msra.mxu0 %v1352
    %1381 = vmatprep.subr.bf16.mxu0 0
    %1382 = vmatpush1.bf16.msra.mxu0 %v1351
    %1383 = vmatprep.subr.bf16.mxu0 0
    %1384 = vmatpush2.bf16.msra.mxu0 0
    %1385 = vmatprep.subr.bf16.mxu0 0
    %1386 = vmatpush2.bf16.msra.mxu0 0
    %1387 = vmatprep.subr.bf16.mxu0 0
    %1388 = vmatpush2.bf16.msra.mxu0 0
    %1389 = vmatprep.subr.bf16.mxu0 0
    %1390 = vmatpush2.bf16.msra.mxu0 0
    %1391 = vmatprep.subr.bf16.mxu0 0
    %1392 = vmatpush2.bf16.msra.mxu0 0
    %1393 = vmatprep.subr.bf16.mxu0 0
    %1394 = vmatpush2.bf16.msra.mxu0 0
    %1395 = vmatprep.subr.bf16.mxu0 0
    %1396 = vmatpush2.bf16.msra.mxu0 0
    %1397 = vmatprep.subr.bf16.mxu0 0
    %1398 = vmatpush2.bf16.msra.mxu0 0
    %1399 = vmatprep.mubr.bf16.mxu0 0
    %1400 = vmatmul.mubr.bf16.gmra.mxu0 %v1292
    %v1401 = vpop.f32.mrf.mxu0
    %v1402 = vadd.f32 %v1317, %v1401
    %v1403 = vpop.f32.mrf.mxu0
    %v1404 = vpop.f32.mrf.mxu0
    %v1405 = vadd.f32 %v1317, %v1404
    %v1406 = vpop.f32.mrf.mxu0
    %1407 = vmatprep.mubr.bf16.mxu0 0
    %1408 = vmatmul.mubr.bf16.gmra.mxu0 %v1293
    %v1409 = vpop.f32.mrf.mxu0
    %v1410 = vadd.f32 %v1317, %v1409
    %v1411 = vpop.f32.mrf.mxu0
    %v1412 = vpop.f32.mrf.mxu0
    %v1413 = vadd.f32 %v1317, %v1412
    %v1414 = vpop.f32.mrf.mxu0
    %1415 = vmatprep.mubr.bf16.mxu0 0
    %1416 = vmatmul.mubr.bf16.gmra.mxu0 %v1294
    %v1417 = vpop.f32.mrf.mxu0
    %v1418 = vadd.f32 %v1317, %v1417
    %v1419 = vpop.f32.mrf.mxu0
    %v1420 = vpop.f32.mrf.mxu0
    %v1421 = vadd.f32 %v1317, %v1420
    %v1422 = vpop.f32.mrf.mxu0
    %1423 = vmatprep.mubr.bf16.mxu0 0
    %1424 = vmatmul.mubr.bf16.gmra.mxu0 %v1295
    %v1425 = vpop.f32.mrf.mxu0
    %v1426 = vadd.f32 %v1317, %v1425
    %v1427 = vpop.f32.mrf.mxu0
    %v1428 = vpop.f32.mrf.mxu0
    %v1429 = vadd.f32 %v1317, %v1428
    %v1430 = vpop.f32.mrf.mxu0
    %1431 = vdwg.mxu0
    %v1432 = vmax.f32 %v1402, 0.0
    %v1433 = vmax.f32 %v1405, 0.0
    %v1434 = vmax.f32 %v1410, 0.0
    %v1435 = vmax.f32 %v1413, 0.0
    %v1436 = vmax.f32 %v1418, 0.0
    %v1437 = vmax.f32 %v1421, 0.0
    %v1438 = vmax.f32 %v1426, 0.0
    %v1439 = vmax.f32 %v1429, 0.0
    %v1440 = vpack.c.bf16 %v1433, %v1432
    %v1441 = vpack.c.bf16 %v1435, %v1434
    %v1442 = vpack.c.bf16 %v1437, %v1436
    %v1443 = vpack.c.bf16 %v1439, %v1438
    %v1444 = vld [vmem:[%s13] sm:$0xf]
    %v1445 = vld [vmem:[%s13 + $0x4] sm:$0xf]
    %v1446 = vld [vmem:[%s13 + $0x8] sm:$0xf]
    %v1447 = vld [vmem:[%s13 + $0xc] sm:$0xf]
    %v1448 = vld [vmem:[%s13 + $0x10] sm:$0xf]
    %v1449 = vld [vmem:[%s13 + $0x14] sm:$0xf]
    %v1450 = vld [vmem:[%s13 + $0x18] sm:$0xf]
    %v1451 = vld [vmem:[%s13 + $0x1c] sm:$0xf]
    %v1452 = vld [vmem:[%s13 + $0x20] sm:$0xf]
    %v1453 = vld [vmem:[%s13 + $0x24] sm:$0xf]
    %v1454 = vld [vmem:[%s13 + $0x28] sm:$0xf]
    %v1455 = vld [vmem:[%s13 + $0x2c] sm:$0xf]
    %v1456 = vld [vmem:[%s13 + $0x30] sm:$0xf]
    %v1457 = vld [vmem:[%s13 + $0x34] sm:$0xf]
    %v1458 = vld [vmem:[%s13 + $0x38] sm:$0xf]
    %v1459 = vld [vmem:[%s13 + $0x3c] sm:$0xf]
    %v1460 = vld [vmem:[%s14] sm:$0x1]
    %v1462 = vlaneseq
    %v1463 = vshrl.u32 %v1462, 7
    %v1464 = vsub.s32 0, %v1463
    %v1465 = vrot.slane %v1460, %v1464
    %v1483 = vunpack.c.l.b16 %v1444
    %v1484 = vunpack.c.l.b16 %v1445
    %v1485 = vunpack.c.l.b16 %v1446
    %v1486 = vunpack.c.l.b16 %v1447
    %v1487 = vunpack.c.l.b16 %v1448
    %v1488 = vunpack.c.l.b16 %v1449
    %v1489 = vunpack.c.l.b16 %v1450
    %v1490 = vunpack.c.l.b16 %v1451
    %v1491 = vunpack.c.l.b16 %v1452
    %v1492 = vunpack.c.l.b16 %v1453
    %v1493 = vunpack.c.l.b16 %v1454
    %v1494 = vunpack.c.l.b16 %v1455
    %v1495 = vunpack.c.l.b16 %v1456
    %v1496 = vunpack.c.l.b16 %v1457
    %v1497 = vunpack.c.l.b16 %v1458
    %v1498 = vunpack.c.l.b16 %v1459
    %v1499 = vpack.c.b16 %v1484, %v1483
    %v1500 = vpack.c.b16 %v1486, %v1485
    %v1501 = vpack.c.b16 %v1488, %v1487
    %v1502 = vpack.c.b16 %v1490, %v1489
    %v1503 = vpack.c.b16 %v1492, %v1491
    %v1504 = vpack.c.b16 %v1494, %v1493
    %v1505 = vpack.c.b16 %v1496, %v1495
    %v1506 = vpack.c.b16 %v1498, %v1497
    %1515 = vmatprep.subr.bf16.mxu0 0
    %1516 = vmatpush1.bf16.msra.mxu0 %v1506
    %1517 = vmatprep.subr.bf16.mxu0 0
    %1518 = vmatpush1.bf16.msra.mxu0 %v1505
    %1519 = vmatprep.subr.bf16.mxu0 0
    %1520 = vmatpush1.bf16.msra.mxu0 %v1504
    %1521 = vmatprep.subr.bf16.mxu0 0
    %1522 = vmatpush1.bf16.msra.mxu0 %v1503
    %1523 = vmatprep.subr.bf16.mxu0 0
    %1524 = vmatpush1.bf16.msra.mxu0 %v1502
    %1525 = vmatprep.subr.bf16.mxu0 0
    %1526 = vmatpush1.bf16.msra.mxu0 %v1501
    %1527 = vmatprep.subr.bf16.mxu0 0
    %1528 = vmatpush1.bf16.msra.mxu0 %v1500
    %1529 = vmatprep.subr.bf16.mxu0 0
    %1530 = vmatpush1.bf16.msra.mxu0 %v1499
    %1531 = vmatprep.subr.bf16.mxu0 0
    %1532 = vmatpush2.bf16.msra.mxu0 0
    %1533 = vmatprep.subr.bf16.mxu0 0
    %1534 = vmatpush2.bf16.msra.mxu0 0
    %1535 = vmatprep.subr.bf16.mxu0 0
    %1536 = vmatpush2.bf16.msra.mxu0 0
    %1537 = vmatprep.subr.bf16.mxu0 0
    %1538 = vmatpush2.bf16.msra.mxu0 0
    %1539 = vmatprep.subr.bf16.mxu0 0
    %1540 = vmatpush2.bf16.msra.mxu0 0
    %1541 = vmatprep.subr.bf16.mxu0 0
    %1542 = vmatpush2.bf16.msra.mxu0 0
    %1543 = vmatprep.subr.bf16.mxu0 0
    %1544 = vmatpush2.bf16.msra.mxu0 0
    %1545 = vmatprep.subr.bf16.mxu0 0
    %1546 = vmatpush2.bf16.msra.mxu0 0
    %1547 = vmatprep.mubr.bf16.mxu0 0
    %1548 = vmatmul.mubr.bf16.gmra.mxu0 %v1440
    %v1549 = vpop.f32.mrf.mxu0
    %v1550 = vadd.f32 %v1465, %v1549
    %v1551 = vpop.f32.mrf.mxu0
    %v1552 = vpop.f32.mrf.mxu0
    %v1553 = vadd.f32 %v1465, %v1552
    %v1554 = vpop.f32.mrf.mxu0
    %1555 = vmatprep.mubr.bf16.mxu0 0
    %1556 = vmatmul.mubr.bf16.gmra.mxu0 %v1441
    %v1557 = vpop.f32.mrf.mxu0
    %v1558 = vadd.f32 %v1465, %v1557
    %v1559 = vpop.f32.mrf.mxu0
    %v1560 = vpop.f32.mrf.mxu0
    %v1561 = vadd.f32 %v1465, %v1560
    %v1562 = vpop.f32.mrf.mxu0
    %1563 = vmatprep.mubr.bf16.mxu0 0
    %1564 = vmatmul.mubr.bf16.gmra.mxu0 %v1442
    %v1565 = vpop.f32.mrf.mxu0
    %v1566 = vadd.f32 %v1465, %v1565
    %v1567 = vpop.f32.mrf.mxu0
    %v1568 = vpop.f32.mrf.mxu0
    %v1569 = vadd.f32 %v1465, %v1568
    %v1570 = vpop.f32.mrf.mxu0
    %1571 = vmatprep.mubr.bf16.mxu0 0
    %1572 = vmatmul.mubr.bf16.gmra.mxu0 %v1443
    %v1573 = vpop.f32.mrf.mxu0
    %v1574 = vadd.f32 %v1465, %v1573
    %v1575 = vpop.f32.mrf.mxu0
    %v1576 = vpop.f32.mrf.mxu0
    %v1577 = vadd.f32 %v1465, %v1576
    %v1578 = vpop.f32.mrf.mxu0
    %1579 = vdwg.mxu0
    %v1580 = vmax.f32 %v1550, 0.0
    %v1581 = vmax.f32 %v1553, 0.0
    %v1582 = vmax.f32 %v1558, 0.0
    %v1583 = vmax.f32 %v1561, 0.0
    %v1584 = vmax.f32 %v1566, 0.0
    %v1585 = vmax.f32 %v1569, 0.0
    %v1586 = vmax.f32 %v1574, 0.0
    %v1587 = vmax.f32 %v1577, 0.0
    %v1588 = vadd.f32 %v1284, %v1580
    %v1589 = vadd.f32 %v1285, %v1581
    %v1590 = vadd.f32 %v1286, %v1582
    %v1591 = vadd.f32 %v1287, %v1583
    %v1592 = vadd.f32 %v1288, %v1584
    %v1593 = vadd.f32 %v1289, %v1585
    %v1594 = vadd.f32 %v1290, %v1586
    %v1595 = vadd.f32 %v1291, %v1587
    %v1596 = vld [vmem:[%s15] sm:$0x1]
    %v1597 = vld [vmem:[%s16] sm:$0x1]
    %1598 = vadd.xlane.f32.xlu0 %v1588
    %v1599 = vpop.xlane.xlu0 %1598
    %1600 = vadd.xlane.f32.xlu0 %v1589
    %v1601 = vpop.xlane.xlu0 %1600
    %1602 = vadd.xlane.f32.xlu0 %v1590
    %v1603 = vpop.xlane.xlu0 %1602
    %1604 = vadd.xlane.f32.xlu0 %v1591
    %v1605 = vpop.xlane.xlu0 %1604
    %1606 = vadd.xlane.f32.xlu0 %v1592
    %v1607 = vpop.xlane.xlu0 %1606
    %1608 = vadd.xlane.f32.xlu0 %v1593
    %v1609 = vpop.xlane.xlu0 %1608
    %1610 = vadd.xlane.f32.xlu0 %v1594
    %v1611 = vpop.xlane.xlu0 %1610
    %1612 = vadd.xlane.f32.xlu0 %v1595
    %v1613 = vpop.xlane.xlu0 %1612
    %v1614 = vmul.f32 %v1599, %v1191
    %v1615 = vmul.f32 %v1601, %v1191
    %v1616 = vmul.f32 %v1603, %v1191
    %v1617 = vmul.f32 %v1605, %v1191
    %v1618 = vmul.f32 %v1607, %v1191
    %v1619 = vmul.f32 %v1609, %v1191
    %v1620 = vmul.f32 %v1611, %v1191
    %v1621 = vmul.f32 %v1613, %v1191
    %v1622 = vsub.f32 %v1588, %v1614
    %v1623 = vsub.f32 %v1589, %v1615
    %v1624 = vsub.f32 %v1590, %v1616
    %v1625 = vsub.f32 %v1591, %v1617
    %v1626 = vsub.f32 %v1592, %v1618
    %v1627 = vsub.f32 %v1593, %v1619
    %v1628 = vsub.f32 %v1594, %v1620
    %v1629 = vsub.f32 %v1595, %v1621
    %v1630 = vmul.f32 %v1622, %v1622
    %v1631 = vmul.f32 %v1623, %v1623
    %v1632 = vmul.f32 %v1624, %v1624
    %v1633 = vmul.f32 %v1625, %v1625
    %v1634 = vmul.f32 %v1626, %v1626
    %v1635 = vmul.f32 %v1627, %v1627
    %v1636 = vmul.f32 %v1628, %v1628
    %v1637 = vmul.f32 %v1629, %v1629
    %1638 = vadd.xlane.f32.xlu0 %v1630
    %v1639 = vpop.xlane.xlu0 %1638
    %1640 = vadd.xlane.f32.xlu0 %v1631
    %v1641 = vpop.xlane.xlu0 %1640
    %1642 = vadd.xlane.f32.xlu0 %v1632
    %v1643 = vpop.xlane.xlu0 %1642
    %1644 = vadd.xlane.f32.xlu0 %v1633
    %v1645 = vpop.xlane.xlu0 %1644
    %1646 = vadd.xlane.f32.xlu0 %v1634
    %v1647 = vpop.xlane.xlu0 %1646
    %1648 = vadd.xlane.f32.xlu0 %v1635
    %v1649 = vpop.xlane.xlu0 %1648
    %1650 = vadd.xlane.f32.xlu0 %v1636
    %v1651 = vpop.xlane.xlu0 %1650
    %1652 = vadd.xlane.f32.xlu0 %v1637
    %v1653 = vpop.xlane.xlu0 %1652
    %v1654 = vmul.f32 %v1639, %v1191
    %v1655 = vmul.f32 %v1641, %v1191
    %v1656 = vmul.f32 %v1643, %v1191
    %v1657 = vmul.f32 %v1645, %v1191
    %v1658 = vmul.f32 %v1647, %v1191
    %v1659 = vmul.f32 %v1649, %v1191
    %v1660 = vmul.f32 %v1651, %v1191
    %v1661 = vmul.f32 %v1653, %v1191
    %v1662 = vadd.f32 %v1654, 1e-05
    %v1663 = vadd.f32 %v1655, 1e-05
    %v1664 = vadd.f32 %v1656, 1e-05
    %v1665 = vadd.f32 %v1657, 1e-05
    %v1666 = vadd.f32 %v1658, 1e-05
    %v1667 = vadd.f32 %v1659, 1e-05
    %v1668 = vadd.f32 %v1660, 1e-05
    %v1669 = vadd.f32 %v1661, 1e-05
    %v1670 = vrsqrt.pop %v1662
    %v1671 = vrsqrt.pop %v1663
    %v1672 = vrsqrt.pop %v1664
    %v1673 = vrsqrt.pop %v1665
    %v1674 = vrsqrt.pop %v1666
    %v1675 = vrsqrt.pop %v1667
    %v1676 = vrsqrt.pop %v1668
    %v1677 = vrsqrt.pop %v1669
    %v1678 = vmul.f32 %v1622, %v1670
    %v1679 = vmul.f32 %v1623, %v1671
    %v1680 = vmul.f32 %v1624, %v1672
    %v1681 = vmul.f32 %v1625, %v1673
    %v1682 = vmul.f32 %v1626, %v1674
    %v1683 = vmul.f32 %v1627, %v1675
    %v1684 = vmul.f32 %v1628, %v1676
    %v1685 = vmul.f32 %v1629, %v1677
    %v1687 = vlaneseq
    %v1688 = vshrl.u32 %v1687, 7
    %v1689 = vsub.s32 0, %v1688
    %v1690 = vrot.slane %v1596, %v1689
    %v1692 = vmul.f32 %v1678, %v1690
    %v1693 = vmul.f32 %v1679, %v1690
    %v1694 = vmul.f32 %v1680, %v1690
    %v1695 = vmul.f32 %v1681, %v1690
    %v1696 = vmul.f32 %v1682, %v1690
    %v1697 = vmul.f32 %v1683, %v1690
    %v1698 = vmul.f32 %v1684, %v1690
    %v1699 = vmul.f32 %v1685, %v1690
    %v1701 = vlaneseq
    %v1702 = vshrl.u32 %v1701, 7
    %v1703 = vsub.s32 0, %v1702
    %v1704 = vrot.slane %v1597, %v1703
    %v1706 = vadd.f32 %v1692, %v1704
    %v1707 = vadd.f32 %v1693, %v1704
    %v1708 = vadd.f32 %v1694, %v1704
    %v1709 = vadd.f32 %v1695, %v1704
    %v1710 = vadd.f32 %v1696, %v1704
    %v1711 = vadd.f32 %v1697, %v1704
    %v1712 = vadd.f32 %v1698, %v1704
    %v1713 = vadd.f32 %v1699, %v1704
    %v1714 = vpack.c.bf16 %v1707, %v1706
    %v1715 = vpack.c.bf16 %v1709, %v1708
    %v1716 = vpack.c.bf16 %v1711, %v1710
    %v1717 = vpack.c.bf16 %v1713, %v1712
    %s1718 = scalar_lea.vmem %s5, 128
    %v1719 = vld [vmem:[%s1718] sm:$0xff]
    %v1720 = vld [vmem:[%s1718 + $0x8] sm:$0xff]
    %v1721 = vld [vmem:[%s1718 + $0x10] sm:$0xff]
    %v1722 = vld [vmem:[%s1718 + $0x18] sm:$0xff]
    %v1723 = vld [vmem:[%s1718 + $0x20] sm:$0xff]
    %v1724 = vld [vmem:[%s1718 + $0x28] sm:$0xff]
    %v1725 = vld [vmem:[%s1718 + $0x30] sm:$0xff]
    %v1726 = vld [vmem:[%s1718 + $0x38] sm:$0xff]
    %v1727 = vld [vmem:[%s1718 + $0x40] sm:$0xff]
    %v1728 = vld [vmem:[%s1718 + $0x48] sm:$0xff]
    %v1729 = vld [vmem:[%s1718 + $0x50] sm:$0xff]
    %v1730 = vld [vmem:[%s1718 + $0x58] sm:$0xff]
    %v1731 = vld [vmem:[%s1718 + $0x60] sm:$0xff]
    %v1732 = vld [vmem:[%s1718 + $0x68] sm:$0xff]
    %v1733 = vld [vmem:[%s1718 + $0x70] sm:$0xff]
    %v1734 = vld [vmem:[%s1718 + $0x78] sm:$0xff]
    %s1735 = scalar_lea.vmem %s6, 2
    %v1736 = vld [vmem:[%s1735] sm:$0x3]
    %v1738 = vlaneseq
    %v1739 = vshrl.u32 %v1738, 7
    %v1740 = vsub.s32 0, %v1739
    %v1741 = vrot.slane %v1736, %v1740
    %v1742 = vlaneseq
    %v1743 = vshrl.u32 %v1742, 7
    %v1744 = vsub.s32 1, %v1743
    %v1745 = vrot.slane %v1736, %v1744
    %v1764 = vunpack.c.l.b16 %v1719
    %v1765 = vunpack.c.h.b16 %v1719
    %v1766 = vunpack.c.l.b16 %v1720
    %v1767 = vunpack.c.h.b16 %v1720
    %v1768 = vunpack.c.l.b16 %v1721
    %v1769 = vunpack.c.h.b16 %v1721
    %v1770 = vunpack.c.l.b16 %v1722
    %v1771 = vunpack.c.h.b16 %v1722
    %v1772 = vunpack.c.l.b16 %v1723
    %v1773 = vunpack.c.h.b16 %v1723
    %v1774 = vunpack.c.l.b16 %v1724
    %v1775 = vunpack.c.h.b16 %v1724
    %v1776 = vunpack.c.l.b16 %v1725
    %v1777 = vunpack.c.h.b16 %v1725
    %v1778 = vunpack.c.l.b16 %v1726
    %v1779 = vunpack.c.h.b16 %v1726
    %v1780 = vunpack.c.l.b16 %v1727
    %v1781 = vunpack.c.h.b16 %v1727
    %v1782 = vunpack.c.l.b16 %v1728
    %v1783 = vunpack.c.h.b16 %v1728
    %v1784 = vunpack.c.l.b16 %v1729
    %v1785 = vunpack.c.h.b16 %v1729
    %v1786 = vunpack.c.l.b16 %v1730
    %v1787 = vunpack.c.h.b16 %v1730
    %v1788 = vunpack.c.l.b16 %v1731
    %v1789 = vunpack.c.h.b16 %v1731
    %v1790 = vunpack.c.l.b16 %v1732
    %v1791 = vunpack.c.h.b16 %v1732
    %v1792 = vunpack.c.l.b16 %v1733
    %v1793 = vunpack.c.h.b16 %v1733
    %v1794 = vunpack.c.l.b16 %v1734
    %v1795 = vunpack.c.h.b16 %v1734
    %v1796 = vpack.c.b16 %v1766, %v1764
    %v1797 = vpack.c.b16 %v1767, %v1765
    %v1798 = vpack.c.b16 %v1770, %v1768
    %v1799 = vpack.c.b16 %v1771, %v1769
    %v1800 = vpack.c.b16 %v1774, %v1772
    %v1801 = vpack.c.b16 %v1775, %v1773
    %v1802 = vpack.c.b16 %v1778, %v1776
    %v1803 = vpack.c.b16 %v1779, %v1777
    %v1804 = vpack.c.b16 %v1782, %v1780
    %v1805 = vpack.c.b16 %v1783, %v1781
    %v1806 = vpack.c.b16 %v1786, %v1784
    %v1807 = vpack.c.b16 %v1787, %v1785
    %v1808 = vpack.c.b16 %v1790, %v1788
    %v1809 = vpack.c.b16 %v1791, %v1789
    %v1810 = vpack.c.b16 %v1794, %v1792
    %v1811 = vpack.c.b16 %v1795, %v1793
    %1828 = vmatprep.subr.bf16.mxu0 %v1811
    %1829 = vmatpush1.bf16.msra.mxu0 %v1810
    %1830 = vmatprep.subr.bf16.mxu0 %v1809
    %1831 = vmatpush1.bf16.msra.mxu0 %v1808
    %1832 = vmatprep.subr.bf16.mxu0 %v1807
    %1833 = vmatpush1.bf16.msra.mxu0 %v1806
    %1834 = vmatprep.subr.bf16.mxu0 %v1805
    %1835 = vmatpush1.bf16.msra.mxu0 %v1804
    %1836 = vmatprep.subr.bf16.mxu0 %v1803
    %1837 = vmatpush1.bf16.msra.mxu0 %v1802
    %1838 = vmatprep.subr.bf16.mxu0 %v1801
    %1839 = vmatpush1.bf16.msra.mxu0 %v1800
    %1840 = vmatprep.subr.bf16.mxu0 %v1799
    %1841 = vmatpush1.bf16.msra.mxu0 %v1798
    %1842 = vmatprep.subr.bf16.mxu0 %v1797
    %1843 = vmatpush1.bf16.msra.mxu0 %v1796
    %1844 = vmatprep.subr.bf16.mxu0 0
    %1845 = vmatpush2.bf16.msra.mxu0 0
    %1846 = vmatprep.subr.bf16.mxu0 0
    %1847 = vmatpush2.bf16.msra.mxu0 0
    %1848 = vmatprep.subr.bf16.mxu0 0
    %1849 = vmatpush2.bf16.msra.mxu0 0
    %1850 = vmatprep.subr.bf16.mxu0 0
    %1851 = vmatpush2.bf16.msra.mxu0 0
    %1852 = vmatprep.subr.bf16.mxu0 0
    %1853 = vmatpush2.bf16.msra.mxu0 0
    %1854 = vmatprep.subr.bf16.mxu0 0
    %1855 = vmatpush2.bf16.msra.mxu0 0
    %1856 = vmatprep.subr.bf16.mxu0 0
    %1857 = vmatpush2.bf16.msra.mxu0 0
    %1858 = vmatprep.subr.bf16.mxu0 0
    %1859 = vmatpush2.bf16.msra.mxu0 0
    %1860 = vmatprep.mubr.bf16.mxu0 0
    %1861 = vmatmul.mubr.bf16.gmra.mxu0 %v1714
    %v1862 = vpop.f32.mrf.mxu0
    %v1863 = vadd.f32 %v1741, %v1862
    %v1864 = vpop.f32.mrf.mxu0
    %v1865 = vadd.f32 %v1745, %v1864
    %v1866 = vpop.f32.mrf.mxu0
    %v1867 = vadd.f32 %v1741, %v1866
    %v1868 = vpop.f32.mrf.mxu0
    %v1869 = vadd.f32 %v1745, %v1868
    %1870 = vmatprep.mubr.bf16.mxu0 0
    %1871 = vmatmul.mubr.bf16.gmra.mxu0 %v1715
    %v1872 = vpop.f32.mrf.mxu0
    %v1873 = vadd.f32 %v1741, %v1872
    %v1874 = vpop.f32.mrf.mxu0
    %v1875 = vadd.f32 %v1745, %v1874
    %v1876 = vpop.f32.mrf.mxu0
    %v1877 = vadd.f32 %v1741, %v1876
    %v1878 = vpop.f32.mrf.mxu0
    %v1879 = vadd.f32 %v1745, %v1878
    %1880 = vmatprep.mubr.bf16.mxu0 0
    %1881 = vmatmul.mubr.bf16.gmra.mxu0 %v1716
    %v1882 = vpop.f32.mrf.mxu0
    %v1883 = vadd.f32 %v1741, %v1882
    %v1884 = vpop.f32.mrf.mxu0
    %v1885 = vadd.f32 %v1745, %v1884
    %v1886 = vpop.f32.mrf.mxu0
    %v1887 = vadd.f32 %v1741, %v1886
    %v1888 = vpop.f32.mrf.mxu0
    %v1889 = vadd.f32 %v1745, %v1888
    %1890 = vmatprep.mubr.bf16.mxu0 0
    %1891 = vmatmul.mubr.bf16.gmra.mxu0 %v1717
    %v1892 = vpop.f32.mrf.mxu0
    %v1893 = vadd.f32 %v1741, %v1892
    %v1894 = vpop.f32.mrf.mxu0
    %v1895 = vadd.f32 %v1745, %v1894
    %v1896 = vpop.f32.mrf.mxu0
    %v1897 = vadd.f32 %v1741, %v1896
    %v1898 = vpop.f32.mrf.mxu0
    %v1899 = vadd.f32 %v1745, %v1898
    %1900 = vdwg.mxu0
    %v1901 = vpack.c.bf16 %v1867, %v1863
    %v1902 = vpack.c.bf16 %v1877, %v1873
    %v1903 = vpack.c.bf16 %v1887, %v1883
    %v1904 = vpack.c.bf16 %v1897, %v1893
    %v1905 = vpack.c.bf16 %v1869, %v1865
    %v1906 = vpack.c.bf16 %v1879, %v1875
    %v1907 = vpack.c.bf16 %v1889, %v1885
    %v1908 = vpack.c.bf16 %v1899, %v1895
    %1913 = vrot.lane.b32.xlu0 %v1901, 64
    %v1914 = vpop.permute.xlu0 %1913
    %1915 = vrot.lane.b32.xlu0 %v1902, 64
    %v1916 = vpop.permute.xlu0 %1915
    %1917 = vrot.lane.b32.xlu0 %v1903, 64
    %v1918 = vpop.permute.xlu0 %1917
    %1919 = vrot.lane.b32.xlu0 %v1904, 64
    %v1920 = vpop.permute.xlu0 %1919
    %v1922 = vsel %vm423, %v1901, 0
    %v1925 = vsel %vm423, %v1902, 0
    %v1928 = vsel %vm423, %v1903, 0
    %v1931 = vsel %vm423, %v1904, 0
    %v1934 = vsel %vm423, %v1914, 0
    %v1937 = vsel %vm423, %v1916, 0
    %v1940 = vsel %vm423, %v1918, 0
    %v1943 = vsel %vm423, %v1920, 0
    %1945 = vmatprep.subr.bf16.mxu0 0
    %1946 = vmatpush1.bf16.xpose.msra.mxu0 0
    %1947 = vmatprep.subr.bf16.mxu0 0
    %1948 = vmatpush1.bf16.xpose.msra.mxu0 0
    %1949 = vmatprep.subr.bf16.mxu0 0
    %1950 = vmatpush1.bf16.xpose.msra.mxu0 0
    %1951 = vmatprep.subr.bf16.mxu0 0
    %1952 = vmatpush1.bf16.xpose.msra.mxu0 0
    %1953 = vmatprep.subr.bf16.mxu0 0
    %1954 = vmatpush1.bf16.xpose.msra.mxu0 %v1943
    %1955 = vmatprep.subr.bf16.mxu0 0
    %1956 = vmatpush1.bf16.xpose.msra.mxu0 %v1940
    %1957 = vmatprep.subr.bf16.mxu0 0
    %1958 = vmatpush1.bf16.xpose.msra.mxu0 %v1937
    %1959 = vmatprep.subr.bf16.mxu0 0
    %1960 = vmatpush1.bf16.xpose.msra.mxu0 %v1934
    %1961 = vmatprep.subr.bf16.mxu0 0
    %1962 = vmatpush2.bf16.xpose.msra.mxu0 0
    %1963 = vmatprep.subr.bf16.mxu0 0
    %1964 = vmatpush2.bf16.xpose.msra.mxu0 0
    %1965 = vmatprep.subr.bf16.mxu0 0
    %1966 = vmatpush2.bf16.xpose.msra.mxu0 0
    %1967 = vmatprep.subr.bf16.mxu0 0
    %1968 = vmatpush2.bf16.xpose.msra.mxu0 0
    %1969 = vmatprep.subr.bf16.mxu0 0
    %1970 = vmatpush2.bf16.xpose.msra.mxu0 0
    %1971 = vmatprep.subr.bf16.mxu0 0
    %1972 = vmatpush2.bf16.xpose.msra.mxu0 0
    %1973 = vmatprep.subr.bf16.mxu0 0
    %1974 = vmatpush2.bf16.xpose.msra.mxu0 0
    %1975 = vmatprep.subr.bf16.mxu0 0
    %1976 = vmatpush2.bf16.xpose.msra.mxu0 0
    %1977 = vmatprep.mubr.bf16.mxu0 0
    %1978 = vmatmul.mubr.bf16.gmra.mxu0 %v1922
    %v1979 = vpop.f32.mrf.mxu0
    %v1980 = vadd.f32 0.0, %v1979
    %v1981 = vpop.f32.mrf.mxu0
    %v1982 = vpop.f32.mrf.mxu0
    %v1983 = vadd.f32 0.0, %v1982
    %v1984 = vpop.f32.mrf.mxu0
    %1985 = vmatprep.mubr.bf16.mxu0 0
    %1986 = vmatmul.mubr.bf16.gmra.mxu0 %v1925
    %v1987 = vpop.f32.mrf.mxu0
    %v1988 = vadd.f32 0.0, %v1987
    %v1989 = vpop.f32.mrf.mxu0
    %v1990 = vpop.f32.mrf.mxu0
    %v1991 = vadd.f32 0.0, %v1990
    %v1992 = vpop.f32.mrf.mxu0
    %1993 = vmatprep.mubr.bf16.mxu0 0
    %1994 = vmatmul.mubr.bf16.gmra.mxu0 %v1928
    %v1995 = vpop.f32.mrf.mxu0
    %v1996 = vadd.f32 0.0, %v1995
    %v1997 = vpop.f32.mrf.mxu0
    %v1998 = vpop.f32.mrf.mxu0
    %v1999 = vadd.f32 0.0, %v1998
    %v2000 = vpop.f32.mrf.mxu0
    %2001 = vmatprep.mubr.bf16.mxu0 0
    %2002 = vmatmul.mubr.bf16.gmra.mxu0 %v1931
    %v2003 = vpop.f32.mrf.mxu0
    %v2004 = vadd.f32 0.0, %v2003
    %v2005 = vpop.f32.mrf.mxu0
    %v2006 = vpop.f32.mrf.mxu0
    %v2007 = vadd.f32 0.0, %v2006
    %v2008 = vpop.f32.mrf.mxu0
    %2009 = vdwg.mxu0
    %v2010 = vmul.f32 %v1980, 0.17677669
    %v2011 = vmul.f32 %v1983, 0.17677669
    %v2012 = vmul.f32 %v1988, 0.17677669
    %v2013 = vmul.f32 %v1991, 0.17677669
    %v2014 = vmul.f32 %v1996, 0.17677669
    %v2015 = vmul.f32 %v1999, 0.17677669
    %v2016 = vmul.f32 %v2004, 0.17677669
    %v2017 = vmul.f32 %v2007, 0.17677669
    %v2018 = vadd.f32 %v2010, %v81
    %v2019 = vadd.f32 %v2011, %v82
    %v2020 = vadd.f32 %v2012, %v83
    %v2021 = vadd.f32 %v2013, %v84
    %v2022 = vadd.f32 %v2014, %v85
    %v2023 = vadd.f32 %v2015, %v86
    %v2024 = vadd.f32 %v2016, %v87
    %v2025 = vadd.f32 %v2017, %v88
    %v2026 = vsel %vm529, %v2018, -inf
    %2027 = vmax.xlane.f32.xlu0 %v2026
    %v2028 = vpop.xlane.xlu0 %2027
    %v2029 = vsel %vm529, %v2019, -inf
    %2030 = vmax.xlane.f32.xlu0 %v2029
    %v2031 = vpop.xlane.xlu0 %2030
    %v2032 = vsel %vm529, %v2020, -inf
    %2033 = vmax.xlane.f32.xlu0 %v2032
    %v2034 = vpop.xlane.xlu0 %2033
    %v2035 = vsel %vm529, %v2021, -inf
    %2036 = vmax.xlane.f32.xlu0 %v2035
    %v2037 = vpop.xlane.xlu0 %2036
    %v2038 = vsel %vm529, %v2022, -inf
    %2039 = vmax.xlane.f32.xlu0 %v2038
    %v2040 = vpop.xlane.xlu0 %2039
    %v2041 = vsel %vm529, %v2023, -inf
    %2042 = vmax.xlane.f32.xlu0 %v2041
    %v2043 = vpop.xlane.xlu0 %2042
    %v2044 = vsel %vm529, %v2024, -inf
    %2045 = vmax.xlane.f32.xlu0 %v2044
    %v2046 = vpop.xlane.xlu0 %2045
    %v2047 = vsel %vm529, %v2025, -inf
    %2048 = vmax.xlane.f32.xlu0 %v2047
    %v2049 = vpop.xlane.xlu0 %2048
    %v2050 = vsub.f32 %v2018, %v2028
    %v2051 = vsub.f32 %v2019, %v2031
    %v2052 = vsub.f32 %v2020, %v2034
    %v2053 = vsub.f32 %v2021, %v2037
    %v2054 = vsub.f32 %v2022, %v2040
    %v2055 = vsub.f32 %v2023, %v2043
    %v2056 = vsub.f32 %v2024, %v2046
    %v2057 = vsub.f32 %v2025, %v2049
    %v2058 = vmul.f32 %v2050, 1.442695
    %v2059 = vpow.pop %v2058
    %v2060 = vmul.f32 %v2051, 1.442695
    %v2061 = vpow.pop %v2060
    %v2062 = vmul.f32 %v2052, 1.442695
    %v2063 = vpow.pop %v2062
    %v2064 = vmul.f32 %v2053, 1.442695
    %v2065 = vpow.pop %v2064
    %v2066 = vmul.f32 %v2054, 1.442695
    %v2067 = vpow.pop %v2066
    %v2068 = vmul.f32 %v2055, 1.442695
    %v2069 = vpow.pop %v2068
    %v2070 = vmul.f32 %v2056, 1.442695
    %v2071 = vpow.pop %v2070
    %v2072 = vmul.f32 %v2057, 1.442695
    %v2073 = vpow.pop %v2072
    %v2074 = vsel %vm529, %v2059, 0.0
    %2075 = vadd.xlane.f32.xlu0 %v2074
    %v2076 = vpop.xlane.xlu0 %2075
    %v2077 = vsel %vm529, %v2061, 0.0
    %2078 = vadd.xlane.f32.xlu0 %v2077
    %v2079 = vpop.xlane.xlu0 %2078
    %v2080 = vsel %vm529, %v2063, 0.0
    %2081 = vadd.xlane.f32.xlu0 %v2080
    %v2082 = vpop.xlane.xlu0 %2081
    %v2083 = vsel %vm529, %v2065, 0.0
    %2084 = vadd.xlane.f32.xlu0 %v2083
    %v2085 = vpop.xlane.xlu0 %2084
    %v2086 = vsel %vm529, %v2067, 0.0
    %2087 = vadd.xlane.f32.xlu0 %v2086
    %v2088 = vpop.xlane.xlu0 %2087
    %v2089 = vsel %vm529, %v2069, 0.0
    %2090 = vadd.xlane.f32.xlu0 %v2089
    %v2091 = vpop.xlane.xlu0 %2090
    %v2092 = vsel %vm529, %v2071, 0.0
    %2093 = vadd.xlane.f32.xlu0 %v2092
    %v2094 = vpop.xlane.xlu0 %2093
    %v2095 = vsel %vm529, %v2073, 0.0
    %2096 = vadd.xlane.f32.xlu0 %v2095
    %v2097 = vpop.xlane.xlu0 %2096
    %v2098 = vrcp.pop %v2076
    %v2099 = vmul.f32 %v2059, %v2098
    %v2100 = vrcp.pop %v2079
    %v2101 = vmul.f32 %v2061, %v2100
    %v2102 = vrcp.pop %v2082
    %v2103 = vmul.f32 %v2063, %v2102
    %v2104 = vrcp.pop %v2085
    %v2105 = vmul.f32 %v2065, %v2104
    %v2106 = vrcp.pop %v2088
    %v2107 = vmul.f32 %v2067, %v2106
    %v2108 = vrcp.pop %v2091
    %v2109 = vmul.f32 %v2069, %v2108
    %v2110 = vrcp.pop %v2094
    %v2111 = vmul.f32 %v2071, %v2110
    %v2112 = vrcp.pop %v2097
    %v2113 = vmul.f32 %v2073, %v2112
    %v2114 = vpack.c.bf16 %v2101, %v2099
    %v2115 = vpack.c.bf16 %v2105, %v2103
    %v2116 = vpack.c.bf16 %v2109, %v2107
    %v2117 = vpack.c.bf16 %v2113, %v2111
    %v2119 = vsel %vm529, %v2114, 0
    %v2122 = vsel %vm529, %v2115, 0
    %v2125 = vsel %vm529, %v2116, 0
    %v2128 = vsel %vm529, %v2117, 0
    %2130 = vmatprep.subr.bf16.mxu0 0
    %2131 = vmatpush1.bf16.msra.mxu0 0
    %2132 = vmatprep.subr.bf16.mxu0 0
    %2133 = vmatpush1.bf16.msra.mxu0 0
    %2134 = vmatprep.subr.bf16.mxu0 0
    %2135 = vmatpush1.bf16.msra.mxu0 0
    %2136 = vmatprep.subr.bf16.mxu0 0
    %2137 = vmatpush1.bf16.msra.mxu0 0
    %2138 = vmatprep.subr.bf16.mxu0 0
    %2139 = vmatpush1.bf16.msra.mxu0 %v1908
    %2140 = vmatprep.subr.bf16.mxu0 0
    %2141 = vmatpush1.bf16.msra.mxu0 %v1907
    %2142 = vmatprep.subr.bf16.mxu0 0
    %2143 = vmatpush1.bf16.msra.mxu0 %v1906
    %2144 = vmatprep.subr.bf16.mxu0 0
    %2145 = vmatpush1.bf16.msra.mxu0 %v1905
    %2146 = vmatprep.subr.bf16.mxu0 0
    %2147 = vmatpush2.bf16.msra.mxu0 0
    %2148 = vmatprep.subr.bf16.mxu0 0
    %2149 = vmatpush2.bf16.msra.mxu0 0
    %2150 = vmatprep.subr.bf16.mxu0 0
    %2151 = vmatpush2.bf16.msra.mxu0 0
    %2152 = vmatprep.subr.bf16.mxu0 0
    %2153 = vmatpush2.bf16.msra.mxu0 0
    %2154 = vmatprep.subr.bf16.mxu0 0
    %2155 = vmatpush2.bf16.msra.mxu0 0
    %2156 = vmatprep.subr.bf16.mxu0 0
    %2157 = vmatpush2.bf16.msra.mxu0 0
    %2158 = vmatprep.subr.bf16.mxu0 0
    %2159 = vmatpush2.bf16.msra.mxu0 0
    %2160 = vmatprep.subr.bf16.mxu0 0
    %2161 = vmatpush2.bf16.msra.mxu0 0
    %2162 = vmatprep.mubr.bf16.mxu0 0
    %2163 = vmatmul.mubr.bf16.gmra.mxu0 %v2119
    %v2164 = vpop.f32.mrf.mxu0
    %v2165 = vadd.f32 0.0, %v2164
    %v2166 = vpop.f32.mrf.mxu0
    %v2167 = vpop.f32.mrf.mxu0
    %v2168 = vadd.f32 0.0, %v2167
    %v2169 = vpop.f32.mrf.mxu0
    %2170 = vmatprep.mubr.bf16.mxu0 0
    %2171 = vmatmul.mubr.bf16.gmra.mxu0 %v2122
    %v2172 = vpop.f32.mrf.mxu0
    %v2173 = vadd.f32 0.0, %v2172
    %v2174 = vpop.f32.mrf.mxu0
    %v2175 = vpop.f32.mrf.mxu0
    %v2176 = vadd.f32 0.0, %v2175
    %v2177 = vpop.f32.mrf.mxu0
    %2178 = vmatprep.mubr.bf16.mxu0 0
    %2179 = vmatmul.mubr.bf16.gmra.mxu0 %v2125
    %v2180 = vpop.f32.mrf.mxu0
    %v2181 = vadd.f32 0.0, %v2180
    %v2182 = vpop.f32.mrf.mxu0
    %v2183 = vpop.f32.mrf.mxu0
    %v2184 = vadd.f32 0.0, %v2183
    %v2185 = vpop.f32.mrf.mxu0
    %2186 = vmatprep.mubr.bf16.mxu0 0
    %2187 = vmatmul.mubr.bf16.gmra.mxu0 %v2128
    %v2188 = vpop.f32.mrf.mxu0
    %v2189 = vadd.f32 0.0, %v2188
    %v2190 = vpop.f32.mrf.mxu0
    %v2191 = vpop.f32.mrf.mxu0
    %v2192 = vadd.f32 0.0, %v2191
    %v2193 = vpop.f32.mrf.mxu0
    %2194 = vdwg.mxu0
    %2195 = vrot.lane.b32.xlu0 %v1901, 96
    %v2196 = vpop.permute.xlu0 %2195
    %2197 = vrot.lane.b32.xlu0 %v1902, 96
    %v2198 = vpop.permute.xlu0 %2197
    %2199 = vrot.lane.b32.xlu0 %v1903, 96
    %v2200 = vpop.permute.xlu0 %2199
    %2201 = vrot.lane.b32.xlu0 %v1904, 96
    %v2202 = vpop.permute.xlu0 %2201
    %2203 = vrot.lane.b32.xlu0 %v1901, 32
    %v2204 = vpop.permute.xlu0 %2203
    %2205 = vrot.lane.b32.xlu0 %v1902, 32
    %v2206 = vpop.permute.xlu0 %2205
    %2207 = vrot.lane.b32.xlu0 %v1903, 32
    %v2208 = vpop.permute.xlu0 %2207
    %2209 = vrot.lane.b32.xlu0 %v1904, 32
    %v2210 = vpop.permute.xlu0 %2209
    %v2212 = vsel %vm423, %v2196, 0
    %v2215 = vsel %vm423, %v2198, 0
    %v2218 = vsel %vm423, %v2200, 0
    %v2221 = vsel %vm423, %v2202, 0
    %v2224 = vsel %vm423, %v2204, 0
    %v2227 = vsel %vm423, %v2206, 0
    %v2230 = vsel %vm423, %v2208, 0
    %v2233 = vsel %vm423, %v2210, 0
    %2235 = vmatprep.subr.bf16.mxu0 0
    %2236 = vmatpush1.bf16.xpose.msra.mxu0 0
    %2237 = vmatprep.subr.bf16.mxu0 0
    %2238 = vmatpush1.bf16.xpose.msra.mxu0 0
    %2239 = vmatprep.subr.bf16.mxu0 0
    %2240 = vmatpush1.bf16.xpose.msra.mxu0 0
    %2241 = vmatprep.subr.bf16.mxu0 0
    %2242 = vmatpush1.bf16.xpose.msra.mxu0 0
    %2243 = vmatprep.subr.bf16.mxu0 0
    %2244 = vmatpush1.bf16.xpose.msra.mxu0 %v2233
    %2245 = vmatprep.subr.bf16.mxu0 0
    %2246 = vmatpush1.bf16.xpose.msra.mxu0 %v2230
    %2247 = vmatprep.subr.bf16.mxu0 0
    %2248 = vmatpush1.bf16.xpose.msra.mxu0 %v2227
    %2249 = vmatprep.subr.bf16.mxu0 0
    %2250 = vmatpush1.bf16.xpose.msra.mxu0 %v2224
    %2251 = vmatprep.subr.bf16.mxu0 0
    %2252 = vmatpush2.bf16.xpose.msra.mxu0 0
    %2253 = vmatprep.subr.bf16.mxu0 0
    %2254 = vmatpush2.bf16.xpose.msra.mxu0 0
    %2255 = vmatprep.subr.bf16.mxu0 0
    %2256 = vmatpush2.bf16.xpose.msra.mxu0 0
    %2257 = vmatprep.subr.bf16.mxu0 0
    %2258 = vmatpush2.bf16.xpose.msra.mxu0 0
    %2259 = vmatprep.subr.bf16.mxu0 0
    %2260 = vmatpush2.bf16.xpose.msra.mxu0 0
    %2261 = vmatprep.subr.bf16.mxu0 0
    %2262 = vmatpush2.bf16.xpose.msra.mxu0 0
    %2263 = vmatprep.subr.bf16.mxu0 0
    %2264 = vmatpush2.bf16.xpose.msra.mxu0 0
    %2265 = vmatprep.subr.bf16.mxu0 0
    %2266 = vmatpush2.bf16.xpose.msra.mxu0 0
    %2267 = vmatprep.mubr.bf16.mxu0 0
    %2268 = vmatmul.mubr.bf16.gmra.mxu0 %v2212
    %v2269 = vpop.f32.mrf.mxu0
    %v2270 = vadd.f32 0.0, %v2269
    %v2271 = vpop.f32.mrf.mxu0
    %v2272 = vpop.f32.mrf.mxu0
    %v2273 = vadd.f32 0.0, %v2272
    %v2274 = vpop.f32.mrf.mxu0
    %2275 = vmatprep.mubr.bf16.mxu0 0
    %2276 = vmatmul.mubr.bf16.gmra.mxu0 %v2215
    %v2277 = vpop.f32.mrf.mxu0
    %v2278 = vadd.f32 0.0, %v2277
    %v2279 = vpop.f32.mrf.mxu0
    %v2280 = vpop.f32.mrf.mxu0
    %v2281 = vadd.f32 0.0, %v2280
    %v2282 = vpop.f32.mrf.mxu0
    %2283 = vmatprep.mubr.bf16.mxu0 0
    %2284 = vmatmul.mubr.bf16.gmra.mxu0 %v2218
    %v2285 = vpop.f32.mrf.mxu0
    %v2286 = vadd.f32 0.0, %v2285
    %v2287 = vpop.f32.mrf.mxu0
    %v2288 = vpop.f32.mrf.mxu0
    %v2289 = vadd.f32 0.0, %v2288
    %v2290 = vpop.f32.mrf.mxu0
    %2291 = vmatprep.mubr.bf16.mxu0 0
    %2292 = vmatmul.mubr.bf16.gmra.mxu0 %v2221
    %v2293 = vpop.f32.mrf.mxu0
    %v2294 = vadd.f32 0.0, %v2293
    %v2295 = vpop.f32.mrf.mxu0
    %v2296 = vpop.f32.mrf.mxu0
    %v2297 = vadd.f32 0.0, %v2296
    %v2298 = vpop.f32.mrf.mxu0
    %2299 = vdwg.mxu0
    %v2300 = vmul.f32 %v2270, 0.17677669
    %v2301 = vmul.f32 %v2273, 0.17677669
    %v2302 = vmul.f32 %v2278, 0.17677669
    %v2303 = vmul.f32 %v2281, 0.17677669
    %v2304 = vmul.f32 %v2286, 0.17677669
    %v2305 = vmul.f32 %v2289, 0.17677669
    %v2306 = vmul.f32 %v2294, 0.17677669
    %v2307 = vmul.f32 %v2297, 0.17677669
    %v2308 = vadd.f32 %v2300, %v81
    %v2309 = vadd.f32 %v2301, %v82
    %v2310 = vadd.f32 %v2302, %v83
    %v2311 = vadd.f32 %v2303, %v84
    %v2312 = vadd.f32 %v2304, %v85
    %v2313 = vadd.f32 %v2305, %v86
    %v2314 = vadd.f32 %v2306, %v87
    %v2315 = vadd.f32 %v2307, %v88
    %v2316 = vsel %vm529, %v2308, -inf
    %2317 = vmax.xlane.f32.xlu0 %v2316
    %v2318 = vpop.xlane.xlu0 %2317
    %v2319 = vsel %vm529, %v2309, -inf
    %2320 = vmax.xlane.f32.xlu0 %v2319
    %v2321 = vpop.xlane.xlu0 %2320
    %v2322 = vsel %vm529, %v2310, -inf
    %2323 = vmax.xlane.f32.xlu0 %v2322
    %v2324 = vpop.xlane.xlu0 %2323
    %v2325 = vsel %vm529, %v2311, -inf
    %2326 = vmax.xlane.f32.xlu0 %v2325
    %v2327 = vpop.xlane.xlu0 %2326
    %v2328 = vsel %vm529, %v2312, -inf
    %2329 = vmax.xlane.f32.xlu0 %v2328
    %v2330 = vpop.xlane.xlu0 %2329
    %v2331 = vsel %vm529, %v2313, -inf
    %2332 = vmax.xlane.f32.xlu0 %v2331
    %v2333 = vpop.xlane.xlu0 %2332
    %v2334 = vsel %vm529, %v2314, -inf
    %2335 = vmax.xlane.f32.xlu0 %v2334
    %v2336 = vpop.xlane.xlu0 %2335
    %v2337 = vsel %vm529, %v2315, -inf
    %2338 = vmax.xlane.f32.xlu0 %v2337
    %v2339 = vpop.xlane.xlu0 %2338
    %v2340 = vsub.f32 %v2308, %v2318
    %v2341 = vsub.f32 %v2309, %v2321
    %v2342 = vsub.f32 %v2310, %v2324
    %v2343 = vsub.f32 %v2311, %v2327
    %v2344 = vsub.f32 %v2312, %v2330
    %v2345 = vsub.f32 %v2313, %v2333
    %v2346 = vsub.f32 %v2314, %v2336
    %v2347 = vsub.f32 %v2315, %v2339
    %v2348 = vmul.f32 %v2340, 1.442695
    %v2349 = vpow.pop %v2348
    %v2350 = vmul.f32 %v2341, 1.442695
    %v2351 = vpow.pop %v2350
    %v2352 = vmul.f32 %v2342, 1.442695
    %v2353 = vpow.pop %v2352
    %v2354 = vmul.f32 %v2343, 1.442695
    %v2355 = vpow.pop %v2354
    %v2356 = vmul.f32 %v2344, 1.442695
    %v2357 = vpow.pop %v2356
    %v2358 = vmul.f32 %v2345, 1.442695
    %v2359 = vpow.pop %v2358
    %v2360 = vmul.f32 %v2346, 1.442695
    %v2361 = vpow.pop %v2360
    %v2362 = vmul.f32 %v2347, 1.442695
    %v2363 = vpow.pop %v2362
    %v2364 = vsel %vm529, %v2349, 0.0
    %2365 = vadd.xlane.f32.xlu0 %v2364
    %v2366 = vpop.xlane.xlu0 %2365
    %v2367 = vsel %vm529, %v2351, 0.0
    %2368 = vadd.xlane.f32.xlu0 %v2367
    %v2369 = vpop.xlane.xlu0 %2368
    %v2370 = vsel %vm529, %v2353, 0.0
    %2371 = vadd.xlane.f32.xlu0 %v2370
    %v2372 = vpop.xlane.xlu0 %2371
    %v2373 = vsel %vm529, %v2355, 0.0
    %2374 = vadd.xlane.f32.xlu0 %v2373
    %v2375 = vpop.xlane.xlu0 %2374
    %v2376 = vsel %vm529, %v2357, 0.0
    %2377 = vadd.xlane.f32.xlu0 %v2376
    %v2378 = vpop.xlane.xlu0 %2377
    %v2379 = vsel %vm529, %v2359, 0.0
    %2380 = vadd.xlane.f32.xlu0 %v2379
    %v2381 = vpop.xlane.xlu0 %2380
    %v2382 = vsel %vm529, %v2361, 0.0
    %2383 = vadd.xlane.f32.xlu0 %v2382
    %v2384 = vpop.xlane.xlu0 %2383
    %v2385 = vsel %vm529, %v2363, 0.0
    %2386 = vadd.xlane.f32.xlu0 %v2385
    %v2387 = vpop.xlane.xlu0 %2386
    %v2388 = vrcp.pop %v2366
    %v2389 = vmul.f32 %v2349, %v2388
    %v2390 = vrcp.pop %v2369
    %v2391 = vmul.f32 %v2351, %v2390
    %v2392 = vrcp.pop %v2372
    %v2393 = vmul.f32 %v2353, %v2392
    %v2394 = vrcp.pop %v2375
    %v2395 = vmul.f32 %v2355, %v2394
    %v2396 = vrcp.pop %v2378
    %v2397 = vmul.f32 %v2357, %v2396
    %v2398 = vrcp.pop %v2381
    %v2399 = vmul.f32 %v2359, %v2398
    %v2400 = vrcp.pop %v2384
    %v2401 = vmul.f32 %v2361, %v2400
    %v2402 = vrcp.pop %v2387
    %v2403 = vmul.f32 %v2363, %v2402
    %v2404 = vpack.c.bf16 %v2391, %v2389
    %v2405 = vpack.c.bf16 %v2395, %v2393
    %v2406 = vpack.c.bf16 %v2399, %v2397
    %v2407 = vpack.c.bf16 %v2403, %v2401
    %2412 = vrot.lane.b32.xlu0 %v1905, 96
    %v2413 = vpop.permute.xlu0 %2412
    %2414 = vrot.lane.b32.xlu0 %v1906, 96
    %v2415 = vpop.permute.xlu0 %2414
    %2416 = vrot.lane.b32.xlu0 %v1907, 96
    %v2417 = vpop.permute.xlu0 %2416
    %2418 = vrot.lane.b32.xlu0 %v1908, 96
    %v2419 = vpop.permute.xlu0 %2418
    %v2425 = vsel %vm529, %v2404, 0
    %v2428 = vsel %vm529, %v2405, 0
    %v2431 = vsel %vm529, %v2406, 0
    %v2434 = vsel %vm529, %v2407, 0
    %2436 = vmatprep.subr.bf16.mxu0 0
    %2437 = vmatpush1.bf16.msra.mxu0 0
    %2438 = vmatprep.subr.bf16.mxu0 0
    %2439 = vmatpush1.bf16.msra.mxu0 0
    %2440 = vmatprep.subr.bf16.mxu0 0
    %2441 = vmatpush1.bf16.msra.mxu0 0
    %2442 = vmatprep.subr.bf16.mxu0 0
    %2443 = vmatpush1.bf16.msra.mxu0 0
    %2444 = vmatprep.subr.bf16.mxu0 0
    %2445 = vmatpush1.bf16.msra.mxu0 %v2419
    %2446 = vmatprep.subr.bf16.mxu0 0
    %2447 = vmatpush1.bf16.msra.mxu0 %v2417
    %2448 = vmatprep.subr.bf16.mxu0 0
    %2449 = vmatpush1.bf16.msra.mxu0 %v2415
    %2450 = vmatprep.subr.bf16.mxu0 0
    %2451 = vmatpush1.bf16.msra.mxu0 %v2413
    %2452 = vmatprep.subr.bf16.mxu0 0
    %2453 = vmatpush2.bf16.msra.mxu0 0
    %2454 = vmatprep.subr.bf16.mxu0 0
    %2455 = vmatpush2.bf16.msra.mxu0 0
    %2456 = vmatprep.subr.bf16.mxu0 0
    %2457 = vmatpush2.bf16.msra.mxu0 0
    %2458 = vmatprep.subr.bf16.mxu0 0
    %2459 = vmatpush2.bf16.msra.mxu0 0
    %2460 = vmatprep.subr.bf16.mxu0 0
    %2461 = vmatpush2.bf16.msra.mxu0 0
    %2462 = vmatprep.subr.bf16.mxu0 0
    %2463 = vmatpush2.bf16.msra.mxu0 0
    %2464 = vmatprep.subr.bf16.mxu0 0
    %2465 = vmatpush2.bf16.msra.mxu0 0
    %2466 = vmatprep.subr.bf16.mxu0 0
    %2467 = vmatpush2.bf16.msra.mxu0 0
    %2468 = vmatprep.mubr.bf16.mxu0 0
    %2469 = vmatmul.mubr.bf16.gmra.mxu0 %v2425
    %v2470 = vpop.f32.mrf.mxu0
    %v2471 = vadd.f32 0.0, %v2470
    %v2472 = vpop.f32.mrf.mxu0
    %v2473 = vpop.f32.mrf.mxu0
    %v2474 = vadd.f32 0.0, %v2473
    %v2475 = vpop.f32.mrf.mxu0
    %2476 = vmatprep.mubr.bf16.mxu0 0
    %2477 = vmatmul.mubr.bf16.gmra.mxu0 %v2428
    %v2478 = vpop.f32.mrf.mxu0
    %v2479 = vadd.f32 0.0, %v2478
    %v2480 = vpop.f32.mrf.mxu0
    %v2481 = vpop.f32.mrf.mxu0
    %v2482 = vadd.f32 0.0, %v2481
    %v2483 = vpop.f32.mrf.mxu0
    %2484 = vmatprep.mubr.bf16.mxu0 0
    %2485 = vmatmul.mubr.bf16.gmra.mxu0 %v2431
    %v2486 = vpop.f32.mrf.mxu0
    %v2487 = vadd.f32 0.0, %v2486
    %v2488 = vpop.f32.mrf.mxu0
    %v2489 = vpop.f32.mrf.mxu0
    %v2490 = vadd.f32 0.0, %v2489
    %v2491 = vpop.f32.mrf.mxu0
    %2492 = vmatprep.mubr.bf16.mxu0 0
    %2493 = vmatmul.mubr.bf16.gmra.mxu0 %v2434
    %v2494 = vpop.f32.mrf.mxu0
    %v2495 = vadd.f32 0.0, %v2494
    %v2496 = vpop.f32.mrf.mxu0
    %v2497 = vpop.f32.mrf.mxu0
    %v2498 = vadd.f32 0.0, %v2497
    %v2499 = vpop.f32.mrf.mxu0
    %2500 = vdwg.mxu0
    %2509 = vrot.lane.b32.xlu0 %v2471, 32
    %v2510 = vpop.permute.xlu0 %2509
    %2511 = vrot.lane.b32.xlu0 %v2474, 32
    %v2512 = vpop.permute.xlu0 %2511
    %2513 = vrot.lane.b32.xlu0 %v2479, 32
    %v2514 = vpop.permute.xlu0 %2513
    %2515 = vrot.lane.b32.xlu0 %v2482, 32
    %v2516 = vpop.permute.xlu0 %2515
    %2517 = vrot.lane.b32.xlu0 %v2487, 32
    %v2518 = vpop.permute.xlu0 %2517
    %2519 = vrot.lane.b32.xlu0 %v2490, 32
    %v2520 = vpop.permute.xlu0 %2519
    %2521 = vrot.lane.b32.xlu0 %v2495, 32
    %v2522 = vpop.permute.xlu0 %2521
    %2523 = vrot.lane.b32.xlu0 %v2498, 32
    %v2524 = vpop.permute.xlu0 %2523
    %v2533 = vsel %vm423, %v2165, %v2510
    %v2534 = vsel %vm423, %v2168, %v2512
    %v2535 = vsel %vm423, %v2173, %v2514
    %v2536 = vsel %vm423, %v2176, %v2516
    %v2537 = vsel %vm423, %v2181, %v2518
    %v2538 = vsel %vm423, %v2184, %v2520
    %v2539 = vsel %vm423, %v2189, %v2522
    %v2540 = vsel %vm423, %v2192, %v2524
    %v2541 = vpack.c.bf16 %v2534, %v2533
    %v2542 = vpack.c.bf16 %v2536, %v2535
    %v2543 = vpack.c.bf16 %v2538, %v2537
    %v2544 = vpack.c.bf16 %v2540, %v2539
    %s2545 = scalar_lea.vmem %s7, 32
    %v2546 = vld [vmem:[%s2545] sm:$0xf]
    %v2547 = vld [vmem:[%s2545 + $0x4] sm:$0xf]
    %v2548 = vld [vmem:[%s2545 + $0x8] sm:$0xf]
    %v2549 = vld [vmem:[%s2545 + $0xc] sm:$0xf]
    %v2550 = vld [vmem:[%s2545 + $0x10] sm:$0xf]
    %v2551 = vld [vmem:[%s2545 + $0x14] sm:$0xf]
    %v2552 = vld [vmem:[%s2545 + $0x18] sm:$0xf]
    %v2553 = vld [vmem:[%s2545 + $0x1c] sm:$0xf]
    %s2554 = scalar_lea.vmem %s8, 1
    %v2555 = vld [vmem:[%s2554] sm:$0x1]
    %v2557 = vlaneseq
    %v2558 = vshrl.u32 %v2557, 7
    %v2559 = vsub.s32 0, %v2558
    %v2560 = vrot.slane %v2555, %v2559
    %v2570 = vunpack.c.l.b16 %v2546
    %v2571 = vunpack.c.l.b16 %v2547
    %v2572 = vunpack.c.l.b16 %v2548
    %v2573 = vunpack.c.l.b16 %v2549
    %v2574 = vunpack.c.l.b16 %v2550
    %v2575 = vunpack.c.l.b16 %v2551
    %v2576 = vunpack.c.l.b16 %v2552
    %v2577 = vunpack.c.l.b16 %v2553
    %v2578 = vpack.c.b16 %v2571, %v2570
    %v2579 = vpack.c.b16 %v2573, %v2572
    %v2580 = vpack.c.b16 %v2575, %v2574
    %v2581 = vpack.c.b16 %v2577, %v2576
    %v2587 = vsel %vm529, %v2541, 0
    %v2590 = vsel %vm529, %v2542, 0
    %v2593 = vsel %vm529, %v2543, 0
    %v2596 = vsel %vm529, %v2544, 0
    %2598 = vmatprep.subr.bf16.mxu0 0
    %2599 = vmatpush1.bf16.msra.mxu0 0
    %2600 = vmatprep.subr.bf16.mxu0 0
    %2601 = vmatpush1.bf16.msra.mxu0 0
    %2602 = vmatprep.subr.bf16.mxu0 0
    %2603 = vmatpush1.bf16.msra.mxu0 0
    %2604 = vmatprep.subr.bf16.mxu0 0
    %2605 = vmatpush1.bf16.msra.mxu0 0
    %2606 = vmatprep.subr.bf16.mxu0 0
    %2607 = vmatpush1.bf16.msra.mxu0 %v2581
    %2608 = vmatprep.subr.bf16.mxu0 0
    %2609 = vmatpush1.bf16.msra.mxu0 %v2580
    %2610 = vmatprep.subr.bf16.mxu0 0
    %2611 = vmatpush1.bf16.msra.mxu0 %v2579
    %2612 = vmatprep.subr.bf16.mxu0 0
    %2613 = vmatpush1.bf16.msra.mxu0 %v2578
    %2614 = vmatprep.subr.bf16.mxu0 0
    %2615 = vmatpush2.bf16.msra.mxu0 0
    %2616 = vmatprep.subr.bf16.mxu0 0
    %2617 = vmatpush2.bf16.msra.mxu0 0
    %2618 = vmatprep.subr.bf16.mxu0 0
    %2619 = vmatpush2.bf16.msra.mxu0 0
    %2620 = vmatprep.subr.bf16.mxu0 0
    %2621 = vmatpush2.bf16.msra.mxu0 0
    %2622 = vmatprep.subr.bf16.mxu0 0
    %2623 = vmatpush2.bf16.msra.mxu0 0
    %2624 = vmatprep.subr.bf16.mxu0 0
    %2625 = vmatpush2.bf16.msra.mxu0 0
    %2626 = vmatprep.subr.bf16.mxu0 0
    %2627 = vmatpush2.bf16.msra.mxu0 0
    %2628 = vmatprep.subr.bf16.mxu0 0
    %2629 = vmatpush2.bf16.msra.mxu0 0
    %2630 = vmatprep.mubr.bf16.mxu0 0
    %2631 = vmatmul.mubr.bf16.gmra.mxu0 %v2587
    %v2632 = vpop.f32.mrf.mxu0
    %v2633 = vadd.f32 %v2560, %v2632
    %v2634 = vpop.f32.mrf.mxu0
    %v2635 = vpop.f32.mrf.mxu0
    %v2636 = vadd.f32 %v2560, %v2635
    %v2637 = vpop.f32.mrf.mxu0
    %2638 = vmatprep.mubr.bf16.mxu0 0
    %2639 = vmatmul.mubr.bf16.gmra.mxu0 %v2590
    %v2640 = vpop.f32.mrf.mxu0
    %v2641 = vadd.f32 %v2560, %v2640
    %v2642 = vpop.f32.mrf.mxu0
    %v2643 = vpop.f32.mrf.mxu0
    %v2644 = vadd.f32 %v2560, %v2643
    %v2645 = vpop.f32.mrf.mxu0
    %2646 = vmatprep.mubr.bf16.mxu0 0
    %2647 = vmatmul.mubr.bf16.gmra.mxu0 %v2593
    %v2648 = vpop.f32.mrf.mxu0
    %v2649 = vadd.f32 %v2560, %v2648
    %v2650 = vpop.f32.mrf.mxu0
    %v2651 = vpop.f32.mrf.mxu0
    %v2652 = vadd.f32 %v2560, %v2651
    %v2653 = vpop.f32.mrf.mxu0
    %2654 = vmatprep.mubr.bf16.mxu0 0
    %2655 = vmatmul.mubr.bf16.gmra.mxu0 %v2596
    %v2656 = vpop.f32.mrf.mxu0
    %v2657 = vadd.f32 %v2560, %v2656
    %v2658 = vpop.f32.mrf.mxu0
    %v2659 = vpop.f32.mrf.mxu0
    %v2660 = vadd.f32 %v2560, %v2659
    %v2661 = vpop.f32.mrf.mxu0
    %2662 = vdwg.mxu0
    %v2663 = vadd.f32 %v1706, %v2633
    %v2664 = vadd.f32 %v1707, %v2636
    %v2665 = vadd.f32 %v1708, %v2641
    %v2666 = vadd.f32 %v1709, %v2644
    %v2667 = vadd.f32 %v1710, %v2649
    %v2668 = vadd.f32 %v1711, %v2652
    %v2669 = vadd.f32 %v1712, %v2657
    %v2670 = vadd.f32 %v1713, %v2660
    %s2671 = scalar_lea.vmem %s9, 1
    %v2672 = vld [vmem:[%s2671] sm:$0x1]
    %s2673 = scalar_lea.vmem %s10, 1
    %v2674 = vld [vmem:[%s2673] sm:$0x1]
    %2675 = vadd.xlane.f32.xlu0 %v2663
    %v2676 = vpop.xlane.xlu0 %2675
    %2677 = vadd.xlane.f32.xlu0 %v2664
    %v2678 = vpop.xlane.xlu0 %2677
    %2679 = vadd.xlane.f32.xlu0 %v2665
    %v2680 = vpop.xlane.xlu0 %2679
    %2681 = vadd.xlane.f32.xlu0 %v2666
    %v2682 = vpop.xlane.xlu0 %2681
    %2683 = vadd.xlane.f32.xlu0 %v2667
    %v2684 = vpop.xlane.xlu0 %2683
    %2685 = vadd.xlane.f32.xlu0 %v2668
    %v2686 = vpop.xlane.xlu0 %2685
    %2687 = vadd.xlane.f32.xlu0 %v2669
    %v2688 = vpop.xlane.xlu0 %2687
    %2689 = vadd.xlane.f32.xlu0 %v2670
    %v2690 = vpop.xlane.xlu0 %2689
    %v2691 = vmul.f32 %v2676, %v1191
    %v2692 = vmul.f32 %v2678, %v1191
    %v2693 = vmul.f32 %v2680, %v1191
    %v2694 = vmul.f32 %v2682, %v1191
    %v2695 = vmul.f32 %v2684, %v1191
    %v2696 = vmul.f32 %v2686, %v1191
    %v2697 = vmul.f32 %v2688, %v1191
    %v2698 = vmul.f32 %v2690, %v1191
    %v2699 = vsub.f32 %v2663, %v2691
    %v2700 = vsub.f32 %v2664, %v2692
    %v2701 = vsub.f32 %v2665, %v2693
    %v2702 = vsub.f32 %v2666, %v2694
    %v2703 = vsub.f32 %v2667, %v2695
    %v2704 = vsub.f32 %v2668, %v2696
    %v2705 = vsub.f32 %v2669, %v2697
    %v2706 = vsub.f32 %v2670, %v2698
    %v2707 = vmul.f32 %v2699, %v2699
    %v2708 = vmul.f32 %v2700, %v2700
    %v2709 = vmul.f32 %v2701, %v2701
    %v2710 = vmul.f32 %v2702, %v2702
    %v2711 = vmul.f32 %v2703, %v2703
    %v2712 = vmul.f32 %v2704, %v2704
    %v2713 = vmul.f32 %v2705, %v2705
    %v2714 = vmul.f32 %v2706, %v2706
    %2715 = vadd.xlane.f32.xlu0 %v2707
    %v2716 = vpop.xlane.xlu0 %2715
    %2717 = vadd.xlane.f32.xlu0 %v2708
    %v2718 = vpop.xlane.xlu0 %2717
    %2719 = vadd.xlane.f32.xlu0 %v2709
    %v2720 = vpop.xlane.xlu0 %2719
    %2721 = vadd.xlane.f32.xlu0 %v2710
    %v2722 = vpop.xlane.xlu0 %2721
    %2723 = vadd.xlane.f32.xlu0 %v2711
    %v2724 = vpop.xlane.xlu0 %2723
    %2725 = vadd.xlane.f32.xlu0 %v2712
    %v2726 = vpop.xlane.xlu0 %2725
    %2727 = vadd.xlane.f32.xlu0 %v2713
    %v2728 = vpop.xlane.xlu0 %2727
    %2729 = vadd.xlane.f32.xlu0 %v2714
    %v2730 = vpop.xlane.xlu0 %2729
    %v2731 = vmul.f32 %v2716, %v1191
    %v2732 = vmul.f32 %v2718, %v1191
    %v2733 = vmul.f32 %v2720, %v1191
    %v2734 = vmul.f32 %v2722, %v1191
    %v2735 = vmul.f32 %v2724, %v1191
    %v2736 = vmul.f32 %v2726, %v1191
    %v2737 = vmul.f32 %v2728, %v1191
    %v2738 = vmul.f32 %v2730, %v1191
    %v2739 = vadd.f32 %v2731, 1e-05
    %v2740 = vadd.f32 %v2732, 1e-05
    %v2741 = vadd.f32 %v2733, 1e-05
    %v2742 = vadd.f32 %v2734, 1e-05
    %v2743 = vadd.f32 %v2735, 1e-05
    %v2744 = vadd.f32 %v2736, 1e-05
    %v2745 = vadd.f32 %v2737, 1e-05
    %v2746 = vadd.f32 %v2738, 1e-05
    %v2747 = vrsqrt.pop %v2739
    %v2748 = vrsqrt.pop %v2740
    %v2749 = vrsqrt.pop %v2741
    %v2750 = vrsqrt.pop %v2742
    %v2751 = vrsqrt.pop %v2743
    %v2752 = vrsqrt.pop %v2744
    %v2753 = vrsqrt.pop %v2745
    %v2754 = vrsqrt.pop %v2746
    %v2755 = vmul.f32 %v2699, %v2747
    %v2756 = vmul.f32 %v2700, %v2748
    %v2757 = vmul.f32 %v2701, %v2749
    %v2758 = vmul.f32 %v2702, %v2750
    %v2759 = vmul.f32 %v2703, %v2751
    %v2760 = vmul.f32 %v2704, %v2752
    %v2761 = vmul.f32 %v2705, %v2753
    %v2762 = vmul.f32 %v2706, %v2754
    %v2764 = vlaneseq
    %v2765 = vshrl.u32 %v2764, 7
    %v2766 = vsub.s32 0, %v2765
    %v2767 = vrot.slane %v2672, %v2766
    %v2769 = vmul.f32 %v2755, %v2767
    %v2770 = vmul.f32 %v2756, %v2767
    %v2771 = vmul.f32 %v2757, %v2767
    %v2772 = vmul.f32 %v2758, %v2767
    %v2773 = vmul.f32 %v2759, %v2767
    %v2774 = vmul.f32 %v2760, %v2767
    %v2775 = vmul.f32 %v2761, %v2767
    %v2776 = vmul.f32 %v2762, %v2767
    %v2778 = vlaneseq
    %v2779 = vshrl.u32 %v2778, 7
    %v2780 = vsub.s32 0, %v2779
    %v2781 = vrot.slane %v2674, %v2780
    %v2783 = vadd.f32 %v2769, %v2781
    %v2784 = vadd.f32 %v2770, %v2781
    %v2785 = vadd.f32 %v2771, %v2781
    %v2786 = vadd.f32 %v2772, %v2781
    %v2787 = vadd.f32 %v2773, %v2781
    %v2788 = vadd.f32 %v2774, %v2781
    %v2789 = vadd.f32 %v2775, %v2781
    %v2790 = vadd.f32 %v2776, %v2781
    %v2791 = vpack.c.bf16 %v2784, %v2783
    %v2792 = vpack.c.bf16 %v2786, %v2785
    %v2793 = vpack.c.bf16 %v2788, %v2787
    %v2794 = vpack.c.bf16 %v2790, %v2789
    %s2795 = scalar_lea.vmem %s11, 64
    %v2796 = vld [vmem:[%s2795] sm:$0xf]
    %v2797 = vld [vmem:[%s2795 + $0x4] sm:$0xf]
    %v2798 = vld [vmem:[%s2795 + $0x8] sm:$0xf]
    %v2799 = vld [vmem:[%s2795 + $0xc] sm:$0xf]
    %v2800 = vld [vmem:[%s2795 + $0x10] sm:$0xf]
    %v2801 = vld [vmem:[%s2795 + $0x14] sm:$0xf]
    %v2802 = vld [vmem:[%s2795 + $0x18] sm:$0xf]
    %v2803 = vld [vmem:[%s2795 + $0x1c] sm:$0xf]
    %v2804 = vld [vmem:[%s2795 + $0x20] sm:$0xf]
    %v2805 = vld [vmem:[%s2795 + $0x24] sm:$0xf]
    %v2806 = vld [vmem:[%s2795 + $0x28] sm:$0xf]
    %v2807 = vld [vmem:[%s2795 + $0x2c] sm:$0xf]
    %v2808 = vld [vmem:[%s2795 + $0x30] sm:$0xf]
    %v2809 = vld [vmem:[%s2795 + $0x34] sm:$0xf]
    %v2810 = vld [vmem:[%s2795 + $0x38] sm:$0xf]
    %v2811 = vld [vmem:[%s2795 + $0x3c] sm:$0xf]
    %s2812 = scalar_lea.vmem %s12, 1
    %v2813 = vld [vmem:[%s2812] sm:$0x1]
    %v2815 = vlaneseq
    %v2816 = vshrl.u32 %v2815, 7
    %v2817 = vsub.s32 0, %v2816
    %v2818 = vrot.slane %v2813, %v2817
    %v2836 = vunpack.c.l.b16 %v2796
    %v2837 = vunpack.c.l.b16 %v2797
    %v2838 = vunpack.c.l.b16 %v2798
    %v2839 = vunpack.c.l.b16 %v2799
    %v2840 = vunpack.c.l.b16 %v2800
    %v2841 = vunpack.c.l.b16 %v2801
    %v2842 = vunpack.c.l.b16 %v2802
    %v2843 = vunpack.c.l.b16 %v2803
    %v2844 = vunpack.c.l.b16 %v2804
    %v2845 = vunpack.c.l.b16 %v2805
    %v2846 = vunpack.c.l.b16 %v2806
    %v2847 = vunpack.c.l.b16 %v2807
    %v2848 = vunpack.c.l.b16 %v2808
    %v2849 = vunpack.c.l.b16 %v2809
    %v2850 = vunpack.c.l.b16 %v2810
    %v2851 = vunpack.c.l.b16 %v2811
    %v2852 = vpack.c.b16 %v2837, %v2836
    %v2853 = vpack.c.b16 %v2839, %v2838
    %v2854 = vpack.c.b16 %v2841, %v2840
    %v2855 = vpack.c.b16 %v2843, %v2842
    %v2856 = vpack.c.b16 %v2845, %v2844
    %v2857 = vpack.c.b16 %v2847, %v2846
    %v2858 = vpack.c.b16 %v2849, %v2848
    %v2859 = vpack.c.b16 %v2851, %v2850
    %2868 = vmatprep.subr.bf16.mxu0 0
    %2869 = vmatpush1.bf16.msra.mxu0 %v2859
    %2870 = vmatprep.subr.bf16.mxu0 0
    %2871 = vmatpush1.bf16.msra.mxu0 %v2858
    %2872 = vmatprep.subr.bf16.mxu0 0
    %2873 = vmatpush1.bf16.msra.mxu0 %v2857
    %2874 = vmatprep.subr.bf16.mxu0 0
    %2875 = vmatpush1.bf16.msra.mxu0 %v2856
    %2876 = vmatprep.subr.bf16.mxu0 0
    %2877 = vmatpush1.bf16.msra.mxu0 %v2855
    %2878 = vmatprep.subr.bf16.mxu0 0
    %2879 = vmatpush1.bf16.msra.mxu0 %v2854
    %2880 = vmatprep.subr.bf16.mxu0 0
    %2881 = vmatpush1.bf16.msra.mxu0 %v2853
    %2882 = vmatprep.subr.bf16.mxu0 0
    %2883 = vmatpush1.bf16.msra.mxu0 %v2852
    %2884 = vmatprep.subr.bf16.mxu0 0
    %2885 = vmatpush2.bf16.msra.mxu0 0
    %2886 = vmatprep.subr.bf16.mxu0 0
    %2887 = vmatpush2.bf16.msra.mxu0 0
    %2888 = vmatprep.subr.bf16.mxu0 0
    %2889 = vmatpush2.bf16.msra.mxu0 0
    %2890 = vmatprep.subr.bf16.mxu0 0
    %2891 = vmatpush2.bf16.msra.mxu0 0
    %2892 = vmatprep.subr.bf16.mxu0 0
    %2893 = vmatpush2.bf16.msra.mxu0 0
    %2894 = vmatprep.subr.bf16.mxu0 0
    %2895 = vmatpush2.bf16.msra.mxu0 0
    %2896 = vmatprep.subr.bf16.mxu0 0
    %2897 = vmatpush2.bf16.msra.mxu0 0
    %2898 = vmatprep.subr.bf16.mxu0 0
    %2899 = vmatpush2.bf16.msra.mxu0 0
    %2900 = vmatprep.mubr.bf16.mxu0 0
    %2901 = vmatmul.mubr.bf16.gmra.mxu0 %v2791
    %v2902 = vpop.f32.mrf.mxu0
    %v2903 = vadd.f32 %v2818, %v2902
    %v2904 = vpop.f32.mrf.mxu0
    %v2905 = vpop.f32.mrf.mxu0
    %v2906 = vadd.f32 %v2818, %v2905
    %v2907 = vpop.f32.mrf.mxu0
    %2908 = vmatprep.mubr.bf16.mxu0 0
    %2909 = vmatmul.mubr.bf16.gmra.mxu0 %v2792
    %v2910 = vpop.f32.mrf.mxu0
    %v2911 = vadd.f32 %v2818, %v2910
    %v2912 = vpop.f32.mrf.mxu0
    %v2913 = vpop.f32.mrf.mxu0
    %v2914 = vadd.f32 %v2818, %v2913
    %v2915 = vpop.f32.mrf.mxu0
    %2916 = vmatprep.mubr.bf16.mxu0 0
    %2917 = vmatmul.mubr.bf16.gmra.mxu0 %v2793
    %v2918 = vpop.f32.mrf.mxu0
    %v2919 = vadd.f32 %v2818, %v2918
    %v2920 = vpop.f32.mrf.mxu0
    %v2921 = vpop.f32.mrf.mxu0
    %v2922 = vadd.f32 %v2818, %v2921
    %v2923 = vpop.f32.mrf.mxu0
    %2924 = vmatprep.mubr.bf16.mxu0 0
    %2925 = vmatmul.mubr.bf16.gmra.mxu0 %v2794
    %v2926 = vpop.f32.mrf.mxu0
    %v2927 = vadd.f32 %v2818, %v2926
    %v2928 = vpop.f32.mrf.mxu0
    %v2929 = vpop.f32.mrf.mxu0
    %v2930 = vadd.f32 %v2818, %v2929
    %v2931 = vpop.f32.mrf.mxu0
    %2932 = vdwg.mxu0
    %v2933 = vmax.f32 %v2903, 0.0
    %v2934 = vmax.f32 %v2906, 0.0
    %v2935 = vmax.f32 %v2911, 0.0
    %v2936 = vmax.f32 %v2914, 0.0
    %v2937 = vmax.f32 %v2919, 0.0
    %v2938 = vmax.f32 %v2922, 0.0
    %v2939 = vmax.f32 %v2927, 0.0
    %v2940 = vmax.f32 %v2930, 0.0
    %v2941 = vpack.c.bf16 %v2934, %v2933
    %v2942 = vpack.c.bf16 %v2936, %v2935
    %v2943 = vpack.c.bf16 %v2938, %v2937
    %v2944 = vpack.c.bf16 %v2940, %v2939
    %s2945 = scalar_lea.vmem %s13, 64
    %v2946 = vld [vmem:[%s2945] sm:$0xf]
    %v2947 = vld [vmem:[%s2945 + $0x4] sm:$0xf]
    %v2948 = vld [vmem:[%s2945 + $0x8] sm:$0xf]
    %v2949 = vld [vmem:[%s2945 + $0xc] sm:$0xf]
    %v2950 = vld [vmem:[%s2945 + $0x10] sm:$0xf]
    %v2951 = vld [vmem:[%s2945 + $0x14] sm:$0xf]
    %v2952 = vld [vmem:[%s2945 + $0x18] sm:$0xf]
    %v2953 = vld [vmem:[%s2945 + $0x1c] sm:$0xf]
    %v2954 = vld [vmem:[%s2945 + $0x20] sm:$0xf]
    %v2955 = vld [vmem:[%s2945 + $0x24] sm:$0xf]
    %v2956 = vld [vmem:[%s2945 + $0x28] sm:$0xf]
    %v2957 = vld [vmem:[%s2945 + $0x2c] sm:$0xf]
    %v2958 = vld [vmem:[%s2945 + $0x30] sm:$0xf]
    %v2959 = vld [vmem:[%s2945 + $0x34] sm:$0xf]
    %v2960 = vld [vmem:[%s2945 + $0x38] sm:$0xf]
    %v2961 = vld [vmem:[%s2945 + $0x3c] sm:$0xf]
    %s2962 = scalar_lea.vmem %s14, 1
    %v2963 = vld [vmem:[%s2962] sm:$0x1]
    %v2965 = vlaneseq
    %v2966 = vshrl.u32 %v2965, 7
    %v2967 = vsub.s32 0, %v2966
    %v2968 = vrot.slane %v2963, %v2967
    %v2986 = vunpack.c.l.b16 %v2946
    %v2987 = vunpack.c.l.b16 %v2947
    %v2988 = vunpack.c.l.b16 %v2948
    %v2989 = vunpack.c.l.b16 %v2949
    %v2990 = vunpack.c.l.b16 %v2950
    %v2991 = vunpack.c.l.b16 %v2951
    %v2992 = vunpack.c.l.b16 %v2952
    %v2993 = vunpack.c.l.b16 %v2953
    %v2994 = vunpack.c.l.b16 %v2954
    %v2995 = vunpack.c.l.b16 %v2955
    %v2996 = vunpack.c.l.b16 %v2956
    %v2997 = vunpack.c.l.b16 %v2957
    %v2998 = vunpack.c.l.b16 %v2958
    %v2999 = vunpack.c.l.b16 %v2959
    %v3000 = vunpack.c.l.b16 %v2960
    %v3001 = vunpack.c.l.b16 %v2961
    %v3002 = vpack.c.b16 %v2987, %v2986
    %v3003 = vpack.c.b16 %v2989, %v2988
    %v3004 = vpack.c.b16 %v2991, %v2990
    %v3005 = vpack.c.b16 %v2993, %v2992
    %v3006 = vpack.c.b16 %v2995, %v2994
    %v3007 = vpack.c.b16 %v2997, %v2996
    %v3008 = vpack.c.b16 %v2999, %v2998
    %v3009 = vpack.c.b16 %v3001, %v3000
    %3018 = vmatprep.subr.bf16.mxu0 0
    %3019 = vmatpush1.bf16.msra.mxu0 %v3009
    %3020 = vmatprep.subr.bf16.mxu0 0
    %3021 = vmatpush1.bf16.msra.mxu0 %v3008
    %3022 = vmatprep.subr.bf16.mxu0 0
    %3023 = vmatpush1.bf16.msra.mxu0 %v3007
    %3024 = vmatprep.subr.bf16.mxu0 0
    %3025 = vmatpush1.bf16.msra.mxu0 %v3006
    %3026 = vmatprep.subr.bf16.mxu0 0
    %3027 = vmatpush1.bf16.msra.mxu0 %v3005
    %3028 = vmatprep.subr.bf16.mxu0 0
    %3029 = vmatpush1.bf16.msra.mxu0 %v3004
    %3030 = vmatprep.subr.bf16.mxu0 0
    %3031 = vmatpush1.bf16.msra.mxu0 %v3003
    %3032 = vmatprep.subr.bf16.mxu0 0
    %3033 = vmatpush1.bf16.msra.mxu0 %v3002
    %3034 = vmatprep.subr.bf16.mxu0 0
    %3035 = vmatpush2.bf16.msra.mxu0 0
    %3036 = vmatprep.subr.bf16.mxu0 0
    %3037 = vmatpush2.bf16.msra.mxu0 0
    %3038 = vmatprep.subr.bf16.mxu0 0
    %3039 = vmatpush2.bf16.msra.mxu0 0
    %3040 = vmatprep.subr.bf16.mxu0 0
    %3041 = vmatpush2.bf16.msra.mxu0 0
    %3042 = vmatprep.subr.bf16.mxu0 0
    %3043 = vmatpush2.bf16.msra.mxu0 0
    %3044 = vmatprep.subr.bf16.mxu0 0
    %3045 = vmatpush2.bf16.msra.mxu0 0
    %3046 = vmatprep.subr.bf16.mxu0 0
    %3047 = vmatpush2.bf16.msra.mxu0 0
    %3048 = vmatprep.subr.bf16.mxu0 0
    %3049 = vmatpush2.bf16.msra.mxu0 0
    %3050 = vmatprep.mubr.bf16.mxu0 0
    %3051 = vmatmul.mubr.bf16.gmra.mxu0 %v2941
    %v3052 = vpop.f32.mrf.mxu0
    %v3053 = vadd.f32 %v2968, %v3052
    %v3054 = vpop.f32.mrf.mxu0
    %v3055 = vpop.f32.mrf.mxu0
    %v3056 = vadd.f32 %v2968, %v3055
    %v3057 = vpop.f32.mrf.mxu0
    %3058 = vmatprep.mubr.bf16.mxu0 0
    %3059 = vmatmul.mubr.bf16.gmra.mxu0 %v2942
    %v3060 = vpop.f32.mrf.mxu0
    %v3061 = vadd.f32 %v2968, %v3060
    %v3062 = vpop.f32.mrf.mxu0
    %v3063 = vpop.f32.mrf.mxu0
    %v3064 = vadd.f32 %v2968, %v3063
    %v3065 = vpop.f32.mrf.mxu0
    %3066 = vmatprep.mubr.bf16.mxu0 0
    %3067 = vmatmul.mubr.bf16.gmra.mxu0 %v2943
    %v3068 = vpop.f32.mrf.mxu0
    %v3069 = vadd.f32 %v2968, %v3068
    %v3070 = vpop.f32.mrf.mxu0
    %v3071 = vpop.f32.mrf.mxu0
    %v3072 = vadd.f32 %v2968, %v3071
    %v3073 = vpop.f32.mrf.mxu0
    %3074 = vmatprep.mubr.bf16.mxu0 0
    %3075 = vmatmul.mubr.bf16.gmra.mxu0 %v2944
    %v3076 = vpop.f32.mrf.mxu0
    %v3077 = vadd.f32 %v2968, %v3076
    %v3078 = vpop.f32.mrf.mxu0
    %v3079 = vpop.f32.mrf.mxu0
    %v3080 = vadd.f32 %v2968, %v3079
    %v3081 = vpop.f32.mrf.mxu0
    %3082 = vdwg.mxu0
    %v3083 = vmax.f32 %v3053, 0.0
    %v3084 = vmax.f32 %v3056, 0.0
    %v3085 = vmax.f32 %v3061, 0.0
    %v3086 = vmax.f32 %v3064, 0.0
    %v3087 = vmax.f32 %v3069, 0.0
    %v3088 = vmax.f32 %v3072, 0.0
    %v3089 = vmax.f32 %v3077, 0.0
    %v3090 = vmax.f32 %v3080, 0.0
    %v3091 = vadd.f32 %v2783, %v3083
    %v3092 = vadd.f32 %v2784, %v3084
    %v3093 = vadd.f32 %v2785, %v3085
    %v3094 = vadd.f32 %v2786, %v3086
    %v3095 = vadd.f32 %v2787, %v3087
    %v3096 = vadd.f32 %v2788, %v3088
    %v3097 = vadd.f32 %v2789, %v3089
    %v3098 = vadd.f32 %v2790, %v3090
    %s3099 = scalar_lea.vmem %s15, 1
    %v3100 = vld [vmem:[%s3099] sm:$0x1]
    %s3101 = scalar_lea.vmem %s16, 1
    %v3102 = vld [vmem:[%s3101] sm:$0x1]
    %3103 = vadd.xlane.f32.xlu0 %v3091
    %v3104 = vpop.xlane.xlu0 %3103
    %3105 = vadd.xlane.f32.xlu0 %v3092
    %v3106 = vpop.xlane.xlu0 %3105
    %3107 = vadd.xlane.f32.xlu0 %v3093
    %v3108 = vpop.xlane.xlu0 %3107
    %3109 = vadd.xlane.f32.xlu0 %v3094
    %v3110 = vpop.xlane.xlu0 %3109
    %3111 = vadd.xlane.f32.xlu0 %v3095
    %v3112 = vpop.xlane.xlu0 %3111
    %3113 = vadd.xlane.f32.xlu0 %v3096
    %v3114 = vpop.xlane.xlu0 %3113
    %3115 = vadd.xlane.f32.xlu0 %v3097
    %v3116 = vpop.xlane.xlu0 %3115
    %3117 = vadd.xlane.f32.xlu0 %v3098
    %v3118 = vpop.xlane.xlu0 %3117
    %v3119 = vmul.f32 %v3104, %v1191
    %v3120 = vmul.f32 %v3106, %v1191
    %v3121 = vmul.f32 %v3108, %v1191
    %v3122 = vmul.f32 %v3110, %v1191
    %v3123 = vmul.f32 %v3112, %v1191
    %v3124 = vmul.f32 %v3114, %v1191
    %v3125 = vmul.f32 %v3116, %v1191
    %v3126 = vmul.f32 %v3118, %v1191
    %v3127 = vsub.f32 %v3091, %v3119
    %v3128 = vsub.f32 %v3092, %v3120
    %v3129 = vsub.f32 %v3093, %v3121
    %v3130 = vsub.f32 %v3094, %v3122
    %v3131 = vsub.f32 %v3095, %v3123
    %v3132 = vsub.f32 %v3096, %v3124
    %v3133 = vsub.f32 %v3097, %v3125
    %v3134 = vsub.f32 %v3098, %v3126
    %v3135 = vmul.f32 %v3127, %v3127
    %v3136 = vmul.f32 %v3128, %v3128
    %v3137 = vmul.f32 %v3129, %v3129
    %v3138 = vmul.f32 %v3130, %v3130
    %v3139 = vmul.f32 %v3131, %v3131
    %v3140 = vmul.f32 %v3132, %v3132
    %v3141 = vmul.f32 %v3133, %v3133
    %v3142 = vmul.f32 %v3134, %v3134
    %3143 = vadd.xlane.f32.xlu0 %v3135
    %v3144 = vpop.xlane.xlu0 %3143
    %3145 = vadd.xlane.f32.xlu0 %v3136
    %v3146 = vpop.xlane.xlu0 %3145
    %3147 = vadd.xlane.f32.xlu0 %v3137
    %v3148 = vpop.xlane.xlu0 %3147
    %3149 = vadd.xlane.f32.xlu0 %v3138
    %v3150 = vpop.xlane.xlu0 %3149
    %3151 = vadd.xlane.f32.xlu0 %v3139
    %v3152 = vpop.xlane.xlu0 %3151
    %3153 = vadd.xlane.f32.xlu0 %v3140
    %v3154 = vpop.xlane.xlu0 %3153
    %3155 = vadd.xlane.f32.xlu0 %v3141
    %v3156 = vpop.xlane.xlu0 %3155
    %3157 = vadd.xlane.f32.xlu0 %v3142
    %v3158 = vpop.xlane.xlu0 %3157
    %v3159 = vmul.f32 %v3144, %v1191
    %v3160 = vmul.f32 %v3146, %v1191
    %v3161 = vmul.f32 %v3148, %v1191
    %v3162 = vmul.f32 %v3150, %v1191
    %v3163 = vmul.f32 %v3152, %v1191
    %v3164 = vmul.f32 %v3154, %v1191
    %v3165 = vmul.f32 %v3156, %v1191
    %v3166 = vmul.f32 %v3158, %v1191
    %v3167 = vadd.f32 %v3159, 1e-05
    %v3168 = vadd.f32 %v3160, 1e-05
    %v3169 = vadd.f32 %v3161, 1e-05
    %v3170 = vadd.f32 %v3162, 1e-05
    %v3171 = vadd.f32 %v3163, 1e-05
    %v3172 = vadd.f32 %v3164, 1e-05
    %v3173 = vadd.f32 %v3165, 1e-05
    %v3174 = vadd.f32 %v3166, 1e-05
    %v3175 = vrsqrt.pop %v3167
    %v3176 = vrsqrt.pop %v3168
    %v3177 = vrsqrt.pop %v3169
    %v3178 = vrsqrt.pop %v3170
    %v3179 = vrsqrt.pop %v3171
    %v3180 = vrsqrt.pop %v3172
    %v3181 = vrsqrt.pop %v3173
    %v3182 = vrsqrt.pop %v3174
    %v3183 = vmul.f32 %v3127, %v3175
    %v3184 = vmul.f32 %v3128, %v3176
    %v3185 = vmul.f32 %v3129, %v3177
    %v3186 = vmul.f32 %v3130, %v3178
    %v3187 = vmul.f32 %v3131, %v3179
    %v3188 = vmul.f32 %v3132, %v3180
    %v3189 = vmul.f32 %v3133, %v3181
    %v3190 = vmul.f32 %v3134, %v3182
    %v3192 = vlaneseq
    %v3193 = vshrl.u32 %v3192, 7
    %v3194 = vsub.s32 0, %v3193
    %v3195 = vrot.slane %v3100, %v3194
    %v3197 = vmul.f32 %v3183, %v3195
    %v3198 = vmul.f32 %v3184, %v3195
    %v3199 = vmul.f32 %v3185, %v3195
    %v3200 = vmul.f32 %v3186, %v3195
    %v3201 = vmul.f32 %v3187, %v3195
    %v3202 = vmul.f32 %v3188, %v3195
    %v3203 = vmul.f32 %v3189, %v3195
    %v3204 = vmul.f32 %v3190, %v3195
    %v3206 = vlaneseq
    %v3207 = vshrl.u32 %v3206, 7
    %v3208 = vsub.s32 0, %v3207
    %v3209 = vrot.slane %v3102, %v3208
    %v3211 = vadd.f32 %v3197, %v3209
    %v3212 = vadd.f32 %v3198, %v3209
    %v3213 = vadd.f32 %v3199, %v3209
    %v3214 = vadd.f32 %v3200, %v3209
    %v3215 = vadd.f32 %v3201, %v3209
    %v3216 = vadd.f32 %v3202, %v3209
    %v3217 = vadd.f32 %v3203, %v3209
    %v3218 = vadd.f32 %v3204, %v3209
    %v3219 = vmax.f32 %v3211, 0.0
    %v3220 = vmax.f32 %v3212, 0.0
    %v3221 = vmax.f32 %v3213, 0.0
    %v3222 = vmax.f32 %v3214, 0.0
    %v3223 = vmax.f32 %v3215, 0.0
    %v3224 = vmax.f32 %v3216, 0.0
    %v3225 = vmax.f32 %v3217, 0.0
    %v3226 = vmax.f32 %v3218, 0.0
    %v3227 = vpack.c.bf16 %v3220, %v3219
    %v3228 = vpack.c.bf16 %v3222, %v3221
    %v3229 = vpack.c.bf16 %v3224, %v3223
    %v3230 = vpack.c.bf16 %v3226, %v3225
    %v3231 = vld [vmem:[%s17] sm:$0xf]
    %v3232 = vld [vmem:[%s17 + $0x4] sm:$0xf]
    %v3233 = vld [vmem:[%s17 + $0x8] sm:$0xf]
    %v3234 = vld [vmem:[%s17 + $0xc] sm:$0xf]
    %v3235 = vld [vmem:[%s17 + $0x10] sm:$0xf]
    %v3236 = vld [vmem:[%s17 + $0x14] sm:$0xf]
    %v3237 = vld [vmem:[%s17 + $0x18] sm:$0xf]
    %v3238 = vld [vmem:[%s17 + $0x1c] sm:$0xf]
    %v3239 = vld [vmem:[%s17 + $0x20] sm:$0xf]
    %v3240 = vld [vmem:[%s17 + $0x24] sm:$0xf]
    %v3241 = vld [vmem:[%s17 + $0x28] sm:$0xf]
    %v3242 = vld [vmem:[%s17 + $0x2c] sm:$0xf]
    %v3243 = vld [vmem:[%s17 + $0x30] sm:$0xf]
    %v3244 = vld [vmem:[%s17 + $0x34] sm:$0xf]
    %v3245 = vld [vmem:[%s17 + $0x38] sm:$0xf]
    %v3246 = vld [vmem:[%s17 + $0x3c] sm:$0xf]
    %v3247 = vld [vmem:[%s18] sm:$0x1]
    %v3249 = vlaneseq
    %v3250 = vshrl.u32 %v3249, 7
    %v3251 = vsub.s32 0, %v3250
    %v3252 = vrot.slane %v3247, %v3251
    %v3270 = vunpack.c.l.b16 %v3231
    %v3271 = vunpack.c.l.b16 %v3232
    %v3272 = vunpack.c.l.b16 %v3233
    %v3273 = vunpack.c.l.b16 %v3234
    %v3274 = vunpack.c.l.b16 %v3235
    %v3275 = vunpack.c.l.b16 %v3236
    %v3276 = vunpack.c.l.b16 %v3237
    %v3277 = vunpack.c.l.b16 %v3238
    %v3278 = vunpack.c.l.b16 %v3239
    %v3279 = vunpack.c.l.b16 %v3240
    %v3280 = vunpack.c.l.b16 %v3241
    %v3281 = vunpack.c.l.b16 %v3242
    %v3282 = vunpack.c.l.b16 %v3243
    %v3283 = vunpack.c.l.b16 %v3244
    %v3284 = vunpack.c.l.b16 %v3245
    %v3285 = vunpack.c.l.b16 %v3246
    %v3286 = vpack.c.b16 %v3271, %v3270
    %v3287 = vpack.c.b16 %v3273, %v3272
    %v3288 = vpack.c.b16 %v3275, %v3274
    %v3289 = vpack.c.b16 %v3277, %v3276
    %v3290 = vpack.c.b16 %v3279, %v3278
    %v3291 = vpack.c.b16 %v3281, %v3280
    %v3292 = vpack.c.b16 %v3283, %v3282
    %v3293 = vpack.c.b16 %v3285, %v3284
    %3302 = vmatprep.subr.bf16.mxu0 0
    %3303 = vmatpush1.bf16.msra.mxu0 %v3293
    %3304 = vmatprep.subr.bf16.mxu0 0
    %3305 = vmatpush1.bf16.msra.mxu0 %v3292
    %3306 = vmatprep.subr.bf16.mxu0 0
    %3307 = vmatpush1.bf16.msra.mxu0 %v3291
    %3308 = vmatprep.subr.bf16.mxu0 0
    %3309 = vmatpush1.bf16.msra.mxu0 %v3290
    %3310 = vmatprep.subr.bf16.mxu0 0
    %3311 = vmatpush1.bf16.msra.mxu0 %v3289
    %3312 = vmatprep.subr.bf16.mxu0 0
    %3313 = vmatpush1.bf16.msra.mxu0 %v3288
    %3314 = vmatprep.subr.bf16.mxu0 0
    %3315 = vmatpush1.bf16.msra.mxu0 %v3287
    %3316 = vmatprep.subr.bf16.mxu0 0
    %3317 = vmatpush1.bf16.msra.mxu0 %v3286
    %3318 = vmatprep.subr.bf16.mxu0 0
    %3319 = vmatpush2.bf16.msra.mxu0 0
    %3320 = vmatprep.subr.bf16.mxu0 0
    %3321 = vmatpush2.bf16.msra.mxu0 0
    %3322 = vmatprep.subr.bf16.mxu0 0
    %3323 = vmatpush2.bf16.msra.mxu0 0
    %3324 = vmatprep.subr.bf16.mxu0 0
    %3325 = vmatpush2.bf16.msra.mxu0 0
    %3326 = vmatprep.subr.bf16.mxu0 0
    %3327 = vmatpush2.bf16.msra.mxu0 0
    %3328 = vmatprep.subr.bf16.mxu0 0
    %3329 = vmatpush2.bf16.msra.mxu0 0
    %3330 = vmatprep.subr.bf16.mxu0 0
    %3331 = vmatpush2.bf16.msra.mxu0 0
    %3332 = vmatprep.subr.bf16.mxu0 0
    %3333 = vmatpush2.bf16.msra.mxu0 0
    %3334 = vmatprep.mubr.bf16.mxu0 0
    %3335 = vmatmul.mubr.bf16.gmra.mxu0 %v3227
    %v3336 = vpop.f32.mrf.mxu0
    %v3337 = vadd.f32 %v3252, %v3336
    %v3338 = vpop.f32.mrf.mxu0
    %v3339 = vpop.f32.mrf.mxu0
    %v3340 = vadd.f32 %v3252, %v3339
    %v3341 = vpop.f32.mrf.mxu0
    %3342 = vmatprep.mubr.bf16.mxu0 0
    %3343 = vmatmul.mubr.bf16.gmra.mxu0 %v3228
    %v3344 = vpop.f32.mrf.mxu0
    %v3345 = vadd.f32 %v3252, %v3344
    %v3346 = vpop.f32.mrf.mxu0
    %v3347 = vpop.f32.mrf.mxu0
    %v3348 = vadd.f32 %v3252, %v3347
    %v3349 = vpop.f32.mrf.mxu0
    %3350 = vmatprep.mubr.bf16.mxu0 0
    %3351 = vmatmul.mubr.bf16.gmra.mxu0 %v3229
    %v3352 = vpop.f32.mrf.mxu0
    %v3353 = vadd.f32 %v3252, %v3352
    %v3354 = vpop.f32.mrf.mxu0
    %v3355 = vpop.f32.mrf.mxu0
    %v3356 = vadd.f32 %v3252, %v3355
    %v3357 = vpop.f32.mrf.mxu0
    %3358 = vmatprep.mubr.bf16.mxu0 0
    %3359 = vmatmul.mubr.bf16.gmra.mxu0 %v3230
    %v3360 = vpop.f32.mrf.mxu0
    %v3361 = vadd.f32 %v3252, %v3360
    %v3362 = vpop.f32.mrf.mxu0
    %v3363 = vpop.f32.mrf.mxu0
    %v3364 = vadd.f32 %v3252, %v3363
    %v3365 = vpop.f32.mrf.mxu0
    %3366 = vdwg.mxu0
    %v3367 = vmax.f32 %v3337, 0.0
    %v3368 = vmax.f32 %v3340, 0.0
    %v3369 = vmax.f32 %v3345, 0.0
    %v3370 = vmax.f32 %v3348, 0.0
    %v3371 = vmax.f32 %v3353, 0.0
    %v3372 = vmax.f32 %v3356, 0.0
    %v3373 = vmax.f32 %v3361, 0.0
    %v3374 = vmax.f32 %v3364, 0.0
    %3375 = vst [vmem:[#allocation2] sm:$0xff] %v3367
    %3376 = vst [vmem:[#allocation2 + $0x8] sm:$0xff] %v3368
    %3377 = vst [vmem:[#allocation2 + $0x10] sm:$0xff] %v3369
    %3378 = vst [vmem:[#allocation2 + $0x18] sm:$0xff] %v3370
    %3379 = vst [vmem:[#allocation2 + $0x20] sm:$0xff] %v3371
    %3380 = vst [vmem:[#allocation2 + $0x28] sm:$0xff] %v3372
    %3381 = vst [vmem:[#allocation2 + $0x30] sm:$0xff] %v3373
    %3382 = vst [vmem:[#allocation2 + $0x38] sm:$0xff] %v3374
    %3384 = vset.pattern.permute.xlu0 0
    %3385 = vperm.xlu0 %3384, %v89
    %v3386 = vpop.permute.xlu0 %3385
    %3389 = vset.pattern.permute.xlu0 0
    %3390 = vperm.xlu0 %3389, %v90
    %v3391 = vpop.permute.xlu0 %3390
    %3394 = vset.pattern.permute.xlu0 0
    %3395 = vperm.xlu0 %3394, %v91
    %v3396 = vpop.permute.xlu0 %3395
    %3399 = vset.pattern.permute.xlu0 0
    %3400 = vperm.xlu0 %3399, %v92
    %v3401 = vpop.permute.xlu0 %3400
    %3404 = vset.pattern.permute.xlu0 0
    %3405 = vperm.xlu0 %3404, %v93
    %v3406 = vpop.permute.xlu0 %3405
    %3409 = vset.pattern.permute.xlu0 0
    %3410 = vperm.xlu0 %3409, %v94
    %v3411 = vpop.permute.xlu0 %3410
    %3414 = vset.pattern.permute.xlu0 0
    %3415 = vperm.xlu0 %3414, %v95
    %v3416 = vpop.permute.xlu0 %3415
    %3419 = vset.pattern.permute.xlu0 0
    %3420 = vperm.xlu0 %3419, %v96
    %v3421 = vpop.permute.xlu0 %3420
    %v3423 = vmul.f32 %v3211, %v3386
    %v3424 = vmul.f32 %v3212, %v3391
    %v3425 = vmul.f32 %v3213, %v3396
    %v3426 = vmul.f32 %v3214, %v3401
    %v3427 = vmul.f32 %v3215, %v3406
    %v3428 = vmul.f32 %v3216, %v3411
    %v3429 = vmul.f32 %v3217, %v3416
    %v3430 = vmul.f32 %v3218, %v3421
    %v3431 = vrot.slane %v3423, 4
    %v3432 = vadd.f32 %v3423, %v3431
    %v3433 = vrot.slane %v3432, 2
    %v3434 = vadd.f32 %v3432, %v3433
    %v3435 = vrot.slane %v3434, 1
    %v3436 = vadd.f32 %v3434, %v3435
    %v3437 = vrot.slane %v3424, 4
    %v3438 = vadd.f32 %v3424, %v3437
    %v3439 = vrot.slane %v3438, 2
    %v3440 = vadd.f32 %v3438, %v3439
    %v3441 = vrot.slane %v3440, 1
    %v3442 = vadd.f32 %v3440, %v3441
    %v3443 = vrot.slane %v3425, 4
    %v3444 = vadd.f32 %v3425, %v3443
    %v3445 = vrot.slane %v3444, 2
    %v3446 = vadd.f32 %v3444, %v3445
    %v3447 = vrot.slane %v3446, 1
    %v3448 = vadd.f32 %v3446, %v3447
    %v3449 = vrot.slane %v3426, 4
    %v3450 = vadd.f32 %v3426, %v3449
    %v3451 = vrot.slane %v3450, 2
    %v3452 = vadd.f32 %v3450, %v3451
    %v3453 = vrot.slane %v3452, 1
    %v3454 = vadd.f32 %v3452, %v3453
    %v3455 = vrot.slane %v3427, 4
    %v3456 = vadd.f32 %v3427, %v3455
    %v3457 = vrot.slane %v3456, 2
    %v3458 = vadd.f32 %v3456, %v3457
    %v3459 = vrot.slane %v3458, 1
    %v3460 = vadd.f32 %v3458, %v3459
    %v3461 = vrot.slane %v3428, 4
    %v3462 = vadd.f32 %v3428, %v3461
    %v3463 = vrot.slane %v3462, 2
    %v3464 = vadd.f32 %v3462, %v3463
    %v3465 = vrot.slane %v3464, 1
    %v3466 = vadd.f32 %v3464, %v3465
    %v3467 = vrot.slane %v3429, 4
    %v3468 = vadd.f32 %v3429, %v3467
    %v3469 = vrot.slane %v3468, 2
    %v3470 = vadd.f32 %v3468, %v3469
    %v3471 = vrot.slane %v3470, 1
    %v3472 = vadd.f32 %v3470, %v3471
    %v3473 = vrot.slane %v3430, 4
    %v3474 = vadd.f32 %v3430, %v3473
    %v3475 = vrot.slane %v3474, 2
    %v3476 = vadd.f32 %v3474, %v3475
    %v3477 = vrot.slane %v3476, 1
    %v3478 = vadd.f32 %v3476, %v3477
    %v3479 = vpack.c.bf16 %v3436, %v3436
    %v3480 = vpack.c.bf16 %v3442, %v3442
    %v3481 = vpack.c.bf16 %v3448, %v3448
    %v3482 = vpack.c.bf16 %v3454, %v3454
    %v3483 = vpack.c.bf16 %v3460, %v3460
    %v3484 = vpack.c.bf16 %v3466, %v3466
    %v3485 = vpack.c.bf16 %v3472, %v3472
    %v3486 = vpack.c.bf16 %v3478, %v3478
    %v3487 = vld [vmem:[%s19] sm:$0xf]
    %v3488 = vld [vmem:[%s19 + $0x4] sm:$0xf]
    %v3489 = vld [vmem:[%s19 + $0x8] sm:$0xf]
    %v3490 = vld [vmem:[%s19 + $0xc] sm:$0xf]
    %v3491 = vld [vmem:[%s19 + $0x10] sm:$0xf]
    %v3492 = vld [vmem:[%s19 + $0x14] sm:$0xf]
    %v3493 = vld [vmem:[%s19 + $0x18] sm:$0xf]
    %v3494 = vld [vmem:[%s19 + $0x1c] sm:$0xf]
    %v3495 = vld [vmem:[%s19 + $0x20] sm:$0xf]
    %v3496 = vld [vmem:[%s19 + $0x24] sm:$0xf]
    %v3497 = vld [vmem:[%s19 + $0x28] sm:$0xf]
    %v3498 = vld [vmem:[%s19 + $0x2c] sm:$0xf]
    %v3499 = vld [vmem:[%s19 + $0x30] sm:$0xf]
    %v3500 = vld [vmem:[%s19 + $0x34] sm:$0xf]
    %v3501 = vld [vmem:[%s19 + $0x38] sm:$0xf]
    %v3502 = vld [vmem:[%s19 + $0x3c] sm:$0xf]
    %v3503 = vld [vmem:[%s20] sm:$0x1]
    %v3505 = vlaneseq
    %v3506 = vshrl.u32 %v3505, 7
    %v3507 = vsub.s32 0, %v3506
    %v3508 = vrot.slane %v3503, %v3507
    %v3518 = vunpack.c.l.b16 %v3479
    %v3519 = vunpack.c.l.b16 %v3480
    %v3520 = vunpack.c.l.b16 %v3481
    %v3521 = vunpack.c.l.b16 %v3482
    %v3522 = vunpack.c.l.b16 %v3483
    %v3523 = vunpack.c.l.b16 %v3484
    %v3524 = vunpack.c.l.b16 %v3485
    %v3525 = vunpack.c.l.b16 %v3486
    %vm3526 = vcmask 1041409
    %v3527 = vsel %vm3526, %v3519, %v3518
    %vm3528 = vcmask 1042434
    %v3529 = vsel %vm3528, %v3520, %v3527
    %vm3530 = vcmask 1043459
    %v3531 = vsel %vm3530, %v3521, %v3529
    %vm3532 = vcmask 1044484
    %v3533 = vsel %vm3532, %v3522, %v3531
    %vm3534 = vcmask 1045509
    %v3535 = vsel %vm3534, %v3523, %v3533
    %vm3536 = vcmask 1046534
    %v3537 = vsel %vm3536, %v3524, %v3535
    %vm3538 = vcmask 1047559
    %v3539 = vsel %vm3538, %v3525, %v3537
    %v3540 = vpack.c.b16 %v3539, %v3539
    %v3558 = vunpack.c.l.b16 %v3487
    %v3559 = vunpack.c.l.b16 %v3488
    %v3560 = vunpack.c.l.b16 %v3489
    %v3561 = vunpack.c.l.b16 %v3490
    %v3562 = vunpack.c.l.b16 %v3491
    %v3563 = vunpack.c.l.b16 %v3492
    %v3564 = vunpack.c.l.b16 %v3493
    %v3565 = vunpack.c.l.b16 %v3494
    %v3566 = vunpack.c.l.b16 %v3495
    %v3567 = vunpack.c.l.b16 %v3496
    %v3568 = vunpack.c.l.b16 %v3497
    %v3569 = vunpack.c.l.b16 %v3498
    %v3570 = vunpack.c.l.b16 %v3499
    %v3571 = vunpack.c.l.b16 %v3500
    %v3572 = vunpack.c.l.b16 %v3501
    %v3573 = vunpack.c.l.b16 %v3502
    %v3574 = vpack.c.b16 %v3559, %v3558
    %v3575 = vpack.c.b16 %v3561, %v3560
    %v3576 = vpack.c.b16 %v3563, %v3562
    %v3577 = vpack.c.b16 %v3565, %v3564
    %v3578 = vpack.c.b16 %v3567, %v3566
    %v3579 = vpack.c.b16 %v3569, %v3568
    %v3580 = vpack.c.b16 %v3571, %v3570
    %v3581 = vpack.c.b16 %v3573, %v3572
    %3590 = vmatprep.subr.bf16.mxu0 0
    %3591 = vmatpush1.bf16.msra.mxu0 %v3581
    %3592 = vmatprep.subr.bf16.mxu0 0
    %3593 = vmatpush1.bf16.msra.mxu0 %v3580
    %3594 = vmatprep.subr.bf16.mxu0 0
    %3595 = vmatpush1.bf16.msra.mxu0 %v3579
    %3596 = vmatprep.subr.bf16.mxu0 0
    %3597 = vmatpush1.bf16.msra.mxu0 %v3578
    %3598 = vmatprep.subr.bf16.mxu0 0
    %3599 = vmatpush1.bf16.msra.mxu0 %v3577
    %3600 = vmatprep.subr.bf16.mxu0 0
    %3601 = vmatpush1.bf16.msra.mxu0 %v3576
    %3602 = vmatprep.subr.bf16.mxu0 0
    %3603 = vmatpush1.bf16.msra.mxu0 %v3575
    %3604 = vmatprep.subr.bf16.mxu0 0
    %3605 = vmatpush1.bf16.msra.mxu0 %v3574
    %3606 = vmatprep.subr.bf16.mxu0 0
    %3607 = vmatpush2.bf16.msra.mxu0 0
    %3608 = vmatprep.subr.bf16.mxu0 0
    %3609 = vmatpush2.bf16.msra.mxu0 0
    %3610 = vmatprep.subr.bf16.mxu0 0
    %3611 = vmatpush2.bf16.msra.mxu0 0
    %3612 = vmatprep.subr.bf16.mxu0 0
    %3613 = vmatpush2.bf16.msra.mxu0 0
    %3614 = vmatprep.subr.bf16.mxu0 0
    %3615 = vmatpush2.bf16.msra.mxu0 0
    %3616 = vmatprep.subr.bf16.mxu0 0
    %3617 = vmatpush2.bf16.msra.mxu0 0
    %3618 = vmatprep.subr.bf16.mxu0 0
    %3619 = vmatpush2.bf16.msra.mxu0 0
    %3620 = vmatprep.subr.bf16.mxu0 0
    %3621 = vmatpush2.bf16.msra.mxu0 0
    %3622 = vmatprep.mubr.bf16.mxu0 0
    %3623 = vmatmul.mubr.bf16.gmra.mxu0 %v3540
    %v3624 = vpop.f32.mrf.mxu0
    %v3625 = vadd.f32 %v3508, %v3624
    %v3626 = vpop.f32.mrf.mxu0
    %v3627 = vpop.f32.mrf.mxu0
    %v3628 = vpop.f32.mrf.mxu0
    %3629 = vdwg.mxu0
    %v3630 = vmax.f32 %v3625, 0.0
    %3631 = vst [vmem:[#allocation4] sm:$0xff] %v3630
    // Predicated region
    $region86: #{tpu_custom_call.1} parent=1 // pred_check
      _
    $region87: #{tpu_custom_call.1} parent=1 // pred_check_branch
      %3633 = sbr.rel (0) target = $region89
    $region88: #{tpu_custom_call.1} parent=1 // pred_region
      %s3635 = ssub.s32 1024, 1024
      %3636 = vsyncadd [#allocation3], %s3635
      %s3637 = sshll.u32 [#allocation2], 4
      %s3638 = int_to_ptr.vmem [resolvable:$true] %s3637
      %3643 = dma.vmem_to_hbm [thread:$0]  %s3638, 1024, %s21, [#allocation3], 128, 128, 8
    $region89: #{tpu_custom_call.1} parent=1 // pred_fallthru
      _
    // Predicated region
    $region90: #{tpu_custom_call.1} parent=1 // pred_check
      _
    $region91: #{tpu_custom_call.1} parent=1 // pred_check_branch
      %3645 = sbr.rel (0) target = $region93
    $region92: #{tpu_custom_call.1} parent=1 // pred_region
      %s3647 = ssub.s32 128, 128
      %3648 = vsyncadd [#allocation5], %s3647
      %s3650 = sshll.u32 [#allocation4], 4
      %s3651 = int_to_ptr.vmem [resolvable:$true] %s3650
      %3653 = dma.vmem_to_hbm [thread:$0]  %s3651, 128, %s22, [#allocation5]
    $region93: #{tpu_custom_call.1} parent=1 // pred_fallthru
      _
    // Predicated region
    $region94: #{tpu_custom_call.1} parent=1 // pred_check
      _
    $region95: #{tpu_custom_call.1} parent=1 // pred_check_branch
      %3655 = sbr.rel (0) target = $region97
    $region96: #{tpu_custom_call.1} parent=1 // pred_region
      %3656 = dma.done [#allocation3], 1024
    $region97: #{tpu_custom_call.1} parent=1 // pred_fallthru
      _
    // Predicated region
    $region98: #{tpu_custom_call.1} parent=1 // pred_check
      _
    $region99: #{tpu_custom_call.1} parent=1 // pred_check_branch
      %3658 = sbr.rel (0) target = $region101
    $region100: #{tpu_custom_call.1} parent=1 // pred_region
      %3659 = dma.done [#allocation5], 128
    $region101: #{tpu_custom_call.1} parent=1 // pred_fallthru
      _
    %3660 = vsyncpa [#allocation3], 1
    %3661 = vsyncpa [#allocation5], 1

</llo_original>
